<compile_context>
chip_gen: v6e
topology: v6e:2x2x1
jax: 0.10.0
libtpu: 0.0.40
codegen_flags: <defaults>
</compile_context>

<pallas_src>
import math

import numpy as np
import jax
import jax.numpy as jnp
from jax.experimental import pallas as pl
from jax.experimental.pallas import tpu as pltpu

# ---- model dims (CLDNN '1d': MultiHeadedAttention(4, 8), LSTM(8, 64, 2, bi)) ----
ATTN_HIDDEN = 8
NUM_HEADS = 4
HEAD = ATTN_HIDDEN // NUM_HEADS          # 2
LSTM_HIDDEN = 64
NUM_LAYERS = 2
FC_OUT = 8


# --------------------------- fused forward kernel -----------------------------
def _cldnn_fused_kernel(
        x_ref,                                    # (B, C=8, T) encoder features
        wqkv_ref, bqkv_ref, woT_ref, bo_ref,      # attention (packed, pre-transposed)
        w0fx_ref, w0fh_ref, b0f_ref,              # LSTM layer 0, forward
        w0bx_ref, w0bh_ref, b0b_ref,              # LSTM layer 0, backward
        w1fx_ref, w1fh_ref, b1f_ref,              # LSTM layer 1, forward
        w1bx_ref, b1b_ref,                        # LSTM layer 1, backward (1 step)
        wfc_ref, bfc_ref,                         # FC head
        out_ref,                                  # (B, 8)
        seq_sc, hf_sc, hb_sc):                    # VMEM scratch (time-major seqs)
    f32 = jnp.float32
    H = LSTM_HIDDEN
    D = ATTN_HIDDEN
    B, _, T = x_ref.shape

    # ---------------- multi-head self-attention + residual --------------------
    # Only the QKV projection (batched over all B*T rows) uses the MXU; the
    # per-head K=2 score / context / o_proj contractions are VPU broadcasts and
    # XLU lane reductions (no tiny systolic-fill matmuls).
    x = x_ref[...]                                        # (B, C, T)
    xb = [x[b].T for b in range(B)]                       # per-batch (T, C)
    x_all = jnp.concatenate(xb, axis=0)                   # (B*T, C), batch-major
    qkv = (jnp.dot(x_all, wqkv_ref[...], preferred_element_type=f32)
           + bqkv_ref[...])                               # (B*T, 3C)
    woT = woT_ref[...]                                    # (C, C) == Wo.T
    bo = bo_ref[...]                                      # (1, C)
    scale = 1.0 / math.sqrt(HEAD)

    for b in range(B):
        q_b = qkv[b * T:(b + 1) * T, 0:D] * scale         # (T, C)
        kT_b = qkv[b * T:(b + 1) * T, D:2 * D].T          # (C, T)
        vT_b = qkv[b * T:(b + 1) * T, 2 * D:3 * D].T      # (C, T)
        acc = bo + xb[b]                                  # residual + o_proj bias
        for h in range(NUM_HEADS):
            lo = h * HEAD
            # scores via VPU broadcasts: (T,1)*(1,T) rank-1 sums (HEAD == 2)
            s = (q_b[:, lo:lo + 1] * kT_b[lo:lo + 1, :]
                 + q_b[:, lo + 1:lo + 2] * kT_b[lo + 1:lo + 2, :])       # (T, T)
            s = s - jnp.max(s, axis=-1, keepdims=True)
            e = jnp.exp(s)
            p = e * pl.reciprocal(jnp.sum(e, axis=-1, keepdims=True), approx=True)
            # context via VPU mul + XLU lane reductions
            ctx0 = jnp.sum(p * vT_b[lo:lo + 1, :], axis=-1, keepdims=True)   # (T,1)
            ctx1 = jnp.sum(p * vT_b[lo + 1:lo + 2, :], axis=-1, keepdims=True)
            # o_proj contribution of this head as rank-1 outer products
            acc = acc + ctx0 * woT[lo:lo + 1, :] + ctx1 * woT[lo + 1:lo + 2, :]
        # scatter this batch's rows into the time-major sequence buffer
        for t in range(T):
            seq_sc[t * B + b:t * B + b + 1, :] = acc[t:t + 1, :]

    seq = seq_sc[...]                                     # (T*B, C), time-major

    # --------------------------------- BiLSTM ---------------------------------
    def cell(gates, c_prev):
        # gate columns pre-ordered [i | f | o | g] at weight-prep time
        sg = jax.nn.sigmoid(gates[:, :3 * H])
        i_g, f_g, o_g = sg[:, :H], sg[:, H:2 * H], sg[:, 2 * H:3 * H]
        g_g = jnp.tanh(gates[:, 3 * H:])
        c = i_g * g_g if c_prev is None else f_g * c_prev + i_g * g_g
        return o_g * jnp.tanh(c), c

    # layer 0: hoisted input projections (one matmul per direction)
    gx0f = jnp.dot(seq, w0fx_ref[...], preferred_element_type=f32) + b0f_ref[...]
    gx0b = jnp.dot(seq, w0bx_ref[...], preferred_element_type=f32) + b0b_ref[...]
    w0fh = w0fh_ref[...]
    w0bh = w0bh_ref[...]

    hf = cf = hb = cb = None
    for k in range(T):                 # fully unrolled; both directions fused
        tf, tb = k, T - 1 - k
        gf = gx0f[tf * B:(tf + 1) * B, :]
        if hf is not None:             # first step has h == 0 -> skip W_hh matmul
            gf = gf + jnp.dot(hf, w0fh, preferred_element_type=f32)
        hf, cf = cell(gf, cf)
        hf_sc[tf * B:(tf + 1) * B, :] = hf
        gb = gx0b[tb * B:(tb + 1) * B, :]
        if hb is not None:
            gb = gb + jnp.dot(hb, w0bh, preferred_element_type=f32)
        hb, cb = cell(gb, cb)
        hb_sc[tb * B:(tb + 1) * B, :] = hb

    Hf = hf_sc[...]                                       # (T*B, H), time-major
    Hb = hb_sc[...]

    # layer 1 forward: hoisted projection split over the [fwd | bwd] halves of
    # the 2H-wide input (avoids materializing a (T*B, 2H) concat).
    w1fx = w1fx_ref[...]
    gx1f = (jnp.dot(Hf, w1fx[:H, :], preferred_element_type=f32)
            + jnp.dot(Hb, w1fx[H:, :], preferred_element_type=f32)
            + b1f_ref[...])
    w1fh = w1fh_ref[...]
    h1 = c1 = None
    for t in range(T):
        g = gx1f[t * B:(t + 1) * B, :]
        if h1 is not None:
            g = g + jnp.dot(h1, w1fh, preferred_element_type=f32)
        h1, c1 = cell(g, c1)

    # layer 1 backward: out[-1] only needs this chain's FIRST step (zero initial
    # state, input = layer-0 output at time T-1), so compute just that step.
    w1bx = w1bx_ref[...]
    gb1 = (jnp.dot(Hf[(T - 1) * B:, :], w1bx[:H, :], preferred_element_type=f32)
           + jnp.dot(Hb[(T - 1) * B:, :], w1bx[H:, :], preferred_element_type=f32)
           + b1b_ref[...])
    h1b, _ = cell(gb1, None)

    # -------------------------------- FC head ---------------------------------
    wfc = wfc_ref[...]                                    # (2H, 8)
    out_ref[...] = (jnp.dot(h1, wfc[:H, :], preferred_element_type=f32)
                    + jnp.dot(h1b, wfc[H:, :], preferred_element_type=f32)
                    + bfc_ref[...])


def cldnn_forward(x, packed):
    """x: (B, 8, 1, T) encoder output (NCHW-like). Returns (B, 8)."""
    B = x.shape[0]
    T = x.shape[3]
    x3 = jnp.squeeze(x, axis=2)                           # (B, 8, T) -- free reshape

    args = (x3,
            packed["wqkv"], packed["bqkv"], packed["woT"], packed["bo"],
            packed["w0f_x"], packed["w0f_h"], packed["b0f"],
            packed["w0b_x"], packed["w0b_h"], packed["b0b"],
            packed["w1f_x"], packed["w1f_h"], packed["b1f"],
            packed["w1b_x"], packed["b1b"],
            packed["fc_w"], packed["fc_b"])

    def full_spec(a):
        return pl.BlockSpec(a.shape, lambda i, nd=a.ndim: (0,) * nd)

    return pl.pallas_call(
        _cldnn_fused_kernel,
        out_shape=jax.ShapeDtypeStruct((B, FC_OUT), jnp.float32),
        grid=(1,),
        in_specs=[full_spec(a) for a in args],
        out_specs=pl.BlockSpec((B, FC_OUT), lambda i: (0, 0)),
        scratch_shapes=[pltpu.VMEM((T * B, ATTN_HIDDEN), jnp.float32),   # attn seq
                        pltpu.VMEM((T * B, LSTM_HIDDEN), jnp.float32),   # layer0 fwd
                        pltpu.VMEM((T * B, LSTM_HIDDEN), jnp.float32)],  # layer0 bwd
        compiler_params=pltpu.CompilerParams(dimension_semantics=("arbitrary",)),
    )(*args)


# ---------------------- one-time parameter packing ----------------------------
def pack_params(params):
    """Pre-transpose, QKV-pack, combine biases and reorder LSTM gates once."""
    H = LSTM_HIDDEN
    a = params["attn"]

    def reorder_cols(wt):       # columns [i | f | g | o] -> [i | f | o | g]
        return jnp.concatenate([wt[:, :2 * H], wt[:, 3 * H:], wt[:, 2 * H:3 * H]],
                               axis=1)

    def lstm_dir(d):
        wx = reorder_cols(d["wih"].T)                           # (Din, 4H)
        wh = reorder_cols(d["whh"].T)                           # (H, 4H)
        b = reorder_cols((d["bih"] + d["bhh"])[None, :])        # (1, 4H)
        return wx, wh, b

    packed = {
        "wqkv": jnp.concatenate([a["wq"].T, a["wk"].T, a["wv"].T], axis=1),  # (8,24)
        "bqkv": jnp.concatenate([a["bq"], a["bk"], a["bv"]])[None, :],       # (1,24)
        "woT": a["wo"].T,
        "bo": a["bo"][None, :],
        "fc_w": params["fc"]["w"].T,                 # (2H, 8)
        "fc_b": params["fc"]["b"][None, :],          # (1, 8)
    }
    packed["w0f_x"], packed["w0f_h"], packed["b0f"] = lstm_dir(params["lstm"][0][0])
    packed["w0b_x"], packed["w0b_h"], packed["b0b"] = lstm_dir(params["lstm"][0][1])
    packed["w1f_x"], packed["w1f_h"], packed["b1f"] = lstm_dir(params["lstm"][1][0])
    w1b_x, _w1b_h_unused, b1b = lstm_dir(params["lstm"][1][1])  # W_hh unused (1 step)
    packed["w1b_x"], packed["b1b"] = w1b_x, b1b
    return packed


# ------------------------ deterministic parameter init -------------------------
def init_params(key):
    keys = iter(jax.random.split(key, 64))

    def lin(din, dout):
        k = 1.0 / math.sqrt(din)
        w = jax.random.uniform(next(keys), (dout, din), jnp.float32, -k, k)
        b = jax.random.uniform(next(keys), (dout,), jnp.float32, -k, k)
        return w, b

    attn = {}
    for name in ("q", "k", "v", "o"):
        w, b = lin(ATTN_HIDDEN, ATTN_HIDDEN)
        attn["w" + name] = w
        attn["b" + name] = b

    lstm = []
    for layer in range(NUM_LAYERS):
        din = ATTN_HIDDEN if layer == 0 else 2 * LSTM_HIDDEN
        k = 1.0 / math.sqrt(LSTM_HIDDEN)
        dirs = []
        for _ in range(2):                          # fwd, bwd
            dirs.append({
                "wih": jax.random.uniform(next(keys), (4 * LSTM_HIDDEN, din),
                                          jnp.float32, -k, k),
                "whh": jax.random.uniform(next(keys), (4 * LSTM_HIDDEN, LSTM_HIDDEN),
                                          jnp.float32, -k, k),
                "bih": jax.random.uniform(next(keys), (4 * LSTM_HIDDEN,),
                                          jnp.float32, -k, k),
                "bhh": jax.random.uniform(next(keys), (4 * LSTM_HIDDEN,),
                                          jnp.float32, -k, k),
            })
        lstm.append(dirs)

    wfc, bfc = lin(2 * LSTM_HIDDEN, FC_OUT)
    return {"attn": attn, "lstm": lstm, "fc": {"w": wfc, "b": bfc}}


# ------------------------------ pure-JAX reference ------------------------------
def ref_forward(x, params):
    out = jnp.transpose(jnp.squeeze(x, axis=2), (0, 2, 1))   # (B, T, 8)
    B, T, D = out.shape
    p = params["attn"]
    q = out @ p["wq"].T + p["bq"]
    k = out @ p["wk"].T + p["bk"]
    v = out @ p["wv"].T + p["bv"]

    def split(a):
        return a.reshape(B, T, NUM_HEADS, HEAD).transpose(0, 2, 1, 3)

    qh, kh, vh = split(q), split(k), split(v)
    s = jnp.einsum("bhqd,bhkd->bhqk", qh, kh) / math.sqrt(HEAD)
    pr = jax.nn.softmax(s, axis=-1)
    ctx = jnp.einsum("bhqk,bhkd->bhqd", pr, vh).transpose(0, 2, 1, 3).reshape(B, T, D)
    out = out + (ctx @ p["wo"].T + p["bo"])
    seq = out.transpose(1, 0, 2)
    H = LSTM_HIDDEN

    def run_dir(xs, d):
        def step(carry, x_t):
            h, c = carry
            gates = x_t @ d["wih"].T + h @ d["whh"].T + d["bih"] + d["bhh"]
            i = jax.nn.sigmoid(gates[:, :H])
            f = jax.nn.sigmoid(gates[:, H:2 * H])
            g = jnp.tanh(gates[:, 2 * H:3 * H])
            o = jax.nn.sigmoid(gates[:, 3 * H:])
            c = f * c + i * g
            h = o * jnp.tanh(c)
            return (h, c), h
        init = (jnp.zeros((xs.shape[1], H)), jnp.zeros((xs.shape[1], H)))
        return jax.lax.scan(step, init, xs)[1]

    for layer in range(NUM_LAYERS):
        fdir, bdir = params["lstm"][layer]
        fwd = run_dir(seq, fdir)
        bwd = run_dir(seq[::-1], bdir)[::-1]
        seq = jnp.concatenate([fwd, bwd], axis=-1)
    last = seq[-1]
    return last @ params["fc"]["w"].T + params["fc"]["b"]


if __name__ == "__main__":
    key = jax.random.PRNGKey(0)
    kx, kp = jax.random.split(key)
    B, T = 2, 8
    x = jax.random.normal(kx, (B, ATTN_HIDDEN, 1, T), jnp.float32)
    params = init_params(kp)
    packed = pack_params(params)        # one-time weight prep (no per-call .T)

    fwd = jax.jit(cldnn_forward)
    out = jax.block_until_ready(fwd(x, packed))
    assert out.shape == (B, FC_OUT)

    ref = jax.block_until_ready(ref_forward(x, params))
    # tolerance covers the EUP approximate reciprocal used for the in-kernel
    # softmax normalization; everything else is exact f32 math.
    np.testing.assert_allclose(np.asarray(out), np.asarray(ref), rtol=2e-3, atol=2e-3)
    print("KERNEL_OK")
</pallas_src>

<mosaic_0001>
module attributes {stable_mosaic.version = 11 : i64} {
  func.func @_cldnn_fused_kernel(%arg0: i32, %arg1: memref<2x8x8xf32, #tpu.memory_space<vmem>>, %arg2: memref<8x24xf32, #tpu.memory_space<vmem>>, %arg3: memref<1x24xf32, #tpu.memory_space<vmem>>, %arg4: memref<8x8xf32, #tpu.memory_space<vmem>>, %arg5: memref<1x8xf32, #tpu.memory_space<vmem>>, %arg6: memref<8x256xf32, #tpu.memory_space<vmem>>, %arg7: memref<64x256xf32, #tpu.memory_space<vmem>>, %arg8: memref<1x256xf32, #tpu.memory_space<vmem>>, %arg9: memref<8x256xf32, #tpu.memory_space<vmem>>, %arg10: memref<64x256xf32, #tpu.memory_space<vmem>>, %arg11: memref<1x256xf32, #tpu.memory_space<vmem>>, %arg12: memref<128x256xf32, #tpu.memory_space<vmem>>, %arg13: memref<64x256xf32, #tpu.memory_space<vmem>>, %arg14: memref<1x256xf32, #tpu.memory_space<vmem>>, %arg15: memref<128x256xf32, #tpu.memory_space<vmem>>, %arg16: memref<1x256xf32, #tpu.memory_space<vmem>>, %arg17: memref<128x8xf32, #tpu.memory_space<vmem>>, %arg18: memref<1x8xf32, #tpu.memory_space<vmem>>, %arg19: memref<2x8xf32, #tpu.memory_space<vmem>>, %arg20: memref<16x8xf32, #tpu.memory_space<vmem>>, %arg21: memref<16x64xf32, #tpu.memory_space<vmem>>, %arg22: memref<16x64xf32, #tpu.memory_space<vmem>>) attributes {dimension_semantics = [#tpu.dimension_semantics<arbitrary>], iteration_bounds = array<i64: 1>, scalar_prefetch = 0 : i64, scratch_operands = 3 : i64, tpu.core_type = #tpu.core_type<tc>, window_params = [{pipeline_mode = #tpu.pipeline_mode<synchronous>, transform_indices = @transform_0, window_bounds = array<i64: 2, 8, 8>}, {pipeline_mode = #tpu.pipeline_mode<synchronous>, transform_indices = @transform_1, window_bounds = array<i64: 8, 24>}, {pipeline_mode = #tpu.pipeline_mode<synchronous>, transform_indices = @transform_2, window_bounds = array<i64: 1, 24>}, {pipeline_mode = #tpu.pipeline_mode<synchronous>, transform_indices = @transform_3, window_bounds = array<i64: 8, 8>}, {pipeline_mode = #tpu.pipeline_mode<synchronous>, transform_indices = @transform_4, window_bounds = array<i64: 1, 8>}, {pipeline_mode = #tpu.pipeline_mode<synchronous>, transform_indices = @transform_5, window_bounds = array<i64: 8, 256>}, {pipeline_mode = #tpu.pipeline_mode<synchronous>, transform_indices = @transform_6, window_bounds = array<i64: 64, 256>}, {pipeline_mode = #tpu.pipeline_mode<synchronous>, transform_indices = @transform_7, window_bounds = array<i64: 1, 256>}, {pipeline_mode = #tpu.pipeline_mode<synchronous>, transform_indices = @transform_8, window_bounds = array<i64: 8, 256>}, {pipeline_mode = #tpu.pipeline_mode<synchronous>, transform_indices = @transform_9, window_bounds = array<i64: 64, 256>}, {pipeline_mode = #tpu.pipeline_mode<synchronous>, transform_indices = @transform_10, window_bounds = array<i64: 1, 256>}, {pipeline_mode = #tpu.pipeline_mode<synchronous>, transform_indices = @transform_11, window_bounds = array<i64: 128, 256>}, {pipeline_mode = #tpu.pipeline_mode<synchronous>, transform_indices = @transform_12, window_bounds = array<i64: 64, 256>}, {pipeline_mode = #tpu.pipeline_mode<synchronous>, transform_indices = @transform_13, window_bounds = array<i64: 1, 256>}, {pipeline_mode = #tpu.pipeline_mode<synchronous>, transform_indices = @transform_14, window_bounds = array<i64: 128, 256>}, {pipeline_mode = #tpu.pipeline_mode<synchronous>, transform_indices = @transform_15, window_bounds = array<i64: 1, 256>}, {pipeline_mode = #tpu.pipeline_mode<synchronous>, transform_indices = @transform_16, window_bounds = array<i64: 128, 8>}, {pipeline_mode = #tpu.pipeline_mode<synchronous>, transform_indices = @transform_17, window_bounds = array<i64: 1, 8>}, {pipeline_mode = #tpu.pipeline_mode<synchronous>, transform_indices = @transform_18, window_bounds = array<i64: 2, 8>}]} {
    %c0 = arith.constant 0 : index
    %c0_0 = arith.constant 0 : index
    %c0_1 = arith.constant 0 : index
    %0 = vector.load %arg1[%c0, %c0_0, %c0_1] : memref<2x8x8xf32, #tpu.memory_space<vmem>>, vector<2x8x8xf32>
    %1 = vector.extract_strided_slice %0 {offsets = [0, 0, 0], sizes = [1, 8, 8], strides = [1, 1, 1]} : vector<2x8x8xf32> to vector<1x8x8xf32>
    %2 = vector.shape_cast %1 : vector<1x8x8xf32> to vector<8x8xf32>
    %3 = tpu.transpose %2, [1, 0] : vector<8x8xf32> -> vector<8x8xf32>
    %4 = vector.extract_strided_slice %0 {offsets = [1, 0, 0], sizes = [1, 8, 8], strides = [1, 1, 1]} : vector<2x8x8xf32> to vector<1x8x8xf32>
    %5 = vector.shape_cast %4 : vector<1x8x8xf32> to vector<8x8xf32>
    %6 = tpu.transpose %5, [1, 0] : vector<8x8xf32> -> vector<8x8xf32>
    %7 = tpu.concatenate %3, %6 in 0 : vector<8x8xf32>, vector<8x8xf32> -> vector<16x8xf32>
    %c0_2 = arith.constant 0 : index
    %c0_3 = arith.constant 0 : index
    %8 = vector.load %arg2[%c0_2, %c0_3] : memref<8x24xf32, #tpu.memory_space<vmem>>, vector<8x24xf32>
    %cst = arith.constant dense<0.000000e+00> : vector<16x24xf32>
    %9 = tpu.matmul %7, %8, %cst {dimension_numbers = #tpu.dot_dimension_numbers<[1], [0], [0], [1], [0, 0, 1, 1], [], []>} : vector<16x8xf32>, vector<8x24xf32>, vector<16x24xf32> -> vector<16x24xf32>
    %c0_4 = arith.constant 0 : index
    %c0_5 = arith.constant 0 : index
    %10 = vector.load %arg3[%c0_4, %c0_5] : memref<1x24xf32, #tpu.memory_space<vmem>>, vector<1x24xf32>
    %11 = vector.broadcast %10 : vector<1x24xf32> to vector<16x24xf32>
    %12 = arith.addf %9, %11 : vector<16x24xf32>
    %c0_6 = arith.constant 0 : index
    %c0_7 = arith.constant 0 : index
    %13 = vector.load %arg4[%c0_6, %c0_7] : memref<8x8xf32, #tpu.memory_space<vmem>>, vector<8x8xf32>
    %c0_8 = arith.constant 0 : index
    %c0_9 = arith.constant 0 : index
    %14 = vector.load %arg5[%c0_8, %c0_9] : memref<1x8xf32, #tpu.memory_space<vmem>>, vector<1x8xf32>
    %15 = vector.extract_strided_slice %12 {offsets = [0, 0], sizes = [8, 8], strides = [1, 1]} : vector<16x24xf32> to vector<8x8xf32>
    %cst_10 = arith.constant 0.707106769 : f32
    %16 = vector.broadcast %cst_10 : f32 to vector<8x8xf32>
    %17 = arith.mulf %15, %16 : vector<8x8xf32>
    %18 = vector.extract_strided_slice %12 {offsets = [0, 8], sizes = [8, 8], strides = [1, 1]} : vector<16x24xf32> to vector<8x8xf32>
    %19 = tpu.transpose %18, [1, 0] : vector<8x8xf32> -> vector<8x8xf32>
    %20 = vector.extract_strided_slice %12 {offsets = [0, 16], sizes = [8, 8], strides = [1, 1]} : vector<16x24xf32> to vector<8x8xf32>
    %21 = tpu.transpose %20, [1, 0] : vector<8x8xf32> -> vector<8x8xf32>
    %22 = vector.broadcast %14 : vector<1x8xf32> to vector<8x8xf32>
    %23 = arith.addf %22, %3 : vector<8x8xf32>
    %24 = vector.extract_strided_slice %17 {offsets = [0, 0], sizes = [8, 1], strides = [1, 1]} : vector<8x8xf32> to vector<8x1xf32>
    %25 = vector.extract_strided_slice %19 {offsets = [0, 0], sizes = [1, 8], strides = [1, 1]} : vector<8x8xf32> to vector<1x8xf32>
    %26 = vector.broadcast %24 : vector<8x1xf32> to vector<8x8xf32>
    %27 = vector.broadcast %25 : vector<1x8xf32> to vector<8x8xf32>
    %28 = arith.mulf %26, %27 : vector<8x8xf32>
    %29 = vector.extract_strided_slice %17 {offsets = [0, 1], sizes = [8, 1], strides = [1, 1]} : vector<8x8xf32> to vector<8x1xf32>
    %30 = vector.extract_strided_slice %19 {offsets = [1, 0], sizes = [1, 8], strides = [1, 1]} : vector<8x8xf32> to vector<1x8xf32>
    %31 = vector.broadcast %29 : vector<8x1xf32> to vector<8x8xf32>
    %32 = vector.broadcast %30 : vector<1x8xf32> to vector<8x8xf32>
    %33 = arith.mulf %31, %32 : vector<8x8xf32>
    %34 = arith.addf %28, %33 : vector<8x8xf32>
    %cst_11 = arith.constant dense<0xFF800000> : vector<8xf32>
    %35 = vector.multi_reduction <maximumf>, %34, %cst_11 [1] : vector<8x8xf32> to vector<8xf32>
    %36 = vector.shape_cast %35 : vector<8xf32> to vector<8x1xf32>
    %37 = vector.broadcast %36 : vector<8x1xf32> to vector<8x8xf32>
    %38 = arith.subf %34, %37 : vector<8x8xf32>
    %39 = math.exp %38 : vector<8x8xf32>
    %cst_12 = arith.constant dense<0.000000e+00> : vector<8xf32>
    %40 = vector.multi_reduction <add>, %39, %cst_12 [1] : vector<8x8xf32> to vector<8xf32>
    %41 = vector.shape_cast %40 : vector<8xf32> to vector<8x1xf32>
    %42 = tpu.reciprocal %41 {approx = true} : vector<8x1xf32> -> vector<8x1xf32>
    %43 = vector.broadcast %42 : vector<8x1xf32> to vector<8x8xf32>
    %44 = arith.mulf %39, %43 : vector<8x8xf32>
    %45 = vector.extract_strided_slice %21 {offsets = [0, 0], sizes = [1, 8], strides = [1, 1]} : vector<8x8xf32> to vector<1x8xf32>
    %46 = vector.broadcast %45 : vector<1x8xf32> to vector<8x8xf32>
    %47 = arith.mulf %44, %46 : vector<8x8xf32>
    %cst_13 = arith.constant dense<0.000000e+00> : vector<8xf32>
    %48 = vector.multi_reduction <add>, %47, %cst_13 [1] : vector<8x8xf32> to vector<8xf32>
    %49 = vector.shape_cast %48 : vector<8xf32> to vector<8x1xf32>
    %50 = vector.extract_strided_slice %21 {offsets = [1, 0], sizes = [1, 8], strides = [1, 1]} : vector<8x8xf32> to vector<1x8xf32>
    %51 = vector.broadcast %50 : vector<1x8xf32> to vector<8x8xf32>
    %52 = arith.mulf %44, %51 : vector<8x8xf32>
    %cst_14 = arith.constant dense<0.000000e+00> : vector<8xf32>
    %53 = vector.multi_reduction <add>, %52, %cst_14 [1] : vector<8x8xf32> to vector<8xf32>
    %54 = vector.shape_cast %53 : vector<8xf32> to vector<8x1xf32>
    %55 = vector.extract_strided_slice %13 {offsets = [0, 0], sizes = [1, 8], strides = [1, 1]} : vector<8x8xf32> to vector<1x8xf32>
    %56 = vector.broadcast %49 : vector<8x1xf32> to vector<8x8xf32>
    %57 = vector.broadcast %55 : vector<1x8xf32> to vector<8x8xf32>
    %58 = arith.mulf %56, %57 : vector<8x8xf32>
    %59 = arith.addf %23, %58 : vector<8x8xf32>
    %60 = vector.extract_strided_slice %13 {offsets = [1, 0], sizes = [1, 8], strides = [1, 1]} : vector<8x8xf32> to vector<1x8xf32>
    %61 = vector.broadcast %54 : vector<8x1xf32> to vector<8x8xf32>
    %62 = vector.broadcast %60 : vector<1x8xf32> to vector<8x8xf32>
    %63 = arith.mulf %61, %62 : vector<8x8xf32>
    %64 = arith.addf %59, %63 : vector<8x8xf32>
    %65 = vector.extract_strided_slice %17 {offsets = [0, 2], sizes = [8, 1], strides = [1, 1]} : vector<8x8xf32> to vector<8x1xf32>
    %66 = vector.extract_strided_slice %19 {offsets = [2, 0], sizes = [1, 8], strides = [1, 1]} : vector<8x8xf32> to vector<1x8xf32>
    %67 = vector.broadcast %65 : vector<8x1xf32> to vector<8x8xf32>
    %68 = vector.broadcast %66 : vector<1x8xf32> to vector<8x8xf32>
    %69 = arith.mulf %67, %68 : vector<8x8xf32>
    %70 = vector.extract_strided_slice %17 {offsets = [0, 3], sizes = [8, 1], strides = [1, 1]} : vector<8x8xf32> to vector<8x1xf32>
    %71 = vector.extract_strided_slice %19 {offsets = [3, 0], sizes = [1, 8], strides = [1, 1]} : vector<8x8xf32> to vector<1x8xf32>
    %72 = vector.broadcast %70 : vector<8x1xf32> to vector<8x8xf32>
    %73 = vector.broadcast %71 : vector<1x8xf32> to vector<8x8xf32>
    %74 = arith.mulf %72, %73 : vector<8x8xf32>
    %75 = arith.addf %69, %74 : vector<8x8xf32>
    %cst_15 = arith.constant dense<0xFF800000> : vector<8xf32>
    %76 = vector.multi_reduction <maximumf>, %75, %cst_15 [1] : vector<8x8xf32> to vector<8xf32>
    %77 = vector.shape_cast %76 : vector<8xf32> to vector<8x1xf32>
    %78 = vector.broadcast %77 : vector<8x1xf32> to vector<8x8xf32>
    %79 = arith.subf %75, %78 : vector<8x8xf32>
    %80 = math.exp %79 : vector<8x8xf32>
    %cst_16 = arith.constant dense<0.000000e+00> : vector<8xf32>
    %81 = vector.multi_reduction <add>, %80, %cst_16 [1] : vector<8x8xf32> to vector<8xf32>
    %82 = vector.shape_cast %81 : vector<8xf32> to vector<8x1xf32>
    %83 = tpu.reciprocal %82 {approx = true} : vector<8x1xf32> -> vector<8x1xf32>
    %84 = vector.broadcast %83 : vector<8x1xf32> to vector<8x8xf32>
    %85 = arith.mulf %80, %84 : vector<8x8xf32>
    %86 = vector.extract_strided_slice %21 {offsets = [2, 0], sizes = [1, 8], strides = [1, 1]} : vector<8x8xf32> to vector<1x8xf32>
    %87 = vector.broadcast %86 : vector<1x8xf32> to vector<8x8xf32>
    %88 = arith.mulf %85, %87 : vector<8x8xf32>
    %cst_17 = arith.constant dense<0.000000e+00> : vector<8xf32>
    %89 = vector.multi_reduction <add>, %88, %cst_17 [1] : vector<8x8xf32> to vector<8xf32>
    %90 = vector.shape_cast %89 : vector<8xf32> to vector<8x1xf32>
    %91 = vector.extract_strided_slice %21 {offsets = [3, 0], sizes = [1, 8], strides = [1, 1]} : vector<8x8xf32> to vector<1x8xf32>
    %92 = vector.broadcast %91 : vector<1x8xf32> to vector<8x8xf32>
    %93 = arith.mulf %85, %92 : vector<8x8xf32>
    %cst_18 = arith.constant dense<0.000000e+00> : vector<8xf32>
    %94 = vector.multi_reduction <add>, %93, %cst_18 [1] : vector<8x8xf32> to vector<8xf32>
    %95 = vector.shape_cast %94 : vector<8xf32> to vector<8x1xf32>
    %96 = vector.extract_strided_slice %13 {offsets = [2, 0], sizes = [1, 8], strides = [1, 1]} : vector<8x8xf32> to vector<1x8xf32>
    %97 = vector.broadcast %90 : vector<8x1xf32> to vector<8x8xf32>
    %98 = vector.broadcast %96 : vector<1x8xf32> to vector<8x8xf32>
    %99 = arith.mulf %97, %98 : vector<8x8xf32>
    %100 = arith.addf %64, %99 : vector<8x8xf32>
    %101 = vector.extract_strided_slice %13 {offsets = [3, 0], sizes = [1, 8], strides = [1, 1]} : vector<8x8xf32> to vector<1x8xf32>
    %102 = vector.broadcast %95 : vector<8x1xf32> to vector<8x8xf32>
    %103 = vector.broadcast %101 : vector<1x8xf32> to vector<8x8xf32>
    %104 = arith.mulf %102, %103 : vector<8x8xf32>
    %105 = arith.addf %100, %104 : vector<8x8xf32>
    %106 = vector.extract_strided_slice %17 {offsets = [0, 4], sizes = [8, 1], strides = [1, 1]} : vector<8x8xf32> to vector<8x1xf32>
    %107 = vector.extract_strided_slice %19 {offsets = [4, 0], sizes = [1, 8], strides = [1, 1]} : vector<8x8xf32> to vector<1x8xf32>
    %108 = vector.broadcast %106 : vector<8x1xf32> to vector<8x8xf32>
    %109 = vector.broadcast %107 : vector<1x8xf32> to vector<8x8xf32>
    %110 = arith.mulf %108, %109 : vector<8x8xf32>
    %111 = vector.extract_strided_slice %17 {offsets = [0, 5], sizes = [8, 1], strides = [1, 1]} : vector<8x8xf32> to vector<8x1xf32>
    %112 = vector.extract_strided_slice %19 {offsets = [5, 0], sizes = [1, 8], strides = [1, 1]} : vector<8x8xf32> to vector<1x8xf32>
    %113 = vector.broadcast %111 : vector<8x1xf32> to vector<8x8xf32>
    %114 = vector.broadcast %112 : vector<1x8xf32> to vector<8x8xf32>
    %115 = arith.mulf %113, %114 : vector<8x8xf32>
    %116 = arith.addf %110, %115 : vector<8x8xf32>
    %cst_19 = arith.constant dense<0xFF800000> : vector<8xf32>
    %117 = vector.multi_reduction <maximumf>, %116, %cst_19 [1] : vector<8x8xf32> to vector<8xf32>
    %118 = vector.shape_cast %117 : vector<8xf32> to vector<8x1xf32>
    %119 = vector.broadcast %118 : vector<8x1xf32> to vector<8x8xf32>
    %120 = arith.subf %116, %119 : vector<8x8xf32>
    %121 = math.exp %120 : vector<8x8xf32>
    %cst_20 = arith.constant dense<0.000000e+00> : vector<8xf32>
    %122 = vector.multi_reduction <add>, %121, %cst_20 [1] : vector<8x8xf32> to vector<8xf32>
    %123 = vector.shape_cast %122 : vector<8xf32> to vector<8x1xf32>
    %124 = tpu.reciprocal %123 {approx = true} : vector<8x1xf32> -> vector<8x1xf32>
    %125 = vector.broadcast %124 : vector<8x1xf32> to vector<8x8xf32>
    %126 = arith.mulf %121, %125 : vector<8x8xf32>
    %127 = vector.extract_strided_slice %21 {offsets = [4, 0], sizes = [1, 8], strides = [1, 1]} : vector<8x8xf32> to vector<1x8xf32>
    %128 = vector.broadcast %127 : vector<1x8xf32> to vector<8x8xf32>
    %129 = arith.mulf %126, %128 : vector<8x8xf32>
    %cst_21 = arith.constant dense<0.000000e+00> : vector<8xf32>
    %130 = vector.multi_reduction <add>, %129, %cst_21 [1] : vector<8x8xf32> to vector<8xf32>
    %131 = vector.shape_cast %130 : vector<8xf32> to vector<8x1xf32>
    %132 = vector.extract_strided_slice %21 {offsets = [5, 0], sizes = [1, 8], strides = [1, 1]} : vector<8x8xf32> to vector<1x8xf32>
    %133 = vector.broadcast %132 : vector<1x8xf32> to vector<8x8xf32>
    %134 = arith.mulf %126, %133 : vector<8x8xf32>
    %cst_22 = arith.constant dense<0.000000e+00> : vector<8xf32>
    %135 = vector.multi_reduction <add>, %134, %cst_22 [1] : vector<8x8xf32> to vector<8xf32>
    %136 = vector.shape_cast %135 : vector<8xf32> to vector<8x1xf32>
    %137 = vector.extract_strided_slice %13 {offsets = [4, 0], sizes = [1, 8], strides = [1, 1]} : vector<8x8xf32> to vector<1x8xf32>
    %138 = vector.broadcast %131 : vector<8x1xf32> to vector<8x8xf32>
    %139 = vector.broadcast %137 : vector<1x8xf32> to vector<8x8xf32>
    %140 = arith.mulf %138, %139 : vector<8x8xf32>
    %141 = arith.addf %105, %140 : vector<8x8xf32>
    %142 = vector.extract_strided_slice %13 {offsets = [5, 0], sizes = [1, 8], strides = [1, 1]} : vector<8x8xf32> to vector<1x8xf32>
    %143 = vector.broadcast %136 : vector<8x1xf32> to vector<8x8xf32>
    %144 = vector.broadcast %142 : vector<1x8xf32> to vector<8x8xf32>
    %145 = arith.mulf %143, %144 : vector<8x8xf32>
    %146 = arith.addf %141, %145 : vector<8x8xf32>
    %147 = vector.extract_strided_slice %17 {offsets = [0, 6], sizes = [8, 1], strides = [1, 1]} : vector<8x8xf32> to vector<8x1xf32>
    %148 = vector.extract_strided_slice %19 {offsets = [6, 0], sizes = [1, 8], strides = [1, 1]} : vector<8x8xf32> to vector<1x8xf32>
    %149 = vector.broadcast %147 : vector<8x1xf32> to vector<8x8xf32>
    %150 = vector.broadcast %148 : vector<1x8xf32> to vector<8x8xf32>
    %151 = arith.mulf %149, %150 : vector<8x8xf32>
    %152 = vector.extract_strided_slice %17 {offsets = [0, 7], sizes = [8, 1], strides = [1, 1]} : vector<8x8xf32> to vector<8x1xf32>
    %153 = vector.extract_strided_slice %19 {offsets = [7, 0], sizes = [1, 8], strides = [1, 1]} : vector<8x8xf32> to vector<1x8xf32>
    %154 = vector.broadcast %152 : vector<8x1xf32> to vector<8x8xf32>
    %155 = vector.broadcast %153 : vector<1x8xf32> to vector<8x8xf32>
    %156 = arith.mulf %154, %155 : vector<8x8xf32>
    %157 = arith.addf %151, %156 : vector<8x8xf32>
    %cst_23 = arith.constant dense<0xFF800000> : vector<8xf32>
    %158 = vector.multi_reduction <maximumf>, %157, %cst_23 [1] : vector<8x8xf32> to vector<8xf32>
    %159 = vector.shape_cast %158 : vector<8xf32> to vector<8x1xf32>
    %160 = vector.broadcast %159 : vector<8x1xf32> to vector<8x8xf32>
    %161 = arith.subf %157, %160 : vector<8x8xf32>
    %162 = math.exp %161 : vector<8x8xf32>
    %cst_24 = arith.constant dense<0.000000e+00> : vector<8xf32>
    %163 = vector.multi_reduction <add>, %162, %cst_24 [1] : vector<8x8xf32> to vector<8xf32>
    %164 = vector.shape_cast %163 : vector<8xf32> to vector<8x1xf32>
    %165 = tpu.reciprocal %164 {approx = true} : vector<8x1xf32> -> vector<8x1xf32>
    %166 = vector.broadcast %165 : vector<8x1xf32> to vector<8x8xf32>
    %167 = arith.mulf %162, %166 : vector<8x8xf32>
    %168 = vector.extract_strided_slice %21 {offsets = [6, 0], sizes = [1, 8], strides = [1, 1]} : vector<8x8xf32> to vector<1x8xf32>
    %169 = vector.broadcast %168 : vector<1x8xf32> to vector<8x8xf32>
    %170 = arith.mulf %167, %169 : vector<8x8xf32>
    %cst_25 = arith.constant dense<0.000000e+00> : vector<8xf32>
    %171 = vector.multi_reduction <add>, %170, %cst_25 [1] : vector<8x8xf32> to vector<8xf32>
    %172 = vector.shape_cast %171 : vector<8xf32> to vector<8x1xf32>
    %173 = vector.extract_strided_slice %21 {offsets = [7, 0], sizes = [1, 8], strides = [1, 1]} : vector<8x8xf32> to vector<1x8xf32>
    %174 = vector.broadcast %173 : vector<1x8xf32> to vector<8x8xf32>
    %175 = arith.mulf %167, %174 : vector<8x8xf32>
    %cst_26 = arith.constant dense<0.000000e+00> : vector<8xf32>
    %176 = vector.multi_reduction <add>, %175, %cst_26 [1] : vector<8x8xf32> to vector<8xf32>
    %177 = vector.shape_cast %176 : vector<8xf32> to vector<8x1xf32>
    %178 = vector.extract_strided_slice %13 {offsets = [6, 0], sizes = [1, 8], strides = [1, 1]} : vector<8x8xf32> to vector<1x8xf32>
    %179 = vector.broadcast %172 : vector<8x1xf32> to vector<8x8xf32>
    %180 = vector.broadcast %178 : vector<1x8xf32> to vector<8x8xf32>
    %181 = arith.mulf %179, %180 : vector<8x8xf32>
    %182 = arith.addf %146, %181 : vector<8x8xf32>
    %183 = vector.extract_strided_slice %13 {offsets = [7, 0], sizes = [1, 8], strides = [1, 1]} : vector<8x8xf32> to vector<1x8xf32>
    %184 = vector.broadcast %177 : vector<8x1xf32> to vector<8x8xf32>
    %185 = vector.broadcast %183 : vector<1x8xf32> to vector<8x8xf32>
    %186 = arith.mulf %184, %185 : vector<8x8xf32>
    %187 = arith.addf %182, %186 : vector<8x8xf32>
    %188 = vector.extract_strided_slice %187 {offsets = [0, 0], sizes = [1, 8], strides = [1, 1]} : vector<8x8xf32> to vector<1x8xf32>
    %c0_27 = arith.constant 0 : index
    %c0_28 = arith.constant 0 : index
    %189 = vector.load %arg20[%c0_27, %c0_28] : memref<16x8xf32, #tpu.memory_space<vmem>>, vector<1x8xf32>
    tpu.vector_store %arg20[%c0_27, %c0_28], %188 {strides = array<i32>} : memref<16x8xf32, #tpu.memory_space<vmem>>, vector<1x8xf32>,
    %190 = vector.extract_strided_slice %187 {offsets = [1, 0], sizes = [1, 8], strides = [1, 1]} : vector<8x8xf32> to vector<1x8xf32>
    %c2 = arith.constant 2 : index
    %c0_29 = arith.constant 0 : index
    %191 = vector.load %arg20[%c2, %c0_29] : memref<16x8xf32, #tpu.memory_space<vmem>>, vector<1x8xf32>
    tpu.vector_store %arg20[%c2, %c0_29], %190 {strides = array<i32>} : memref<16x8xf32, #tpu.memory_space<vmem>>, vector<1x8xf32>,
    %192 = vector.extract_strided_slice %187 {offsets = [2, 0], sizes = [1, 8], strides = [1, 1]} : vector<8x8xf32> to vector<1x8xf32>
    %c4 = arith.constant 4 : index
    %c0_30 = arith.constant 0 : index
    %193 = vector.load %arg20[%c4, %c0_30] : memref<16x8xf32, #tpu.memory_space<vmem>>, vector<1x8xf32>
    tpu.vector_store %arg20[%c4, %c0_30], %192 {strides = array<i32>} : memref<16x8xf32, #tpu.memory_space<vmem>>, vector<1x8xf32>,
    %194 = vector.extract_strided_slice %187 {offsets = [3, 0], sizes = [1, 8], strides = [1, 1]} : vector<8x8xf32> to vector<1x8xf32>
    %c6 = arith.constant 6 : index
    %c0_31 = arith.constant 0 : index
    %195 = vector.load %arg20[%c6, %c0_31] : memref<16x8xf32, #tpu.memory_space<vmem>>, vector<1x8xf32>
    tpu.vector_store %arg20[%c6, %c0_31], %194 {strides = array<i32>} : memref<16x8xf32, #tpu.memory_space<vmem>>, vector<1x8xf32>,
    %196 = vector.extract_strided_slice %187 {offsets = [4, 0], sizes = [1, 8], strides = [1, 1]} : vector<8x8xf32> to vector<1x8xf32>
    %c8 = arith.constant 8 : index
    %c0_32 = arith.constant 0 : index
    %197 = vector.load %arg20[%c8, %c0_32] : memref<16x8xf32, #tpu.memory_space<vmem>>, vector<1x8xf32>
    tpu.vector_store %arg20[%c8, %c0_32], %196 {strides = array<i32>} : memref<16x8xf32, #tpu.memory_space<vmem>>, vector<1x8xf32>,
    %198 = vector.extract_strided_slice %187 {offsets = [5, 0], sizes = [1, 8], strides = [1, 1]} : vector<8x8xf32> to vector<1x8xf32>
    %c10 = arith.constant 10 : index
    %c0_33 = arith.constant 0 : index
    %199 = vector.load %arg20[%c10, %c0_33] : memref<16x8xf32, #tpu.memory_space<vmem>>, vector<1x8xf32>
    tpu.vector_store %arg20[%c10, %c0_33], %198 {strides = array<i32>} : memref<16x8xf32, #tpu.memory_space<vmem>>, vector<1x8xf32>,
    %200 = vector.extract_strided_slice %187 {offsets = [6, 0], sizes = [1, 8], strides = [1, 1]} : vector<8x8xf32> to vector<1x8xf32>
    %c12 = arith.constant 12 : index
    %c0_34 = arith.constant 0 : index
    %201 = vector.load %arg20[%c12, %c0_34] : memref<16x8xf32, #tpu.memory_space<vmem>>, vector<1x8xf32>
    tpu.vector_store %arg20[%c12, %c0_34], %200 {strides = array<i32>} : memref<16x8xf32, #tpu.memory_space<vmem>>, vector<1x8xf32>,
    %202 = vector.extract_strided_slice %187 {offsets = [7, 0], sizes = [1, 8], strides = [1, 1]} : vector<8x8xf32> to vector<1x8xf32>
    %c14 = arith.constant 14 : index
    %c0_35 = arith.constant 0 : index
    %203 = vector.load %arg20[%c14, %c0_35] : memref<16x8xf32, #tpu.memory_space<vmem>>, vector<1x8xf32>
    tpu.vector_store %arg20[%c14, %c0_35], %202 {strides = array<i32>} : memref<16x8xf32, #tpu.memory_space<vmem>>, vector<1x8xf32>,
    %204 = vector.extract_strided_slice %12 {offsets = [8, 0], sizes = [8, 8], strides = [1, 1]} : vector<16x24xf32> to vector<8x8xf32>
    %cst_36 = arith.constant 0.707106769 : f32
    %205 = vector.broadcast %cst_36 : f32 to vector<8x8xf32>
    %206 = arith.mulf %204, %205 : vector<8x8xf32>
    %207 = vector.extract_strided_slice %12 {offsets = [8, 8], sizes = [8, 8], strides = [1, 1]} : vector<16x24xf32> to vector<8x8xf32>
    %208 = tpu.transpose %207, [1, 0] : vector<8x8xf32> -> vector<8x8xf32>
    %209 = vector.extract_strided_slice %12 {offsets = [8, 16], sizes = [8, 8], strides = [1, 1]} : vector<16x24xf32> to vector<8x8xf32>
    %210 = tpu.transpose %209, [1, 0] : vector<8x8xf32> -> vector<8x8xf32>
    %211 = vector.broadcast %14 : vector<1x8xf32> to vector<8x8xf32>
    %212 = arith.addf %211, %6 : vector<8x8xf32>
    %213 = vector.extract_strided_slice %206 {offsets = [0, 0], sizes = [8, 1], strides = [1, 1]} : vector<8x8xf32> to vector<8x1xf32>
    %214 = vector.extract_strided_slice %208 {offsets = [0, 0], sizes = [1, 8], strides = [1, 1]} : vector<8x8xf32> to vector<1x8xf32>
    %215 = vector.broadcast %213 : vector<8x1xf32> to vector<8x8xf32>
    %216 = vector.broadcast %214 : vector<1x8xf32> to vector<8x8xf32>
    %217 = arith.mulf %215, %216 : vector<8x8xf32>
    %218 = vector.extract_strided_slice %206 {offsets = [0, 1], sizes = [8, 1], strides = [1, 1]} : vector<8x8xf32> to vector<8x1xf32>
    %219 = vector.extract_strided_slice %208 {offsets = [1, 0], sizes = [1, 8], strides = [1, 1]} : vector<8x8xf32> to vector<1x8xf32>
    %220 = vector.broadcast %218 : vector<8x1xf32> to vector<8x8xf32>
    %221 = vector.broadcast %219 : vector<1x8xf32> to vector<8x8xf32>
    %222 = arith.mulf %220, %221 : vector<8x8xf32>
    %223 = arith.addf %217, %222 : vector<8x8xf32>
    %cst_37 = arith.constant dense<0xFF800000> : vector<8xf32>
    %224 = vector.multi_reduction <maximumf>, %223, %cst_37 [1] : vector<8x8xf32> to vector<8xf32>
    %225 = vector.shape_cast %224 : vector<8xf32> to vector<8x1xf32>
    %226 = vector.broadcast %225 : vector<8x1xf32> to vector<8x8xf32>
    %227 = arith.subf %223, %226 : vector<8x8xf32>
    %228 = math.exp %227 : vector<8x8xf32>
    %cst_38 = arith.constant dense<0.000000e+00> : vector<8xf32>
    %229 = vector.multi_reduction <add>, %228, %cst_38 [1] : vector<8x8xf32> to vector<8xf32>
    %230 = vector.shape_cast %229 : vector<8xf32> to vector<8x1xf32>
    %231 = tpu.reciprocal %230 {approx = true} : vector<8x1xf32> -> vector<8x1xf32>
    %232 = vector.broadcast %231 : vector<8x1xf32> to vector<8x8xf32>
    %233 = arith.mulf %228, %232 : vector<8x8xf32>
    %234 = vector.extract_strided_slice %210 {offsets = [0, 0], sizes = [1, 8], strides = [1, 1]} : vector<8x8xf32> to vector<1x8xf32>
    %235 = vector.broadcast %234 : vector<1x8xf32> to vector<8x8xf32>
    %236 = arith.mulf %233, %235 : vector<8x8xf32>
    %cst_39 = arith.constant dense<0.000000e+00> : vector<8xf32>
    %237 = vector.multi_reduction <add>, %236, %cst_39 [1] : vector<8x8xf32> to vector<8xf32>
    %238 = vector.shape_cast %237 : vector<8xf32> to vector<8x1xf32>
    %239 = vector.extract_strided_slice %210 {offsets = [1, 0], sizes = [1, 8], strides = [1, 1]} : vector<8x8xf32> to vector<1x8xf32>
    %240 = vector.broadcast %239 : vector<1x8xf32> to vector<8x8xf32>
    %241 = arith.mulf %233, %240 : vector<8x8xf32>
    %cst_40 = arith.constant dense<0.000000e+00> : vector<8xf32>
    %242 = vector.multi_reduction <add>, %241, %cst_40 [1] : vector<8x8xf32> to vector<8xf32>
    %243 = vector.shape_cast %242 : vector<8xf32> to vector<8x1xf32>
    %244 = vector.extract_strided_slice %13 {offsets = [0, 0], sizes = [1, 8], strides = [1, 1]} : vector<8x8xf32> to vector<1x8xf32>
    %245 = vector.broadcast %238 : vector<8x1xf32> to vector<8x8xf32>
    %246 = vector.broadcast %244 : vector<1x8xf32> to vector<8x8xf32>
    %247 = arith.mulf %245, %246 : vector<8x8xf32>
    %248 = arith.addf %212, %247 : vector<8x8xf32>
    %249 = vector.extract_strided_slice %13 {offsets = [1, 0], sizes = [1, 8], strides = [1, 1]} : vector<8x8xf32> to vector<1x8xf32>
    %250 = vector.broadcast %243 : vector<8x1xf32> to vector<8x8xf32>
    %251 = vector.broadcast %249 : vector<1x8xf32> to vector<8x8xf32>
    %252 = arith.mulf %250, %251 : vector<8x8xf32>
    %253 = arith.addf %248, %252 : vector<8x8xf32>
    %254 = vector.extract_strided_slice %206 {offsets = [0, 2], sizes = [8, 1], strides = [1, 1]} : vector<8x8xf32> to vector<8x1xf32>
    %255 = vector.extract_strided_slice %208 {offsets = [2, 0], sizes = [1, 8], strides = [1, 1]} : vector<8x8xf32> to vector<1x8xf32>
    %256 = vector.broadcast %254 : vector<8x1xf32> to vector<8x8xf32>
    %257 = vector.broadcast %255 : vector<1x8xf32> to vector<8x8xf32>
    %258 = arith.mulf %256, %257 : vector<8x8xf32>
    %259 = vector.extract_strided_slice %206 {offsets = [0, 3], sizes = [8, 1], strides = [1, 1]} : vector<8x8xf32> to vector<8x1xf32>
    %260 = vector.extract_strided_slice %208 {offsets = [3, 0], sizes = [1, 8], strides = [1, 1]} : vector<8x8xf32> to vector<1x8xf32>
    %261 = vector.broadcast %259 : vector<8x1xf32> to vector<8x8xf32>
    %262 = vector.broadcast %260 : vector<1x8xf32> to vector<8x8xf32>
    %263 = arith.mulf %261, %262 : vector<8x8xf32>
    %264 = arith.addf %258, %263 : vector<8x8xf32>
    %cst_41 = arith.constant dense<0xFF800000> : vector<8xf32>
    %265 = vector.multi_reduction <maximumf>, %264, %cst_41 [1] : vector<8x8xf32> to vector<8xf32>
    %266 = vector.shape_cast %265 : vector<8xf32> to vector<8x1xf32>
    %267 = vector.broadcast %266 : vector<8x1xf32> to vector<8x8xf32>
    %268 = arith.subf %264, %267 : vector<8x8xf32>
    %269 = math.exp %268 : vector<8x8xf32>
    %cst_42 = arith.constant dense<0.000000e+00> : vector<8xf32>
    %270 = vector.multi_reduction <add>, %269, %cst_42 [1] : vector<8x8xf32> to vector<8xf32>
    %271 = vector.shape_cast %270 : vector<8xf32> to vector<8x1xf32>
    %272 = tpu.reciprocal %271 {approx = true} : vector<8x1xf32> -> vector<8x1xf32>
    %273 = vector.broadcast %272 : vector<8x1xf32> to vector<8x8xf32>
    %274 = arith.mulf %269, %273 : vector<8x8xf32>
    %275 = vector.extract_strided_slice %210 {offsets = [2, 0], sizes = [1, 8], strides = [1, 1]} : vector<8x8xf32> to vector<1x8xf32>
    %276 = vector.broadcast %275 : vector<1x8xf32> to vector<8x8xf32>
    %277 = arith.mulf %274, %276 : vector<8x8xf32>
    %cst_43 = arith.constant dense<0.000000e+00> : vector<8xf32>
    %278 = vector.multi_reduction <add>, %277, %cst_43 [1] : vector<8x8xf32> to vector<8xf32>
    %279 = vector.shape_cast %278 : vector<8xf32> to vector<8x1xf32>
    %280 = vector.extract_strided_slice %210 {offsets = [3, 0], sizes = [1, 8], strides = [1, 1]} : vector<8x8xf32> to vector<1x8xf32>
    %281 = vector.broadcast %280 : vector<1x8xf32> to vector<8x8xf32>
    %282 = arith.mulf %274, %281 : vector<8x8xf32>
    %cst_44 = arith.constant dense<0.000000e+00> : vector<8xf32>
    %283 = vector.multi_reduction <add>, %282, %cst_44 [1] : vector<8x8xf32> to vector<8xf32>
    %284 = vector.shape_cast %283 : vector<8xf32> to vector<8x1xf32>
    %285 = vector.extract_strided_slice %13 {offsets = [2, 0], sizes = [1, 8], strides = [1, 1]} : vector<8x8xf32> to vector<1x8xf32>
    %286 = vector.broadcast %279 : vector<8x1xf32> to vector<8x8xf32>
    %287 = vector.broadcast %285 : vector<1x8xf32> to vector<8x8xf32>
    %288 = arith.mulf %286, %287 : vector<8x8xf32>
    %289 = arith.addf %253, %288 : vector<8x8xf32>
    %290 = vector.extract_strided_slice %13 {offsets = [3, 0], sizes = [1, 8], strides = [1, 1]} : vector<8x8xf32> to vector<1x8xf32>
    %291 = vector.broadcast %284 : vector<8x1xf32> to vector<8x8xf32>
    %292 = vector.broadcast %290 : vector<1x8xf32> to vector<8x8xf32>
    %293 = arith.mulf %291, %292 : vector<8x8xf32>
    %294 = arith.addf %289, %293 : vector<8x8xf32>
    %295 = vector.extract_strided_slice %206 {offsets = [0, 4], sizes = [8, 1], strides = [1, 1]} : vector<8x8xf32> to vector<8x1xf32>
    %296 = vector.extract_strided_slice %208 {offsets = [4, 0], sizes = [1, 8], strides = [1, 1]} : vector<8x8xf32> to vector<1x8xf32>
    %297 = vector.broadcast %295 : vector<8x1xf32> to vector<8x8xf32>
    %298 = vector.broadcast %296 : vector<1x8xf32> to vector<8x8xf32>
    %299 = arith.mulf %297, %298 : vector<8x8xf32>
    %300 = vector.extract_strided_slice %206 {offsets = [0, 5], sizes = [8, 1], strides = [1, 1]} : vector<8x8xf32> to vector<8x1xf32>
    %301 = vector.extract_strided_slice %208 {offsets = [5, 0], sizes = [1, 8], strides = [1, 1]} : vector<8x8xf32> to vector<1x8xf32>
    %302 = vector.broadcast %300 : vector<8x1xf32> to vector<8x8xf32>
    %303 = vector.broadcast %301 : vector<1x8xf32> to vector<8x8xf32>
    %304 = arith.mulf %302, %303 : vector<8x8xf32>
    %305 = arith.addf %299, %304 : vector<8x8xf32>
    %cst_45 = arith.constant dense<0xFF800000> : vector<8xf32>
    %306 = vector.multi_reduction <maximumf>, %305, %cst_45 [1] : vector<8x8xf32> to vector<8xf32>
    %307 = vector.shape_cast %306 : vector<8xf32> to vector<8x1xf32>
    %308 = vector.broadcast %307 : vector<8x1xf32> to vector<8x8xf32>
    %309 = arith.subf %305, %308 : vector<8x8xf32>
    %310 = math.exp %309 : vector<8x8xf32>
    %cst_46 = arith.constant dense<0.000000e+00> : vector<8xf32>
    %311 = vector.multi_reduction <add>, %310, %cst_46 [1] : vector<8x8xf32> to vector<8xf32>
    %312 = vector.shape_cast %311 : vector<8xf32> to vector<8x1xf32>
    %313 = tpu.reciprocal %312 {approx = true} : vector<8x1xf32> -> vector<8x1xf32>
    %314 = vector.broadcast %313 : vector<8x1xf32> to vector<8x8xf32>
    %315 = arith.mulf %310, %314 : vector<8x8xf32>
    %316 = vector.extract_strided_slice %210 {offsets = [4, 0], sizes = [1, 8], strides = [1, 1]} : vector<8x8xf32> to vector<1x8xf32>
    %317 = vector.broadcast %316 : vector<1x8xf32> to vector<8x8xf32>
    %318 = arith.mulf %315, %317 : vector<8x8xf32>
    %cst_47 = arith.constant dense<0.000000e+00> : vector<8xf32>
    %319 = vector.multi_reduction <add>, %318, %cst_47 [1] : vector<8x8xf32> to vector<8xf32>
    %320 = vector.shape_cast %319 : vector<8xf32> to vector<8x1xf32>
    %321 = vector.extract_strided_slice %210 {offsets = [5, 0], sizes = [1, 8], strides = [1, 1]} : vector<8x8xf32> to vector<1x8xf32>
    %322 = vector.broadcast %321 : vector<1x8xf32> to vector<8x8xf32>
    %323 = arith.mulf %315, %322 : vector<8x8xf32>
    %cst_48 = arith.constant dense<0.000000e+00> : vector<8xf32>
    %324 = vector.multi_reduction <add>, %323, %cst_48 [1] : vector<8x8xf32> to vector<8xf32>
    %325 = vector.shape_cast %324 : vector<8xf32> to vector<8x1xf32>
    %326 = vector.extract_strided_slice %13 {offsets = [4, 0], sizes = [1, 8], strides = [1, 1]} : vector<8x8xf32> to vector<1x8xf32>
    %327 = vector.broadcast %320 : vector<8x1xf32> to vector<8x8xf32>
    %328 = vector.broadcast %326 : vector<1x8xf32> to vector<8x8xf32>
    %329 = arith.mulf %327, %328 : vector<8x8xf32>
    %330 = arith.addf %294, %329 : vector<8x8xf32>
    %331 = vector.extract_strided_slice %13 {offsets = [5, 0], sizes = [1, 8], strides = [1, 1]} : vector<8x8xf32> to vector<1x8xf32>
    %332 = vector.broadcast %325 : vector<8x1xf32> to vector<8x8xf32>
    %333 = vector.broadcast %331 : vector<1x8xf32> to vector<8x8xf32>
    %334 = arith.mulf %332, %333 : vector<8x8xf32>
    %335 = arith.addf %330, %334 : vector<8x8xf32>
    %336 = vector.extract_strided_slice %206 {offsets = [0, 6], sizes = [8, 1], strides = [1, 1]} : vector<8x8xf32> to vector<8x1xf32>
    %337 = vector.extract_strided_slice %208 {offsets = [6, 0], sizes = [1, 8], strides = [1, 1]} : vector<8x8xf32> to vector<1x8xf32>
    %338 = vector.broadcast %336 : vector<8x1xf32> to vector<8x8xf32>
    %339 = vector.broadcast %337 : vector<1x8xf32> to vector<8x8xf32>
    %340 = arith.mulf %338, %339 : vector<8x8xf32>
    %341 = vector.extract_strided_slice %206 {offsets = [0, 7], sizes = [8, 1], strides = [1, 1]} : vector<8x8xf32> to vector<8x1xf32>
    %342 = vector.extract_strided_slice %208 {offsets = [7, 0], sizes = [1, 8], strides = [1, 1]} : vector<8x8xf32> to vector<1x8xf32>
    %343 = vector.broadcast %341 : vector<8x1xf32> to vector<8x8xf32>
    %344 = vector.broadcast %342 : vector<1x8xf32> to vector<8x8xf32>
    %345 = arith.mulf %343, %344 : vector<8x8xf32>
    %346 = arith.addf %340, %345 : vector<8x8xf32>
    %cst_49 = arith.constant dense<0xFF800000> : vector<8xf32>
    %347 = vector.multi_reduction <maximumf>, %346, %cst_49 [1] : vector<8x8xf32> to vector<8xf32>
    %348 = vector.shape_cast %347 : vector<8xf32> to vector<8x1xf32>
    %349 = vector.broadcast %348 : vector<8x1xf32> to vector<8x8xf32>
    %350 = arith.subf %346, %349 : vector<8x8xf32>
    %351 = math.exp %350 : vector<8x8xf32>
    %cst_50 = arith.constant dense<0.000000e+00> : vector<8xf32>
    %352 = vector.multi_reduction <add>, %351, %cst_50 [1] : vector<8x8xf32> to vector<8xf32>
    %353 = vector.shape_cast %352 : vector<8xf32> to vector<8x1xf32>
    %354 = tpu.reciprocal %353 {approx = true} : vector<8x1xf32> -> vector<8x1xf32>
    %355 = vector.broadcast %354 : vector<8x1xf32> to vector<8x8xf32>
    %356 = arith.mulf %351, %355 : vector<8x8xf32>
    %357 = vector.extract_strided_slice %210 {offsets = [6, 0], sizes = [1, 8], strides = [1, 1]} : vector<8x8xf32> to vector<1x8xf32>
    %358 = vector.broadcast %357 : vector<1x8xf32> to vector<8x8xf32>
    %359 = arith.mulf %356, %358 : vector<8x8xf32>
    %cst_51 = arith.constant dense<0.000000e+00> : vector<8xf32>
    %360 = vector.multi_reduction <add>, %359, %cst_51 [1] : vector<8x8xf32> to vector<8xf32>
    %361 = vector.shape_cast %360 : vector<8xf32> to vector<8x1xf32>
    %362 = vector.extract_strided_slice %210 {offsets = [7, 0], sizes = [1, 8], strides = [1, 1]} : vector<8x8xf32> to vector<1x8xf32>
    %363 = vector.broadcast %362 : vector<1x8xf32> to vector<8x8xf32>
    %364 = arith.mulf %356, %363 : vector<8x8xf32>
    %cst_52 = arith.constant dense<0.000000e+00> : vector<8xf32>
    %365 = vector.multi_reduction <add>, %364, %cst_52 [1] : vector<8x8xf32> to vector<8xf32>
    %366 = vector.shape_cast %365 : vector<8xf32> to vector<8x1xf32>
    %367 = vector.extract_strided_slice %13 {offsets = [6, 0], sizes = [1, 8], strides = [1, 1]} : vector<8x8xf32> to vector<1x8xf32>
    %368 = vector.broadcast %361 : vector<8x1xf32> to vector<8x8xf32>
    %369 = vector.broadcast %367 : vector<1x8xf32> to vector<8x8xf32>
    %370 = arith.mulf %368, %369 : vector<8x8xf32>
    %371 = arith.addf %335, %370 : vector<8x8xf32>
    %372 = vector.extract_strided_slice %13 {offsets = [7, 0], sizes = [1, 8], strides = [1, 1]} : vector<8x8xf32> to vector<1x8xf32>
    %373 = vector.broadcast %366 : vector<8x1xf32> to vector<8x8xf32>
    %374 = vector.broadcast %372 : vector<1x8xf32> to vector<8x8xf32>
    %375 = arith.mulf %373, %374 : vector<8x8xf32>
    %376 = arith.addf %371, %375 : vector<8x8xf32>
    %377 = vector.extract_strided_slice %376 {offsets = [0, 0], sizes = [1, 8], strides = [1, 1]} : vector<8x8xf32> to vector<1x8xf32>
    %c1 = arith.constant 1 : index
    %c0_53 = arith.constant 0 : index
    %378 = vector.load %arg20[%c1, %c0_53] : memref<16x8xf32, #tpu.memory_space<vmem>>, vector<1x8xf32>
    tpu.vector_store %arg20[%c1, %c0_53], %377 {strides = array<i32>} : memref<16x8xf32, #tpu.memory_space<vmem>>, vector<1x8xf32>,
    %379 = vector.extract_strided_slice %376 {offsets = [1, 0], sizes = [1, 8], strides = [1, 1]} : vector<8x8xf32> to vector<1x8xf32>
    %c3 = arith.constant 3 : index
    %c0_54 = arith.constant 0 : index
    %380 = vector.load %arg20[%c3, %c0_54] : memref<16x8xf32, #tpu.memory_space<vmem>>, vector<1x8xf32>
    tpu.vector_store %arg20[%c3, %c0_54], %379 {strides = array<i32>} : memref<16x8xf32, #tpu.memory_space<vmem>>, vector<1x8xf32>,
    %381 = vector.extract_strided_slice %376 {offsets = [2, 0], sizes = [1, 8], strides = [1, 1]} : vector<8x8xf32> to vector<1x8xf32>
    %c5 = arith.constant 5 : index
    %c0_55 = arith.constant 0 : index
    %382 = vector.load %arg20[%c5, %c0_55] : memref<16x8xf32, #tpu.memory_space<vmem>>, vector<1x8xf32>
    tpu.vector_store %arg20[%c5, %c0_55], %381 {strides = array<i32>} : memref<16x8xf32, #tpu.memory_space<vmem>>, vector<1x8xf32>,
    %383 = vector.extract_strided_slice %376 {offsets = [3, 0], sizes = [1, 8], strides = [1, 1]} : vector<8x8xf32> to vector<1x8xf32>
    %c7 = arith.constant 7 : index
    %c0_56 = arith.constant 0 : index
    %384 = vector.load %arg20[%c7, %c0_56] : memref<16x8xf32, #tpu.memory_space<vmem>>, vector<1x8xf32>
    tpu.vector_store %arg20[%c7, %c0_56], %383 {strides = array<i32>} : memref<16x8xf32, #tpu.memory_space<vmem>>, vector<1x8xf32>,
    %385 = vector.extract_strided_slice %376 {offsets = [4, 0], sizes = [1, 8], strides = [1, 1]} : vector<8x8xf32> to vector<1x8xf32>
    %c9 = arith.constant 9 : index
    %c0_57 = arith.constant 0 : index
    %386 = vector.load %arg20[%c9, %c0_57] : memref<16x8xf32, #tpu.memory_space<vmem>>, vector<1x8xf32>
    tpu.vector_store %arg20[%c9, %c0_57], %385 {strides = array<i32>} : memref<16x8xf32, #tpu.memory_space<vmem>>, vector<1x8xf32>,
    %387 = vector.extract_strided_slice %376 {offsets = [5, 0], sizes = [1, 8], strides = [1, 1]} : vector<8x8xf32> to vector<1x8xf32>
    %c11 = arith.constant 11 : index
    %c0_58 = arith.constant 0 : index
    %388 = vector.load %arg20[%c11, %c0_58] : memref<16x8xf32, #tpu.memory_space<vmem>>, vector<1x8xf32>
    tpu.vector_store %arg20[%c11, %c0_58], %387 {strides = array<i32>} : memref<16x8xf32, #tpu.memory_space<vmem>>, vector<1x8xf32>,
    %389 = vector.extract_strided_slice %376 {offsets = [6, 0], sizes = [1, 8], strides = [1, 1]} : vector<8x8xf32> to vector<1x8xf32>
    %c13 = arith.constant 13 : index
    %c0_59 = arith.constant 0 : index
    %390 = vector.load %arg20[%c13, %c0_59] : memref<16x8xf32, #tpu.memory_space<vmem>>, vector<1x8xf32>
    tpu.vector_store %arg20[%c13, %c0_59], %389 {strides = array<i32>} : memref<16x8xf32, #tpu.memory_space<vmem>>, vector<1x8xf32>,
    %391 = vector.extract_strided_slice %376 {offsets = [7, 0], sizes = [1, 8], strides = [1, 1]} : vector<8x8xf32> to vector<1x8xf32>
    %c15 = arith.constant 15 : index
    %c0_60 = arith.constant 0 : index
    %392 = vector.load %arg20[%c15, %c0_60] : memref<16x8xf32, #tpu.memory_space<vmem>>, vector<1x8xf32>
    tpu.vector_store %arg20[%c15, %c0_60], %391 {strides = array<i32>} : memref<16x8xf32, #tpu.memory_space<vmem>>, vector<1x8xf32>,
    %c0_61 = arith.constant 0 : index
    %c0_62 = arith.constant 0 : index
    %393 = vector.load %arg20[%c0_61, %c0_62] : memref<16x8xf32, #tpu.memory_space<vmem>>, vector<16x8xf32>
    %c0_63 = arith.constant 0 : index
    %c0_64 = arith.constant 0 : index
    %394 = vector.load %arg6[%c0_63, %c0_64] : memref<8x256xf32, #tpu.memory_space<vmem>>, vector<8x256xf32>
    %cst_65 = arith.constant dense<0.000000e+00> : vector<16x256xf32>
    %395 = tpu.matmul %393, %394, %cst_65 {dimension_numbers = #tpu.dot_dimension_numbers<[1], [0], [0], [1], [0, 0, 1, 1], [], []>} : vector<16x8xf32>, vector<8x256xf32>, vector<16x256xf32> -> vector<16x256xf32>
    %c0_66 = arith.constant 0 : index
    %c0_67 = arith.constant 0 : index
    %396 = vector.load %arg8[%c0_66, %c0_67] : memref<1x256xf32, #tpu.memory_space<vmem>>, vector<1x256xf32>
    %397 = vector.broadcast %396 : vector<1x256xf32> to vector<16x256xf32>
    %398 = arith.addf %395, %397 : vector<16x256xf32>
    %c0_68 = arith.constant 0 : index
    %c0_69 = arith.constant 0 : index
    %399 = vector.load %arg9[%c0_68, %c0_69] : memref<8x256xf32, #tpu.memory_space<vmem>>, vector<8x256xf32>
    %cst_70 = arith.constant dense<0.000000e+00> : vector<16x256xf32>
    %400 = tpu.matmul %393, %399, %cst_70 {dimension_numbers = #tpu.dot_dimension_numbers<[1], [0], [0], [1], [0, 0, 1, 1], [], []>} : vector<16x8xf32>, vector<8x256xf32>, vector<16x256xf32> -> vector<16x256xf32>
    %c0_71 = arith.constant 0 : index
    %c0_72 = arith.constant 0 : index
    %401 = vector.load %arg11[%c0_71, %c0_72] : memref<1x256xf32, #tpu.memory_space<vmem>>, vector<1x256xf32>
    %402 = vector.broadcast %401 : vector<1x256xf32> to vector<16x256xf32>
    %403 = arith.addf %400, %402 : vector<16x256xf32>
    %c0_73 = arith.constant 0 : index
    %c0_74 = arith.constant 0 : index
    %404 = vector.load %arg7[%c0_73, %c0_74] : memref<64x256xf32, #tpu.memory_space<vmem>>, vector<64x256xf32>
    %c0_75 = arith.constant 0 : index
    %c0_76 = arith.constant 0 : index
    %405 = vector.load %arg10[%c0_75, %c0_76] : memref<64x256xf32, #tpu.memory_space<vmem>>, vector<64x256xf32>
    %406 = vector.extract_strided_slice %398 {offsets = [0, 0], sizes = [2, 256], strides = [1, 1]} : vector<16x256xf32> to vector<2x256xf32>
    %407 = vector.extract_strided_slice %406 {offsets = [0, 0], sizes = [2, 192], strides = [1, 1]} : vector<2x256xf32> to vector<2x192xf32>
    %408 = arith.negf %407 : vector<2x192xf32>
    %409 = math.exp %408 : vector<2x192xf32>
    %cst_77 = arith.constant 1.000000e+00 : f32
    %410 = vector.broadcast %cst_77 : f32 to vector<2x192xf32>
    %411 = arith.addf %410, %409 : vector<2x192xf32>
    %412 = arith.divf %410, %411 : vector<2x192xf32>
    %413 = vector.extract_strided_slice %412 {offsets = [0, 0], sizes = [2, 64], strides = [1, 1]} : vector<2x192xf32> to vector<2x64xf32>
    %414 = vector.extract_strided_slice %412 {offsets = [0, 128], sizes = [2, 64], strides = [1, 1]} : vector<2x192xf32> to vector<2x64xf32>
    %415 = vector.extract_strided_slice %406 {offsets = [0, 192], sizes = [2, 64], strides = [1, 1]} : vector<2x256xf32> to vector<2x64xf32>
    %416 = math.tanh %415 : vector<2x64xf32>
    %417 = arith.mulf %413, %416 : vector<2x64xf32>
    %418 = math.tanh %417 : vector<2x64xf32>
    %419 = arith.mulf %414, %418 : vector<2x64xf32>
    %c0_78 = arith.constant 0 : index
    %c0_79 = arith.constant 0 : index
    %420 = vector.load %arg21[%c0_78, %c0_79] : memref<16x64xf32, #tpu.memory_space<vmem>>, vector<2x64xf32>
    tpu.vector_store %arg21[%c0_78, %c0_79], %419 {strides = array<i32>} : memref<16x64xf32, #tpu.memory_space<vmem>>, vector<2x64xf32>,
    %421 = vector.extract_strided_slice %403 {offsets = [14, 0], sizes = [2, 256], strides = [1, 1]} : vector<16x256xf32> to vector<2x256xf32>
    %422 = vector.extract_strided_slice %421 {offsets = [0, 0], sizes = [2, 192], strides = [1, 1]} : vector<2x256xf32> to vector<2x192xf32>
    %423 = arith.negf %422 : vector<2x192xf32>
    %424 = math.exp %423 : vector<2x192xf32>
    %cst_80 = arith.constant 1.000000e+00 : f32
    %425 = vector.broadcast %cst_80 : f32 to vector<2x192xf32>
    %426 = arith.addf %425, %424 : vector<2x192xf32>
    %427 = arith.divf %425, %426 : vector<2x192xf32>
    %428 = vector.extract_strided_slice %427 {offsets = [0, 0], sizes = [2, 64], strides = [1, 1]} : vector<2x192xf32> to vector<2x64xf32>
    %429 = vector.extract_strided_slice %427 {offsets = [0, 128], sizes = [2, 64], strides = [1, 1]} : vector<2x192xf32> to vector<2x64xf32>
    %430 = vector.extract_strided_slice %421 {offsets = [0, 192], sizes = [2, 64], strides = [1, 1]} : vector<2x256xf32> to vector<2x64xf32>
    %431 = math.tanh %430 : vector<2x64xf32>
    %432 = arith.mulf %428, %431 : vector<2x64xf32>
    %433 = math.tanh %432 : vector<2x64xf32>
    %434 = arith.mulf %429, %433 : vector<2x64xf32>
    %c14_81 = arith.constant 14 : index
    %c0_82 = arith.constant 0 : index
    %435 = vector.load %arg22[%c14_81, %c0_82] : memref<16x64xf32, #tpu.memory_space<vmem>>, vector<2x64xf32>
    tpu.vector_store %arg22[%c14_81, %c0_82], %434 {strides = array<i32>} : memref<16x64xf32, #tpu.memory_space<vmem>>, vector<2x64xf32>,
    %436 = vector.extract_strided_slice %398 {offsets = [2, 0], sizes = [2, 256], strides = [1, 1]} : vector<16x256xf32> to vector<2x256xf32>
    %cst_83 = arith.constant dense<0.000000e+00> : vector<2x256xf32>
    %437 = tpu.matmul %419, %404, %cst_83 {dimension_numbers = #tpu.dot_dimension_numbers<[1], [0], [0], [1], [0, 0, 1, 1], [], []>} : vector<2x64xf32>, vector<64x256xf32>, vector<2x256xf32> -> vector<2x256xf32>
    %438 = arith.addf %436, %437 : vector<2x256xf32>
    %439 = vector.extract_strided_slice %438 {offsets = [0, 0], sizes = [2, 192], strides = [1, 1]} : vector<2x256xf32> to vector<2x192xf32>
    %440 = arith.negf %439 : vector<2x192xf32>
    %441 = math.exp %440 : vector<2x192xf32>
    %cst_84 = arith.constant 1.000000e+00 : f32
    %442 = vector.broadcast %cst_84 : f32 to vector<2x192xf32>
    %443 = arith.addf %442, %441 : vector<2x192xf32>
    %444 = arith.divf %442, %443 : vector<2x192xf32>
    %445 = vector.extract_strided_slice %444 {offsets = [0, 0], sizes = [2, 64], strides = [1, 1]} : vector<2x192xf32> to vector<2x64xf32>
    %446 = vector.extract_strided_slice %444 {offsets = [0, 64], sizes = [2, 64], strides = [1, 1]} : vector<2x192xf32> to vector<2x64xf32>
    %447 = vector.extract_strided_slice %444 {offsets = [0, 128], sizes = [2, 64], strides = [1, 1]} : vector<2x192xf32> to vector<2x64xf32>
    %448 = vector.extract_strided_slice %438 {offsets = [0, 192], sizes = [2, 64], strides = [1, 1]} : vector<2x256xf32> to vector<2x64xf32>
    %449 = math.tanh %448 : vector<2x64xf32>
    %450 = arith.mulf %446, %417 : vector<2x64xf32>
    %451 = arith.mulf %445, %449 : vector<2x64xf32>
    %452 = arith.addf %450, %451 : vector<2x64xf32>
    %453 = math.tanh %452 : vector<2x64xf32>
    %454 = arith.mulf %447, %453 : vector<2x64xf32>
    %c2_85 = arith.constant 2 : index
    %c0_86 = arith.constant 0 : index
    %455 = vector.load %arg21[%c2_85, %c0_86] : memref<16x64xf32, #tpu.memory_space<vmem>>, vector<2x64xf32>
    tpu.vector_store %arg21[%c2_85, %c0_86], %454 {strides = array<i32>} : memref<16x64xf32, #tpu.memory_space<vmem>>, vector<2x64xf32>,
    %456 = vector.extract_strided_slice %403 {offsets = [12, 0], sizes = [2, 256], strides = [1, 1]} : vector<16x256xf32> to vector<2x256xf32>
    %cst_87 = arith.constant dense<0.000000e+00> : vector<2x256xf32>
    %457 = tpu.matmul %434, %405, %cst_87 {dimension_numbers = #tpu.dot_dimension_numbers<[1], [0], [0], [1], [0, 0, 1, 1], [], []>} : vector<2x64xf32>, vector<64x256xf32>, vector<2x256xf32> -> vector<2x256xf32>
    %458 = arith.addf %456, %457 : vector<2x256xf32>
    %459 = vector.extract_strided_slice %458 {offsets = [0, 0], sizes = [2, 192], strides = [1, 1]} : vector<2x256xf32> to vector<2x192xf32>
    %460 = arith.negf %459 : vector<2x192xf32>
    %461 = math.exp %460 : vector<2x192xf32>
    %cst_88 = arith.constant 1.000000e+00 : f32
    %462 = vector.broadcast %cst_88 : f32 to vector<2x192xf32>
    %463 = arith.addf %462, %461 : vector<2x192xf32>
    %464 = arith.divf %462, %463 : vector<2x192xf32>
    %465 = vector.extract_strided_slice %464 {offsets = [0, 0], sizes = [2, 64], strides = [1, 1]} : vector<2x192xf32> to vector<2x64xf32>
    %466 = vector.extract_strided_slice %464 {offsets = [0, 64], sizes = [2, 64], strides = [1, 1]} : vector<2x192xf32> to vector<2x64xf32>
    %467 = vector.extract_strided_slice %464 {offsets = [0, 128], sizes = [2, 64], strides = [1, 1]} : vector<2x192xf32> to vector<2x64xf32>
    %468 = vector.extract_strided_slice %458 {offsets = [0, 192], sizes = [2, 64], strides = [1, 1]} : vector<2x256xf32> to vector<2x64xf32>
    %469 = math.tanh %468 : vector<2x64xf32>
    %470 = arith.mulf %466, %432 : vector<2x64xf32>
    %471 = arith.mulf %465, %469 : vector<2x64xf32>
    %472 = arith.addf %470, %471 : vector<2x64xf32>
    %473 = math.tanh %472 : vector<2x64xf32>
    %474 = arith.mulf %467, %473 : vector<2x64xf32>
    %c12_89 = arith.constant 12 : index
    %c0_90 = arith.constant 0 : index
    %475 = vector.load %arg22[%c12_89, %c0_90] : memref<16x64xf32, #tpu.memory_space<vmem>>, vector<2x64xf32>
    tpu.vector_store %arg22[%c12_89, %c0_90], %474 {strides = array<i32>} : memref<16x64xf32, #tpu.memory_space<vmem>>, vector<2x64xf32>,
    %476 = vector.extract_strided_slice %398 {offsets = [4, 0], sizes = [2, 256], strides = [1, 1]} : vector<16x256xf32> to vector<2x256xf32>
    %cst_91 = arith.constant dense<0.000000e+00> : vector<2x256xf32>
    %477 = tpu.matmul %454, %404, %cst_91 {dimension_numbers = #tpu.dot_dimension_numbers<[1], [0], [0], [1], [0, 0, 1, 1], [], []>} : vector<2x64xf32>, vector<64x256xf32>, vector<2x256xf32> -> vector<2x256xf32>
    %478 = arith.addf %476, %477 : vector<2x256xf32>
    %479 = vector.extract_strided_slice %478 {offsets = [0, 0], sizes = [2, 192], strides = [1, 1]} : vector<2x256xf32> to vector<2x192xf32>
    %480 = arith.negf %479 : vector<2x192xf32>
    %481 = math.exp %480 : vector<2x192xf32>
    %cst_92 = arith.constant 1.000000e+00 : f32
    %482 = vector.broadcast %cst_92 : f32 to vector<2x192xf32>
    %483 = arith.addf %482, %481 : vector<2x192xf32>
    %484 = arith.divf %482, %483 : vector<2x192xf32>
    %485 = vector.extract_strided_slice %484 {offsets = [0, 0], sizes = [2, 64], strides = [1, 1]} : vector<2x192xf32> to vector<2x64xf32>
    %486 = vector.extract_strided_slice %484 {offsets = [0, 64], sizes = [2, 64], strides = [1, 1]} : vector<2x192xf32> to vector<2x64xf32>
    %487 = vector.extract_strided_slice %484 {offsets = [0, 128], sizes = [2, 64], strides = [1, 1]} : vector<2x192xf32> to vector<2x64xf32>
    %488 = vector.extract_strided_slice %478 {offsets = [0, 192], sizes = [2, 64], strides = [1, 1]} : vector<2x256xf32> to vector<2x64xf32>
    %489 = math.tanh %488 : vector<2x64xf32>
    %490 = arith.mulf %486, %452 : vector<2x64xf32>
    %491 = arith.mulf %485, %489 : vector<2x64xf32>
    %492 = arith.addf %490, %491 : vector<2x64xf32>
    %493 = math.tanh %492 : vector<2x64xf32>
    %494 = arith.mulf %487, %493 : vector<2x64xf32>
    %c4_93 = arith.constant 4 : index
    %c0_94 = arith.constant 0 : index
    %495 = vector.load %arg21[%c4_93, %c0_94] : memref<16x64xf32, #tpu.memory_space<vmem>>, vector<2x64xf32>
    tpu.vector_store %arg21[%c4_93, %c0_94], %494 {strides = array<i32>} : memref<16x64xf32, #tpu.memory_space<vmem>>, vector<2x64xf32>,
    %496 = vector.extract_strided_slice %403 {offsets = [10, 0], sizes = [2, 256], strides = [1, 1]} : vector<16x256xf32> to vector<2x256xf32>
    %cst_95 = arith.constant dense<0.000000e+00> : vector<2x256xf32>
    %497 = tpu.matmul %474, %405, %cst_95 {dimension_numbers = #tpu.dot_dimension_numbers<[1], [0], [0], [1], [0, 0, 1, 1], [], []>} : vector<2x64xf32>, vector<64x256xf32>, vector<2x256xf32> -> vector<2x256xf32>
    %498 = arith.addf %496, %497 : vector<2x256xf32>
    %499 = vector.extract_strided_slice %498 {offsets = [0, 0], sizes = [2, 192], strides = [1, 1]} : vector<2x256xf32> to vector<2x192xf32>
    %500 = arith.negf %499 : vector<2x192xf32>
    %501 = math.exp %500 : vector<2x192xf32>
    %cst_96 = arith.constant 1.000000e+00 : f32
    %502 = vector.broadcast %cst_96 : f32 to vector<2x192xf32>
    %503 = arith.addf %502, %501 : vector<2x192xf32>
    %504 = arith.divf %502, %503 : vector<2x192xf32>
    %505 = vector.extract_strided_slice %504 {offsets = [0, 0], sizes = [2, 64], strides = [1, 1]} : vector<2x192xf32> to vector<2x64xf32>
    %506 = vector.extract_strided_slice %504 {offsets = [0, 64], sizes = [2, 64], strides = [1, 1]} : vector<2x192xf32> to vector<2x64xf32>
    %507 = vector.extract_strided_slice %504 {offsets = [0, 128], sizes = [2, 64], strides = [1, 1]} : vector<2x192xf32> to vector<2x64xf32>
    %508 = vector.extract_strided_slice %498 {offsets = [0, 192], sizes = [2, 64], strides = [1, 1]} : vector<2x256xf32> to vector<2x64xf32>
    %509 = math.tanh %508 : vector<2x64xf32>
    %510 = arith.mulf %506, %472 : vector<2x64xf32>
    %511 = arith.mulf %505, %509 : vector<2x64xf32>
    %512 = arith.addf %510, %511 : vector<2x64xf32>
    %513 = math.tanh %512 : vector<2x64xf32>
    %514 = arith.mulf %507, %513 : vector<2x64xf32>
    %c10_97 = arith.constant 10 : index
    %c0_98 = arith.constant 0 : index
    %515 = vector.load %arg22[%c10_97, %c0_98] : memref<16x64xf32, #tpu.memory_space<vmem>>, vector<2x64xf32>
    tpu.vector_store %arg22[%c10_97, %c0_98], %514 {strides = array<i32>} : memref<16x64xf32, #tpu.memory_space<vmem>>, vector<2x64xf32>,
    %516 = vector.extract_strided_slice %398 {offsets = [6, 0], sizes = [2, 256], strides = [1, 1]} : vector<16x256xf32> to vector<2x256xf32>
    %cst_99 = arith.constant dense<0.000000e+00> : vector<2x256xf32>
    %517 = tpu.matmul %494, %404, %cst_99 {dimension_numbers = #tpu.dot_dimension_numbers<[1], [0], [0], [1], [0, 0, 1, 1], [], []>} : vector<2x64xf32>, vector<64x256xf32>, vector<2x256xf32> -> vector<2x256xf32>
    %518 = arith.addf %516, %517 : vector<2x256xf32>
    %519 = vector.extract_strided_slice %518 {offsets = [0, 0], sizes = [2, 192], strides = [1, 1]} : vector<2x256xf32> to vector<2x192xf32>
    %520 = arith.negf %519 : vector<2x192xf32>
    %521 = math.exp %520 : vector<2x192xf32>
    %cst_100 = arith.constant 1.000000e+00 : f32
    %522 = vector.broadcast %cst_100 : f32 to vector<2x192xf32>
    %523 = arith.addf %522, %521 : vector<2x192xf32>
    %524 = arith.divf %522, %523 : vector<2x192xf32>
    %525 = vector.extract_strided_slice %524 {offsets = [0, 0], sizes = [2, 64], strides = [1, 1]} : vector<2x192xf32> to vector<2x64xf32>
    %526 = vector.extract_strided_slice %524 {offsets = [0, 64], sizes = [2, 64], strides = [1, 1]} : vector<2x192xf32> to vector<2x64xf32>
    %527 = vector.extract_strided_slice %524 {offsets = [0, 128], sizes = [2, 64], strides = [1, 1]} : vector<2x192xf32> to vector<2x64xf32>
    %528 = vector.extract_strided_slice %518 {offsets = [0, 192], sizes = [2, 64], strides = [1, 1]} : vector<2x256xf32> to vector<2x64xf32>
    %529 = math.tanh %528 : vector<2x64xf32>
    %530 = arith.mulf %526, %492 : vector<2x64xf32>
    %531 = arith.mulf %525, %529 : vector<2x64xf32>
    %532 = arith.addf %530, %531 : vector<2x64xf32>
    %533 = math.tanh %532 : vector<2x64xf32>
    %534 = arith.mulf %527, %533 : vector<2x64xf32>
    %c6_101 = arith.constant 6 : index
    %c0_102 = arith.constant 0 : index
    %535 = vector.load %arg21[%c6_101, %c0_102] : memref<16x64xf32, #tpu.memory_space<vmem>>, vector<2x64xf32>
    tpu.vector_store %arg21[%c6_101, %c0_102], %534 {strides = array<i32>} : memref<16x64xf32, #tpu.memory_space<vmem>>, vector<2x64xf32>,
    %536 = vector.extract_strided_slice %403 {offsets = [8, 0], sizes = [2, 256], strides = [1, 1]} : vector<16x256xf32> to vector<2x256xf32>
    %cst_103 = arith.constant dense<0.000000e+00> : vector<2x256xf32>
    %537 = tpu.matmul %514, %405, %cst_103 {dimension_numbers = #tpu.dot_dimension_numbers<[1], [0], [0], [1], [0, 0, 1, 1], [], []>} : vector<2x64xf32>, vector<64x256xf32>, vector<2x256xf32> -> vector<2x256xf32>
    %538 = arith.addf %536, %537 : vector<2x256xf32>
    %539 = vector.extract_strided_slice %538 {offsets = [0, 0], sizes = [2, 192], strides = [1, 1]} : vector<2x256xf32> to vector<2x192xf32>
    %540 = arith.negf %539 : vector<2x192xf32>
    %541 = math.exp %540 : vector<2x192xf32>
    %cst_104 = arith.constant 1.000000e+00 : f32
    %542 = vector.broadcast %cst_104 : f32 to vector<2x192xf32>
    %543 = arith.addf %542, %541 : vector<2x192xf32>
    %544 = arith.divf %542, %543 : vector<2x192xf32>
    %545 = vector.extract_strided_slice %544 {offsets = [0, 0], sizes = [2, 64], strides = [1, 1]} : vector<2x192xf32> to vector<2x64xf32>
    %546 = vector.extract_strided_slice %544 {offsets = [0, 64], sizes = [2, 64], strides = [1, 1]} : vector<2x192xf32> to vector<2x64xf32>
    %547 = vector.extract_strided_slice %544 {offsets = [0, 128], sizes = [2, 64], strides = [1, 1]} : vector<2x192xf32> to vector<2x64xf32>
    %548 = vector.extract_strided_slice %538 {offsets = [0, 192], sizes = [2, 64], strides = [1, 1]} : vector<2x256xf32> to vector<2x64xf32>
    %549 = math.tanh %548 : vector<2x64xf32>
    %550 = arith.mulf %546, %512 : vector<2x64xf32>
    %551 = arith.mulf %545, %549 : vector<2x64xf32>
    %552 = arith.addf %550, %551 : vector<2x64xf32>
    %553 = math.tanh %552 : vector<2x64xf32>
    %554 = arith.mulf %547, %553 : vector<2x64xf32>
    %c8_105 = arith.constant 8 : index
    %c0_106 = arith.constant 0 : index
    %555 = vector.load %arg22[%c8_105, %c0_106] : memref<16x64xf32, #tpu.memory_space<vmem>>, vector<2x64xf32>
    tpu.vector_store %arg22[%c8_105, %c0_106], %554 {strides = array<i32>} : memref<16x64xf32, #tpu.memory_space<vmem>>, vector<2x64xf32>,
    %556 = vector.extract_strided_slice %398 {offsets = [8, 0], sizes = [2, 256], strides = [1, 1]} : vector<16x256xf32> to vector<2x256xf32>
    %cst_107 = arith.constant dense<0.000000e+00> : vector<2x256xf32>
    %557 = tpu.matmul %534, %404, %cst_107 {dimension_numbers = #tpu.dot_dimension_numbers<[1], [0], [0], [1], [0, 0, 1, 1], [], []>} : vector<2x64xf32>, vector<64x256xf32>, vector<2x256xf32> -> vector<2x256xf32>
    %558 = arith.addf %556, %557 : vector<2x256xf32>
    %559 = vector.extract_strided_slice %558 {offsets = [0, 0], sizes = [2, 192], strides = [1, 1]} : vector<2x256xf32> to vector<2x192xf32>
    %560 = arith.negf %559 : vector<2x192xf32>
    %561 = math.exp %560 : vector<2x192xf32>
    %cst_108 = arith.constant 1.000000e+00 : f32
    %562 = vector.broadcast %cst_108 : f32 to vector<2x192xf32>
    %563 = arith.addf %562, %561 : vector<2x192xf32>
    %564 = arith.divf %562, %563 : vector<2x192xf32>
    %565 = vector.extract_strided_slice %564 {offsets = [0, 0], sizes = [2, 64], strides = [1, 1]} : vector<2x192xf32> to vector<2x64xf32>
    %566 = vector.extract_strided_slice %564 {offsets = [0, 64], sizes = [2, 64], strides = [1, 1]} : vector<2x192xf32> to vector<2x64xf32>
    %567 = vector.extract_strided_slice %564 {offsets = [0, 128], sizes = [2, 64], strides = [1, 1]} : vector<2x192xf32> to vector<2x64xf32>
    %568 = vector.extract_strided_slice %558 {offsets = [0, 192], sizes = [2, 64], strides = [1, 1]} : vector<2x256xf32> to vector<2x64xf32>
    %569 = math.tanh %568 : vector<2x64xf32>
    %570 = arith.mulf %566, %532 : vector<2x64xf32>
    %571 = arith.mulf %565, %569 : vector<2x64xf32>
    %572 = arith.addf %570, %571 : vector<2x64xf32>
    %573 = math.tanh %572 : vector<2x64xf32>
    %574 = arith.mulf %567, %573 : vector<2x64xf32>
    %c8_109 = arith.constant 8 : index
    %c0_110 = arith.constant 0 : index
    %575 = vector.load %arg21[%c8_109, %c0_110] : memref<16x64xf32, #tpu.memory_space<vmem>>, vector<2x64xf32>
    tpu.vector_store %arg21[%c8_109, %c0_110], %574 {strides = array<i32>} : memref<16x64xf32, #tpu.memory_space<vmem>>, vector<2x64xf32>,
    %576 = vector.extract_strided_slice %403 {offsets = [6, 0], sizes = [2, 256], strides = [1, 1]} : vector<16x256xf32> to vector<2x256xf32>
    %cst_111 = arith.constant dense<0.000000e+00> : vector<2x256xf32>
    %577 = tpu.matmul %554, %405, %cst_111 {dimension_numbers = #tpu.dot_dimension_numbers<[1], [0], [0], [1], [0, 0, 1, 1], [], []>} : vector<2x64xf32>, vector<64x256xf32>, vector<2x256xf32> -> vector<2x256xf32>
    %578 = arith.addf %576, %577 : vector<2x256xf32>
    %579 = vector.extract_strided_slice %578 {offsets = [0, 0], sizes = [2, 192], strides = [1, 1]} : vector<2x256xf32> to vector<2x192xf32>
    %580 = arith.negf %579 : vector<2x192xf32>
    %581 = math.exp %580 : vector<2x192xf32>
    %cst_112 = arith.constant 1.000000e+00 : f32
    %582 = vector.broadcast %cst_112 : f32 to vector<2x192xf32>
    %583 = arith.addf %582, %581 : vector<2x192xf32>
    %584 = arith.divf %582, %583 : vector<2x192xf32>
    %585 = vector.extract_strided_slice %584 {offsets = [0, 0], sizes = [2, 64], strides = [1, 1]} : vector<2x192xf32> to vector<2x64xf32>
    %586 = vector.extract_strided_slice %584 {offsets = [0, 64], sizes = [2, 64], strides = [1, 1]} : vector<2x192xf32> to vector<2x64xf32>
    %587 = vector.extract_strided_slice %584 {offsets = [0, 128], sizes = [2, 64], strides = [1, 1]} : vector<2x192xf32> to vector<2x64xf32>
    %588 = vector.extract_strided_slice %578 {offsets = [0, 192], sizes = [2, 64], strides = [1, 1]} : vector<2x256xf32> to vector<2x64xf32>
    %589 = math.tanh %588 : vector<2x64xf32>
    %590 = arith.mulf %586, %552 : vector<2x64xf32>
    %591 = arith.mulf %585, %589 : vector<2x64xf32>
    %592 = arith.addf %590, %591 : vector<2x64xf32>
    %593 = math.tanh %592 : vector<2x64xf32>
    %594 = arith.mulf %587, %593 : vector<2x64xf32>
    %c6_113 = arith.constant 6 : index
    %c0_114 = arith.constant 0 : index
    %595 = vector.load %arg22[%c6_113, %c0_114] : memref<16x64xf32, #tpu.memory_space<vmem>>, vector<2x64xf32>
    tpu.vector_store %arg22[%c6_113, %c0_114], %594 {strides = array<i32>} : memref<16x64xf32, #tpu.memory_space<vmem>>, vector<2x64xf32>,
    %596 = vector.extract_strided_slice %398 {offsets = [10, 0], sizes = [2, 256], strides = [1, 1]} : vector<16x256xf32> to vector<2x256xf32>
    %cst_115 = arith.constant dense<0.000000e+00> : vector<2x256xf32>
    %597 = tpu.matmul %574, %404, %cst_115 {dimension_numbers = #tpu.dot_dimension_numbers<[1], [0], [0], [1], [0, 0, 1, 1], [], []>} : vector<2x64xf32>, vector<64x256xf32>, vector<2x256xf32> -> vector<2x256xf32>
    %598 = arith.addf %596, %597 : vector<2x256xf32>
    %599 = vector.extract_strided_slice %598 {offsets = [0, 0], sizes = [2, 192], strides = [1, 1]} : vector<2x256xf32> to vector<2x192xf32>
    %600 = arith.negf %599 : vector<2x192xf32>
    %601 = math.exp %600 : vector<2x192xf32>
    %cst_116 = arith.constant 1.000000e+00 : f32
    %602 = vector.broadcast %cst_116 : f32 to vector<2x192xf32>
    %603 = arith.addf %602, %601 : vector<2x192xf32>
    %604 = arith.divf %602, %603 : vector<2x192xf32>
    %605 = vector.extract_strided_slice %604 {offsets = [0, 0], sizes = [2, 64], strides = [1, 1]} : vector<2x192xf32> to vector<2x64xf32>
    %606 = vector.extract_strided_slice %604 {offsets = [0, 64], sizes = [2, 64], strides = [1, 1]} : vector<2x192xf32> to vector<2x64xf32>
    %607 = vector.extract_strided_slice %604 {offsets = [0, 128], sizes = [2, 64], strides = [1, 1]} : vector<2x192xf32> to vector<2x64xf32>
    %608 = vector.extract_strided_slice %598 {offsets = [0, 192], sizes = [2, 64], strides = [1, 1]} : vector<2x256xf32> to vector<2x64xf32>
    %609 = math.tanh %608 : vector<2x64xf32>
    %610 = arith.mulf %606, %572 : vector<2x64xf32>
    %611 = arith.mulf %605, %609 : vector<2x64xf32>
    %612 = arith.addf %610, %611 : vector<2x64xf32>
    %613 = math.tanh %612 : vector<2x64xf32>
    %614 = arith.mulf %607, %613 : vector<2x64xf32>
    %c10_117 = arith.constant 10 : index
    %c0_118 = arith.constant 0 : index
    %615 = vector.load %arg21[%c10_117, %c0_118] : memref<16x64xf32, #tpu.memory_space<vmem>>, vector<2x64xf32>
    tpu.vector_store %arg21[%c10_117, %c0_118], %614 {strides = array<i32>} : memref<16x64xf32, #tpu.memory_space<vmem>>, vector<2x64xf32>,
    %616 = vector.extract_strided_slice %403 {offsets = [4, 0], sizes = [2, 256], strides = [1, 1]} : vector<16x256xf32> to vector<2x256xf32>
    %cst_119 = arith.constant dense<0.000000e+00> : vector<2x256xf32>
    %617 = tpu.matmul %594, %405, %cst_119 {dimension_numbers = #tpu.dot_dimension_numbers<[1], [0], [0], [1], [0, 0, 1, 1], [], []>} : vector<2x64xf32>, vector<64x256xf32>, vector<2x256xf32> -> vector<2x256xf32>
    %618 = arith.addf %616, %617 : vector<2x256xf32>
    %619 = vector.extract_strided_slice %618 {offsets = [0, 0], sizes = [2, 192], strides = [1, 1]} : vector<2x256xf32> to vector<2x192xf32>
    %620 = arith.negf %619 : vector<2x192xf32>
    %621 = math.exp %620 : vector<2x192xf32>
    %cst_120 = arith.constant 1.000000e+00 : f32
    %622 = vector.broadcast %cst_120 : f32 to vector<2x192xf32>
    %623 = arith.addf %622, %621 : vector<2x192xf32>
    %624 = arith.divf %622, %623 : vector<2x192xf32>
    %625 = vector.extract_strided_slice %624 {offsets = [0, 0], sizes = [2, 64], strides = [1, 1]} : vector<2x192xf32> to vector<2x64xf32>
    %626 = vector.extract_strided_slice %624 {offsets = [0, 64], sizes = [2, 64], strides = [1, 1]} : vector<2x192xf32> to vector<2x64xf32>
    %627 = vector.extract_strided_slice %624 {offsets = [0, 128], sizes = [2, 64], strides = [1, 1]} : vector<2x192xf32> to vector<2x64xf32>
    %628 = vector.extract_strided_slice %618 {offsets = [0, 192], sizes = [2, 64], strides = [1, 1]} : vector<2x256xf32> to vector<2x64xf32>
    %629 = math.tanh %628 : vector<2x64xf32>
    %630 = arith.mulf %626, %592 : vector<2x64xf32>
    %631 = arith.mulf %625, %629 : vector<2x64xf32>
    %632 = arith.addf %630, %631 : vector<2x64xf32>
    %633 = math.tanh %632 : vector<2x64xf32>
    %634 = arith.mulf %627, %633 : vector<2x64xf32>
    %c4_121 = arith.constant 4 : index
    %c0_122 = arith.constant 0 : index
    %635 = vector.load %arg22[%c4_121, %c0_122] : memref<16x64xf32, #tpu.memory_space<vmem>>, vector<2x64xf32>
    tpu.vector_store %arg22[%c4_121, %c0_122], %634 {strides = array<i32>} : memref<16x64xf32, #tpu.memory_space<vmem>>, vector<2x64xf32>,
    %636 = vector.extract_strided_slice %398 {offsets = [12, 0], sizes = [2, 256], strides = [1, 1]} : vector<16x256xf32> to vector<2x256xf32>
    %cst_123 = arith.constant dense<0.000000e+00> : vector<2x256xf32>
    %637 = tpu.matmul %614, %404, %cst_123 {dimension_numbers = #tpu.dot_dimension_numbers<[1], [0], [0], [1], [0, 0, 1, 1], [], []>} : vector<2x64xf32>, vector<64x256xf32>, vector<2x256xf32> -> vector<2x256xf32>
    %638 = arith.addf %636, %637 : vector<2x256xf32>
    %639 = vector.extract_strided_slice %638 {offsets = [0, 0], sizes = [2, 192], strides = [1, 1]} : vector<2x256xf32> to vector<2x192xf32>
    %640 = arith.negf %639 : vector<2x192xf32>
    %641 = math.exp %640 : vector<2x192xf32>
    %cst_124 = arith.constant 1.000000e+00 : f32
    %642 = vector.broadcast %cst_124 : f32 to vector<2x192xf32>
    %643 = arith.addf %642, %641 : vector<2x192xf32>
    %644 = arith.divf %642, %643 : vector<2x192xf32>
    %645 = vector.extract_strided_slice %644 {offsets = [0, 0], sizes = [2, 64], strides = [1, 1]} : vector<2x192xf32> to vector<2x64xf32>
    %646 = vector.extract_strided_slice %644 {offsets = [0, 64], sizes = [2, 64], strides = [1, 1]} : vector<2x192xf32> to vector<2x64xf32>
    %647 = vector.extract_strided_slice %644 {offsets = [0, 128], sizes = [2, 64], strides = [1, 1]} : vector<2x192xf32> to vector<2x64xf32>
    %648 = vector.extract_strided_slice %638 {offsets = [0, 192], sizes = [2, 64], strides = [1, 1]} : vector<2x256xf32> to vector<2x64xf32>
    %649 = math.tanh %648 : vector<2x64xf32>
    %650 = arith.mulf %646, %612 : vector<2x64xf32>
    %651 = arith.mulf %645, %649 : vector<2x64xf32>
    %652 = arith.addf %650, %651 : vector<2x64xf32>
    %653 = math.tanh %652 : vector<2x64xf32>
    %654 = arith.mulf %647, %653 : vector<2x64xf32>
    %c12_125 = arith.constant 12 : index
    %c0_126 = arith.constant 0 : index
    %655 = vector.load %arg21[%c12_125, %c0_126] : memref<16x64xf32, #tpu.memory_space<vmem>>, vector<2x64xf32>
    tpu.vector_store %arg21[%c12_125, %c0_126], %654 {strides = array<i32>} : memref<16x64xf32, #tpu.memory_space<vmem>>, vector<2x64xf32>,
    %656 = vector.extract_strided_slice %403 {offsets = [2, 0], sizes = [2, 256], strides = [1, 1]} : vector<16x256xf32> to vector<2x256xf32>
    %cst_127 = arith.constant dense<0.000000e+00> : vector<2x256xf32>
    %657 = tpu.matmul %634, %405, %cst_127 {dimension_numbers = #tpu.dot_dimension_numbers<[1], [0], [0], [1], [0, 0, 1, 1], [], []>} : vector<2x64xf32>, vector<64x256xf32>, vector<2x256xf32> -> vector<2x256xf32>
    %658 = arith.addf %656, %657 : vector<2x256xf32>
    %659 = vector.extract_strided_slice %658 {offsets = [0, 0], sizes = [2, 192], strides = [1, 1]} : vector<2x256xf32> to vector<2x192xf32>
    %660 = arith.negf %659 : vector<2x192xf32>
    %661 = math.exp %660 : vector<2x192xf32>
    %cst_128 = arith.constant 1.000000e+00 : f32
    %662 = vector.broadcast %cst_128 : f32 to vector<2x192xf32>
    %663 = arith.addf %662, %661 : vector<2x192xf32>
    %664 = arith.divf %662, %663 : vector<2x192xf32>
    %665 = vector.extract_strided_slice %664 {offsets = [0, 0], sizes = [2, 64], strides = [1, 1]} : vector<2x192xf32> to vector<2x64xf32>
    %666 = vector.extract_strided_slice %664 {offsets = [0, 64], sizes = [2, 64], strides = [1, 1]} : vector<2x192xf32> to vector<2x64xf32>
    %667 = vector.extract_strided_slice %664 {offsets = [0, 128], sizes = [2, 64], strides = [1, 1]} : vector<2x192xf32> to vector<2x64xf32>
    %668 = vector.extract_strided_slice %658 {offsets = [0, 192], sizes = [2, 64], strides = [1, 1]} : vector<2x256xf32> to vector<2x64xf32>
    %669 = math.tanh %668 : vector<2x64xf32>
    %670 = arith.mulf %666, %632 : vector<2x64xf32>
    %671 = arith.mulf %665, %669 : vector<2x64xf32>
    %672 = arith.addf %670, %671 : vector<2x64xf32>
    %673 = math.tanh %672 : vector<2x64xf32>
    %674 = arith.mulf %667, %673 : vector<2x64xf32>
    %c2_129 = arith.constant 2 : index
    %c0_130 = arith.constant 0 : index
    %675 = vector.load %arg22[%c2_129, %c0_130] : memref<16x64xf32, #tpu.memory_space<vmem>>, vector<2x64xf32>
    tpu.vector_store %arg22[%c2_129, %c0_130], %674 {strides = array<i32>} : memref<16x64xf32, #tpu.memory_space<vmem>>, vector<2x64xf32>,
    %676 = vector.extract_strided_slice %398 {offsets = [14, 0], sizes = [2, 256], strides = [1, 1]} : vector<16x256xf32> to vector<2x256xf32>
    %cst_131 = arith.constant dense<0.000000e+00> : vector<2x256xf32>
    %677 = tpu.matmul %654, %404, %cst_131 {dimension_numbers = #tpu.dot_dimension_numbers<[1], [0], [0], [1], [0, 0, 1, 1], [], []>} : vector<2x64xf32>, vector<64x256xf32>, vector<2x256xf32> -> vector<2x256xf32>
    %678 = arith.addf %676, %677 : vector<2x256xf32>
    %679 = vector.extract_strided_slice %678 {offsets = [0, 0], sizes = [2, 192], strides = [1, 1]} : vector<2x256xf32> to vector<2x192xf32>
    %680 = arith.negf %679 : vector<2x192xf32>
    %681 = math.exp %680 : vector<2x192xf32>
    %cst_132 = arith.constant 1.000000e+00 : f32
    %682 = vector.broadcast %cst_132 : f32 to vector<2x192xf32>
    %683 = arith.addf %682, %681 : vector<2x192xf32>
    %684 = arith.divf %682, %683 : vector<2x192xf32>
    %685 = vector.extract_strided_slice %684 {offsets = [0, 0], sizes = [2, 64], strides = [1, 1]} : vector<2x192xf32> to vector<2x64xf32>
    %686 = vector.extract_strided_slice %684 {offsets = [0, 64], sizes = [2, 64], strides = [1, 1]} : vector<2x192xf32> to vector<2x64xf32>
    %687 = vector.extract_strided_slice %684 {offsets = [0, 128], sizes = [2, 64], strides = [1, 1]} : vector<2x192xf32> to vector<2x64xf32>
    %688 = vector.extract_strided_slice %678 {offsets = [0, 192], sizes = [2, 64], strides = [1, 1]} : vector<2x256xf32> to vector<2x64xf32>
    %689 = math.tanh %688 : vector<2x64xf32>
    %690 = arith.mulf %686, %652 : vector<2x64xf32>
    %691 = arith.mulf %685, %689 : vector<2x64xf32>
    %692 = arith.addf %690, %691 : vector<2x64xf32>
    %693 = math.tanh %692 : vector<2x64xf32>
    %694 = arith.mulf %687, %693 : vector<2x64xf32>
    %c14_133 = arith.constant 14 : index
    %c0_134 = arith.constant 0 : index
    %695 = vector.load %arg21[%c14_133, %c0_134] : memref<16x64xf32, #tpu.memory_space<vmem>>, vector<2x64xf32>
    tpu.vector_store %arg21[%c14_133, %c0_134], %694 {strides = array<i32>} : memref<16x64xf32, #tpu.memory_space<vmem>>, vector<2x64xf32>,
    %696 = vector.extract_strided_slice %403 {offsets = [0, 0], sizes = [2, 256], strides = [1, 1]} : vector<16x256xf32> to vector<2x256xf32>
    %cst_135 = arith.constant dense<0.000000e+00> : vector<2x256xf32>
    %697 = tpu.matmul %674, %405, %cst_135 {dimension_numbers = #tpu.dot_dimension_numbers<[1], [0], [0], [1], [0, 0, 1, 1], [], []>} : vector<2x64xf32>, vector<64x256xf32>, vector<2x256xf32> -> vector<2x256xf32>
    %698 = arith.addf %696, %697 : vector<2x256xf32>
    %699 = vector.extract_strided_slice %698 {offsets = [0, 0], sizes = [2, 192], strides = [1, 1]} : vector<2x256xf32> to vector<2x192xf32>
    %700 = arith.negf %699 : vector<2x192xf32>
    %701 = math.exp %700 : vector<2x192xf32>
    %cst_136 = arith.constant 1.000000e+00 : f32
    %702 = vector.broadcast %cst_136 : f32 to vector<2x192xf32>
    %703 = arith.addf %702, %701 : vector<2x192xf32>
    %704 = arith.divf %702, %703 : vector<2x192xf32>
    %705 = vector.extract_strided_slice %704 {offsets = [0, 0], sizes = [2, 64], strides = [1, 1]} : vector<2x192xf32> to vector<2x64xf32>
    %706 = vector.extract_strided_slice %704 {offsets = [0, 64], sizes = [2, 64], strides = [1, 1]} : vector<2x192xf32> to vector<2x64xf32>
    %707 = vector.extract_strided_slice %704 {offsets = [0, 128], sizes = [2, 64], strides = [1, 1]} : vector<2x192xf32> to vector<2x64xf32>
    %708 = vector.extract_strided_slice %698 {offsets = [0, 192], sizes = [2, 64], strides = [1, 1]} : vector<2x256xf32> to vector<2x64xf32>
    %709 = math.tanh %708 : vector<2x64xf32>
    %710 = arith.mulf %706, %672 : vector<2x64xf32>
    %711 = arith.mulf %705, %709 : vector<2x64xf32>
    %712 = arith.addf %710, %711 : vector<2x64xf32>
    %713 = math.tanh %712 : vector<2x64xf32>
    %714 = arith.mulf %707, %713 : vector<2x64xf32>
    %c0_137 = arith.constant 0 : index
    %c0_138 = arith.constant 0 : index
    %715 = vector.load %arg22[%c0_137, %c0_138] : memref<16x64xf32, #tpu.memory_space<vmem>>, vector<2x64xf32>
    tpu.vector_store %arg22[%c0_137, %c0_138], %714 {strides = array<i32>} : memref<16x64xf32, #tpu.memory_space<vmem>>, vector<2x64xf32>,
    %c0_139 = arith.constant 0 : index
    %c0_140 = arith.constant 0 : index
    %716 = vector.load %arg21[%c0_139, %c0_140] : memref<16x64xf32, #tpu.memory_space<vmem>>, vector<16x64xf32>
    %c0_141 = arith.constant 0 : index
    %c0_142 = arith.constant 0 : index
    %717 = vector.load %arg22[%c0_141, %c0_142] : memref<16x64xf32, #tpu.memory_space<vmem>>, vector<16x64xf32>
    %c0_143 = arith.constant 0 : index
    %c0_144 = arith.constant 0 : index
    %718 = vector.load %arg12[%c0_143, %c0_144] : memref<128x256xf32, #tpu.memory_space<vmem>>, vector<128x256xf32>
    %719 = vector.extract_strided_slice %718 {offsets = [0, 0], sizes = [64, 256], strides = [1, 1]} : vector<128x256xf32> to vector<64x256xf32>
    %cst_145 = arith.constant dense<0.000000e+00> : vector<16x256xf32>
    %720 = tpu.matmul %716, %719, %cst_145 {dimension_numbers = #tpu.dot_dimension_numbers<[1], [0], [0], [1], [0, 0, 1, 1], [], []>} : vector<16x64xf32>, vector<64x256xf32>, vector<16x256xf32> -> vector<16x256xf32>
    %721 = vector.extract_strided_slice %718 {offsets = [64, 0], sizes = [64, 256], strides = [1, 1]} : vector<128x256xf32> to vector<64x256xf32>
    %cst_146 = arith.constant dense<0.000000e+00> : vector<16x256xf32>
    %722 = tpu.matmul %717, %721, %cst_146 {dimension_numbers = #tpu.dot_dimension_numbers<[1], [0], [0], [1], [0, 0, 1, 1], [], []>} : vector<16x64xf32>, vector<64x256xf32>, vector<16x256xf32> -> vector<16x256xf32>
    %723 = arith.addf %720, %722 : vector<16x256xf32>
    %c0_147 = arith.constant 0 : index
    %c0_148 = arith.constant 0 : index
    %724 = vector.load %arg14[%c0_147, %c0_148] : memref<1x256xf32, #tpu.memory_space<vmem>>, vector<1x256xf32>
    %725 = vector.broadcast %724 : vector<1x256xf32> to vector<16x256xf32>
    %726 = arith.addf %723, %725 : vector<16x256xf32>
    %c0_149 = arith.constant 0 : index
    %c0_150 = arith.constant 0 : index
    %727 = vector.load %arg13[%c0_149, %c0_150] : memref<64x256xf32, #tpu.memory_space<vmem>>, vector<64x256xf32>
    %728 = vector.extract_strided_slice %726 {offsets = [0, 0], sizes = [2, 256], strides = [1, 1]} : vector<16x256xf32> to vector<2x256xf32>
    %729 = vector.extract_strided_slice %728 {offsets = [0, 0], sizes = [2, 192], strides = [1, 1]} : vector<2x256xf32> to vector<2x192xf32>
    %730 = arith.negf %729 : vector<2x192xf32>
    %731 = math.exp %730 : vector<2x192xf32>
    %cst_151 = arith.constant 1.000000e+00 : f32
    %732 = vector.broadcast %cst_151 : f32 to vector<2x192xf32>
    %733 = arith.addf %732, %731 : vector<2x192xf32>
    %734 = arith.divf %732, %733 : vector<2x192xf32>
    %735 = vector.extract_strided_slice %734 {offsets = [0, 0], sizes = [2, 64], strides = [1, 1]} : vector<2x192xf32> to vector<2x64xf32>
    %736 = vector.extract_strided_slice %734 {offsets = [0, 128], sizes = [2, 64], strides = [1, 1]} : vector<2x192xf32> to vector<2x64xf32>
    %737 = vector.extract_strided_slice %728 {offsets = [0, 192], sizes = [2, 64], strides = [1, 1]} : vector<2x256xf32> to vector<2x64xf32>
    %738 = math.tanh %737 : vector<2x64xf32>
    %739 = arith.mulf %735, %738 : vector<2x64xf32>
    %740 = math.tanh %739 : vector<2x64xf32>
    %741 = arith.mulf %736, %740 : vector<2x64xf32>
    %742 = vector.extract_strided_slice %726 {offsets = [2, 0], sizes = [2, 256], strides = [1, 1]} : vector<16x256xf32> to vector<2x256xf32>
    %cst_152 = arith.constant dense<0.000000e+00> : vector<2x256xf32>
    %743 = tpu.matmul %741, %727, %cst_152 {dimension_numbers = #tpu.dot_dimension_numbers<[1], [0], [0], [1], [0, 0, 1, 1], [], []>} : vector<2x64xf32>, vector<64x256xf32>, vector<2x256xf32> -> vector<2x256xf32>
    %744 = arith.addf %742, %743 : vector<2x256xf32>
    %745 = vector.extract_strided_slice %744 {offsets = [0, 0], sizes = [2, 192], strides = [1, 1]} : vector<2x256xf32> to vector<2x192xf32>
    %746 = arith.negf %745 : vector<2x192xf32>
    %747 = math.exp %746 : vector<2x192xf32>
    %cst_153 = arith.constant 1.000000e+00 : f32
    %748 = vector.broadcast %cst_153 : f32 to vector<2x192xf32>
    %749 = arith.addf %748, %747 : vector<2x192xf32>
    %750 = arith.divf %748, %749 : vector<2x192xf32>
    %751 = vector.extract_strided_slice %750 {offsets = [0, 0], sizes = [2, 64], strides = [1, 1]} : vector<2x192xf32> to vector<2x64xf32>
    %752 = vector.extract_strided_slice %750 {offsets = [0, 64], sizes = [2, 64], strides = [1, 1]} : vector<2x192xf32> to vector<2x64xf32>
    %753 = vector.extract_strided_slice %750 {offsets = [0, 128], sizes = [2, 64], strides = [1, 1]} : vector<2x192xf32> to vector<2x64xf32>
    %754 = vector.extract_strided_slice %744 {offsets = [0, 192], sizes = [2, 64], strides = [1, 1]} : vector<2x256xf32> to vector<2x64xf32>
    %755 = math.tanh %754 : vector<2x64xf32>
    %756 = arith.mulf %752, %739 : vector<2x64xf32>
    %757 = arith.mulf %751, %755 : vector<2x64xf32>
    %758 = arith.addf %756, %757 : vector<2x64xf32>
    %759 = math.tanh %758 : vector<2x64xf32>
    %760 = arith.mulf %753, %759 : vector<2x64xf32>
    %761 = vector.extract_strided_slice %726 {offsets = [4, 0], sizes = [2, 256], strides = [1, 1]} : vector<16x256xf32> to vector<2x256xf32>
    %cst_154 = arith.constant dense<0.000000e+00> : vector<2x256xf32>
    %762 = tpu.matmul %760, %727, %cst_154 {dimension_numbers = #tpu.dot_dimension_numbers<[1], [0], [0], [1], [0, 0, 1, 1], [], []>} : vector<2x64xf32>, vector<64x256xf32>, vector<2x256xf32> -> vector<2x256xf32>
    %763 = arith.addf %761, %762 : vector<2x256xf32>
    %764 = vector.extract_strided_slice %763 {offsets = [0, 0], sizes = [2, 192], strides = [1, 1]} : vector<2x256xf32> to vector<2x192xf32>
    %765 = arith.negf %764 : vector<2x192xf32>
    %766 = math.exp %765 : vector<2x192xf32>
    %cst_155 = arith.constant 1.000000e+00 : f32
    %767 = vector.broadcast %cst_155 : f32 to vector<2x192xf32>
    %768 = arith.addf %767, %766 : vector<2x192xf32>
    %769 = arith.divf %767, %768 : vector<2x192xf32>
    %770 = vector.extract_strided_slice %769 {offsets = [0, 0], sizes = [2, 64], strides = [1, 1]} : vector<2x192xf32> to vector<2x64xf32>
    %771 = vector.extract_strided_slice %769 {offsets = [0, 64], sizes = [2, 64], strides = [1, 1]} : vector<2x192xf32> to vector<2x64xf32>
    %772 = vector.extract_strided_slice %769 {offsets = [0, 128], sizes = [2, 64], strides = [1, 1]} : vector<2x192xf32> to vector<2x64xf32>
    %773 = vector.extract_strided_slice %763 {offsets = [0, 192], sizes = [2, 64], strides = [1, 1]} : vector<2x256xf32> to vector<2x64xf32>
    %774 = math.tanh %773 : vector<2x64xf32>
    %775 = arith.mulf %771, %758 : vector<2x64xf32>
    %776 = arith.mulf %770, %774 : vector<2x64xf32>
    %777 = arith.addf %775, %776 : vector<2x64xf32>
    %778 = math.tanh %777 : vector<2x64xf32>
    %779 = arith.mulf %772, %778 : vector<2x64xf32>
    %780 = vector.extract_strided_slice %726 {offsets = [6, 0], sizes = [2, 256], strides = [1, 1]} : vector<16x256xf32> to vector<2x256xf32>
    %cst_156 = arith.constant dense<0.000000e+00> : vector<2x256xf32>
    %781 = tpu.matmul %779, %727, %cst_156 {dimension_numbers = #tpu.dot_dimension_numbers<[1], [0], [0], [1], [0, 0, 1, 1], [], []>} : vector<2x64xf32>, vector<64x256xf32>, vector<2x256xf32> -> vector<2x256xf32>
    %782 = arith.addf %780, %781 : vector<2x256xf32>
    %783 = vector.extract_strided_slice %782 {offsets = [0, 0], sizes = [2, 192], strides = [1, 1]} : vector<2x256xf32> to vector<2x192xf32>
    %784 = arith.negf %783 : vector<2x192xf32>
    %785 = math.exp %784 : vector<2x192xf32>
    %cst_157 = arith.constant 1.000000e+00 : f32
    %786 = vector.broadcast %cst_157 : f32 to vector<2x192xf32>
    %787 = arith.addf %786, %785 : vector<2x192xf32>
    %788 = arith.divf %786, %787 : vector<2x192xf32>
    %789 = vector.extract_strided_slice %788 {offsets = [0, 0], sizes = [2, 64], strides = [1, 1]} : vector<2x192xf32> to vector<2x64xf32>
    %790 = vector.extract_strided_slice %788 {offsets = [0, 64], sizes = [2, 64], strides = [1, 1]} : vector<2x192xf32> to vector<2x64xf32>
    %791 = vector.extract_strided_slice %788 {offsets = [0, 128], sizes = [2, 64], strides = [1, 1]} : vector<2x192xf32> to vector<2x64xf32>
    %792 = vector.extract_strided_slice %782 {offsets = [0, 192], sizes = [2, 64], strides = [1, 1]} : vector<2x256xf32> to vector<2x64xf32>
    %793 = math.tanh %792 : vector<2x64xf32>
    %794 = arith.mulf %790, %777 : vector<2x64xf32>
    %795 = arith.mulf %789, %793 : vector<2x64xf32>
    %796 = arith.addf %794, %795 : vector<2x64xf32>
    %797 = math.tanh %796 : vector<2x64xf32>
    %798 = arith.mulf %791, %797 : vector<2x64xf32>
    %799 = vector.extract_strided_slice %726 {offsets = [8, 0], sizes = [2, 256], strides = [1, 1]} : vector<16x256xf32> to vector<2x256xf32>
    %cst_158 = arith.constant dense<0.000000e+00> : vector<2x256xf32>
    %800 = tpu.matmul %798, %727, %cst_158 {dimension_numbers = #tpu.dot_dimension_numbers<[1], [0], [0], [1], [0, 0, 1, 1], [], []>} : vector<2x64xf32>, vector<64x256xf32>, vector<2x256xf32> -> vector<2x256xf32>
    %801 = arith.addf %799, %800 : vector<2x256xf32>
    %802 = vector.extract_strided_slice %801 {offsets = [0, 0], sizes = [2, 192], strides = [1, 1]} : vector<2x256xf32> to vector<2x192xf32>
    %803 = arith.negf %802 : vector<2x192xf32>
    %804 = math.exp %803 : vector<2x192xf32>
    %cst_159 = arith.constant 1.000000e+00 : f32
    %805 = vector.broadcast %cst_159 : f32 to vector<2x192xf32>
    %806 = arith.addf %805, %804 : vector<2x192xf32>
    %807 = arith.divf %805, %806 : vector<2x192xf32>
    %808 = vector.extract_strided_slice %807 {offsets = [0, 0], sizes = [2, 64], strides = [1, 1]} : vector<2x192xf32> to vector<2x64xf32>
    %809 = vector.extract_strided_slice %807 {offsets = [0, 64], sizes = [2, 64], strides = [1, 1]} : vector<2x192xf32> to vector<2x64xf32>
    %810 = vector.extract_strided_slice %807 {offsets = [0, 128], sizes = [2, 64], strides = [1, 1]} : vector<2x192xf32> to vector<2x64xf32>
    %811 = vector.extract_strided_slice %801 {offsets = [0, 192], sizes = [2, 64], strides = [1, 1]} : vector<2x256xf32> to vector<2x64xf32>
    %812 = math.tanh %811 : vector<2x64xf32>
    %813 = arith.mulf %809, %796 : vector<2x64xf32>
    %814 = arith.mulf %808, %812 : vector<2x64xf32>
    %815 = arith.addf %813, %814 : vector<2x64xf32>
    %816 = math.tanh %815 : vector<2x64xf32>
    %817 = arith.mulf %810, %816 : vector<2x64xf32>
    %818 = vector.extract_strided_slice %726 {offsets = [10, 0], sizes = [2, 256], strides = [1, 1]} : vector<16x256xf32> to vector<2x256xf32>
    %cst_160 = arith.constant dense<0.000000e+00> : vector<2x256xf32>
    %819 = tpu.matmul %817, %727, %cst_160 {dimension_numbers = #tpu.dot_dimension_numbers<[1], [0], [0], [1], [0, 0, 1, 1], [], []>} : vector<2x64xf32>, vector<64x256xf32>, vector<2x256xf32> -> vector<2x256xf32>
    %820 = arith.addf %818, %819 : vector<2x256xf32>
    %821 = vector.extract_strided_slice %820 {offsets = [0, 0], sizes = [2, 192], strides = [1, 1]} : vector<2x256xf32> to vector<2x192xf32>
    %822 = arith.negf %821 : vector<2x192xf32>
    %823 = math.exp %822 : vector<2x192xf32>
    %cst_161 = arith.constant 1.000000e+00 : f32
    %824 = vector.broadcast %cst_161 : f32 to vector<2x192xf32>
    %825 = arith.addf %824, %823 : vector<2x192xf32>
    %826 = arith.divf %824, %825 : vector<2x192xf32>
    %827 = vector.extract_strided_slice %826 {offsets = [0, 0], sizes = [2, 64], strides = [1, 1]} : vector<2x192xf32> to vector<2x64xf32>
    %828 = vector.extract_strided_slice %826 {offsets = [0, 64], sizes = [2, 64], strides = [1, 1]} : vector<2x192xf32> to vector<2x64xf32>
    %829 = vector.extract_strided_slice %826 {offsets = [0, 128], sizes = [2, 64], strides = [1, 1]} : vector<2x192xf32> to vector<2x64xf32>
    %830 = vector.extract_strided_slice %820 {offsets = [0, 192], sizes = [2, 64], strides = [1, 1]} : vector<2x256xf32> to vector<2x64xf32>
    %831 = math.tanh %830 : vector<2x64xf32>
    %832 = arith.mulf %828, %815 : vector<2x64xf32>
    %833 = arith.mulf %827, %831 : vector<2x64xf32>
    %834 = arith.addf %832, %833 : vector<2x64xf32>
    %835 = math.tanh %834 : vector<2x64xf32>
    %836 = arith.mulf %829, %835 : vector<2x64xf32>
    %837 = vector.extract_strided_slice %726 {offsets = [12, 0], sizes = [2, 256], strides = [1, 1]} : vector<16x256xf32> to vector<2x256xf32>
    %cst_162 = arith.constant dense<0.000000e+00> : vector<2x256xf32>
    %838 = tpu.matmul %836, %727, %cst_162 {dimension_numbers = #tpu.dot_dimension_numbers<[1], [0], [0], [1], [0, 0, 1, 1], [], []>} : vector<2x64xf32>, vector<64x256xf32>, vector<2x256xf32> -> vector<2x256xf32>
    %839 = arith.addf %837, %838 : vector<2x256xf32>
    %840 = vector.extract_strided_slice %839 {offsets = [0, 0], sizes = [2, 192], strides = [1, 1]} : vector<2x256xf32> to vector<2x192xf32>
    %841 = arith.negf %840 : vector<2x192xf32>
    %842 = math.exp %841 : vector<2x192xf32>
    %cst_163 = arith.constant 1.000000e+00 : f32
    %843 = vector.broadcast %cst_163 : f32 to vector<2x192xf32>
    %844 = arith.addf %843, %842 : vector<2x192xf32>
    %845 = arith.divf %843, %844 : vector<2x192xf32>
    %846 = vector.extract_strided_slice %845 {offsets = [0, 0], sizes = [2, 64], strides = [1, 1]} : vector<2x192xf32> to vector<2x64xf32>
    %847 = vector.extract_strided_slice %845 {offsets = [0, 64], sizes = [2, 64], strides = [1, 1]} : vector<2x192xf32> to vector<2x64xf32>
    %848 = vector.extract_strided_slice %845 {offsets = [0, 128], sizes = [2, 64], strides = [1, 1]} : vector<2x192xf32> to vector<2x64xf32>
    %849 = vector.extract_strided_slice %839 {offsets = [0, 192], sizes = [2, 64], strides = [1, 1]} : vector<2x256xf32> to vector<2x64xf32>
    %850 = math.tanh %849 : vector<2x64xf32>
    %851 = arith.mulf %847, %834 : vector<2x64xf32>
    %852 = arith.mulf %846, %850 : vector<2x64xf32>
    %853 = arith.addf %851, %852 : vector<2x64xf32>
    %854 = math.tanh %853 : vector<2x64xf32>
    %855 = arith.mulf %848, %854 : vector<2x64xf32>
    %856 = vector.extract_strided_slice %726 {offsets = [14, 0], sizes = [2, 256], strides = [1, 1]} : vector<16x256xf32> to vector<2x256xf32>
    %cst_164 = arith.constant dense<0.000000e+00> : vector<2x256xf32>
    %857 = tpu.matmul %855, %727, %cst_164 {dimension_numbers = #tpu.dot_dimension_numbers<[1], [0], [0], [1], [0, 0, 1, 1], [], []>} : vector<2x64xf32>, vector<64x256xf32>, vector<2x256xf32> -> vector<2x256xf32>
    %858 = arith.addf %856, %857 : vector<2x256xf32>
    %859 = vector.extract_strided_slice %858 {offsets = [0, 0], sizes = [2, 192], strides = [1, 1]} : vector<2x256xf32> to vector<2x192xf32>
    %860 = arith.negf %859 : vector<2x192xf32>
    %861 = math.exp %860 : vector<2x192xf32>
    %cst_165 = arith.constant 1.000000e+00 : f32
    %862 = vector.broadcast %cst_165 : f32 to vector<2x192xf32>
    %863 = arith.addf %862, %861 : vector<2x192xf32>
    %864 = arith.divf %862, %863 : vector<2x192xf32>
    %865 = vector.extract_strided_slice %864 {offsets = [0, 0], sizes = [2, 64], strides = [1, 1]} : vector<2x192xf32> to vector<2x64xf32>
    %866 = vector.extract_strided_slice %864 {offsets = [0, 64], sizes = [2, 64], strides = [1, 1]} : vector<2x192xf32> to vector<2x64xf32>
    %867 = vector.extract_strided_slice %864 {offsets = [0, 128], sizes = [2, 64], strides = [1, 1]} : vector<2x192xf32> to vector<2x64xf32>
    %868 = vector.extract_strided_slice %858 {offsets = [0, 192], sizes = [2, 64], strides = [1, 1]} : vector<2x256xf32> to vector<2x64xf32>
    %869 = math.tanh %868 : vector<2x64xf32>
    %870 = arith.mulf %866, %853 : vector<2x64xf32>
    %871 = arith.mulf %865, %869 : vector<2x64xf32>
    %872 = arith.addf %870, %871 : vector<2x64xf32>
    %873 = math.tanh %872 : vector<2x64xf32>
    %874 = arith.mulf %867, %873 : vector<2x64xf32>
    %c0_166 = arith.constant 0 : index
    %c0_167 = arith.constant 0 : index
    %875 = vector.load %arg15[%c0_166, %c0_167] : memref<128x256xf32, #tpu.memory_space<vmem>>, vector<128x256xf32>
    %876 = vector.extract_strided_slice %716 {offsets = [14, 0], sizes = [2, 64], strides = [1, 1]} : vector<16x64xf32> to vector<2x64xf32>
    %877 = vector.extract_strided_slice %875 {offsets = [0, 0], sizes = [64, 256], strides = [1, 1]} : vector<128x256xf32> to vector<64x256xf32>
    %cst_168 = arith.constant dense<0.000000e+00> : vector<2x256xf32>
    %878 = tpu.matmul %876, %877, %cst_168 {dimension_numbers = #tpu.dot_dimension_numbers<[1], [0], [0], [1], [0, 0, 1, 1], [], []>} : vector<2x64xf32>, vector<64x256xf32>, vector<2x256xf32> -> vector<2x256xf32>
    %879 = vector.extract_strided_slice %717 {offsets = [14, 0], sizes = [2, 64], strides = [1, 1]} : vector<16x64xf32> to vector<2x64xf32>
    %880 = vector.extract_strided_slice %875 {offsets = [64, 0], sizes = [64, 256], strides = [1, 1]} : vector<128x256xf32> to vector<64x256xf32>
    %cst_169 = arith.constant dense<0.000000e+00> : vector<2x256xf32>
    %881 = tpu.matmul %879, %880, %cst_169 {dimension_numbers = #tpu.dot_dimension_numbers<[1], [0], [0], [1], [0, 0, 1, 1], [], []>} : vector<2x64xf32>, vector<64x256xf32>, vector<2x256xf32> -> vector<2x256xf32>
    %882 = arith.addf %878, %881 : vector<2x256xf32>
    %c0_170 = arith.constant 0 : index
    %c0_171 = arith.constant 0 : index
    %883 = vector.load %arg16[%c0_170, %c0_171] : memref<1x256xf32, #tpu.memory_space<vmem>>, vector<1x256xf32>
    %884 = vector.broadcast %883 : vector<1x256xf32> to vector<2x256xf32>
    %885 = arith.addf %882, %884 : vector<2x256xf32>
    %886 = vector.extract_strided_slice %885 {offsets = [0, 0], sizes = [2, 192], strides = [1, 1]} : vector<2x256xf32> to vector<2x192xf32>
    %887 = arith.negf %886 : vector<2x192xf32>
    %888 = math.exp %887 : vector<2x192xf32>
    %cst_172 = arith.constant 1.000000e+00 : f32
    %889 = vector.broadcast %cst_172 : f32 to vector<2x192xf32>
    %890 = arith.addf %889, %888 : vector<2x192xf32>
    %891 = arith.divf %889, %890 : vector<2x192xf32>
    %892 = vector.extract_strided_slice %891 {offsets = [0, 0], sizes = [2, 64], strides = [1, 1]} : vector<2x192xf32> to vector<2x64xf32>
    %893 = vector.extract_strided_slice %891 {offsets = [0, 128], sizes = [2, 64], strides = [1, 1]} : vector<2x192xf32> to vector<2x64xf32>
    %894 = vector.extract_strided_slice %885 {offsets = [0, 192], sizes = [2, 64], strides = [1, 1]} : vector<2x256xf32> to vector<2x64xf32>
    %895 = math.tanh %894 : vector<2x64xf32>
    %896 = arith.mulf %892, %895 : vector<2x64xf32>
    %897 = math.tanh %896 : vector<2x64xf32>
    %898 = arith.mulf %893, %897 : vector<2x64xf32>
    %c0_173 = arith.constant 0 : index
    %c0_174 = arith.constant 0 : index
    %899 = vector.load %arg17[%c0_173, %c0_174] : memref<128x8xf32, #tpu.memory_space<vmem>>, vector<128x8xf32>
    %900 = vector.extract_strided_slice %899 {offsets = [0, 0], sizes = [64, 8], strides = [1, 1]} : vector<128x8xf32> to vector<64x8xf32>
    %cst_175 = arith.constant dense<0.000000e+00> : vector<2x8xf32>
    %901 = tpu.matmul %874, %900, %cst_175 {dimension_numbers = #tpu.dot_dimension_numbers<[1], [0], [0], [1], [0, 0, 1, 1], [], []>} : vector<2x64xf32>, vector<64x8xf32>, vector<2x8xf32> -> vector<2x8xf32>
    %902 = vector.extract_strided_slice %899 {offsets = [64, 0], sizes = [64, 8], strides = [1, 1]} : vector<128x8xf32> to vector<64x8xf32>
    %cst_176 = arith.constant dense<0.000000e+00> : vector<2x8xf32>
    %903 = tpu.matmul %898, %902, %cst_176 {dimension_numbers = #tpu.dot_dimension_numbers<[1], [0], [0], [1], [0, 0, 1, 1], [], []>} : vector<2x64xf32>, vector<64x8xf32>, vector<2x8xf32> -> vector<2x8xf32>
    %904 = arith.addf %901, %903 : vector<2x8xf32>
    %c0_177 = arith.constant 0 : index
    %c0_178 = arith.constant 0 : index
    %905 = vector.load %arg18[%c0_177, %c0_178] : memref<1x8xf32, #tpu.memory_space<vmem>>, vector<1x8xf32>
    %906 = vector.broadcast %905 : vector<1x8xf32> to vector<2x8xf32>
    %907 = arith.addf %904, %906 : vector<2x8xf32>
    %c0_179 = arith.constant 0 : index
    %c0_180 = arith.constant 0 : index
    %908 = vector.load %arg19[%c0_179, %c0_180] : memref<2x8xf32, #tpu.memory_space<vmem>>, vector<2x8xf32>
    tpu.vector_store %arg19[%c0_179, %c0_180], %907 {strides = array<i32>} : memref<2x8xf32, #tpu.memory_space<vmem>>, vector<2x8xf32>,
    return
  }
  func.func @transform_0(%arg0: i32) -> (i32, i32, i32) {
    %c0_i32 = arith.constant 0 : i32
    %c0_i32_0 = arith.constant 0 : i32
    %c0_i32_1 = arith.constant 0 : i32
    %c0_i32_2 = arith.constant 0 : i32
    return %c0_i32, %c0_i32_0, %c0_i32_1 : i32, i32, i32
  }
  func.func @transform_1(%arg0: i32) -> (i32, i32) {
    %c0_i32 = arith.constant 0 : i32
    %c0_i32_0 = arith.constant 0 : i32
    %c0_i32_1 = arith.constant 0 : i32
    return %c0_i32, %c0_i32_0 : i32, i32
  }
  func.func @transform_2(%arg0: i32) -> (i32, i32) {
    %c0_i32 = arith.constant 0 : i32
    %c0_i32_0 = arith.constant 0 : i32
    %c0_i32_1 = arith.constant 0 : i32
    return %c0_i32, %c0_i32_0 : i32, i32
  }
  func.func @transform_3(%arg0: i32) -> (i32, i32) {
    %c0_i32 = arith.constant 0 : i32
    %c0_i32_0 = arith.constant 0 : i32
    %c0_i32_1 = arith.constant 0 : i32
    return %c0_i32, %c0_i32_0 : i32, i32
  }
  func.func @transform_4(%arg0: i32) -> (i32, i32) {
    %c0_i32 = arith.constant 0 : i32
    %c0_i32_0 = arith.constant 0 : i32
    %c0_i32_1 = arith.constant 0 : i32
    return %c0_i32, %c0_i32_0 : i32, i32
  }
  func.func @transform_5(%arg0: i32) -> (i32, i32) {
    %c0_i32 = arith.constant 0 : i32
    %c0_i32_0 = arith.constant 0 : i32
    %c0_i32_1 = arith.constant 0 : i32
    return %c0_i32, %c0_i32_0 : i32, i32
  }
  func.func @transform_6(%arg0: i32) -> (i32, i32) {
    %c0_i32 = arith.constant 0 : i32
    %c0_i32_0 = arith.constant 0 : i32
    %c0_i32_1 = arith.constant 0 : i32
    return %c0_i32, %c0_i32_0 : i32, i32
  }
  func.func @transform_7(%arg0: i32) -> (i32, i32) {
    %c0_i32 = arith.constant 0 : i32
    %c0_i32_0 = arith.constant 0 : i32
    %c0_i32_1 = arith.constant 0 : i32
    return %c0_i32, %c0_i32_0 : i32, i32
  }
  func.func @transform_8(%arg0: i32) -> (i32, i32) {
    %c0_i32 = arith.constant 0 : i32
    %c0_i32_0 = arith.constant 0 : i32
    %c0_i32_1 = arith.constant 0 : i32
    return %c0_i32, %c0_i32_0 : i32, i32
  }
  func.func @transform_9(%arg0: i32) -> (i32, i32) {
    %c0_i32 = arith.constant 0 : i32
    %c0_i32_0 = arith.constant 0 : i32
    %c0_i32_1 = arith.constant 0 : i32
    return %c0_i32, %c0_i32_0 : i32, i32
  }
  func.func @transform_10(%arg0: i32) -> (i32, i32) {
    %c0_i32 = arith.constant 0 : i32
    %c0_i32_0 = arith.constant 0 : i32
    %c0_i32_1 = arith.constant 0 : i32
    return %c0_i32, %c0_i32_0 : i32, i32
  }
  func.func @transform_11(%arg0: i32) -> (i32, i32) {
    %c0_i32 = arith.constant 0 : i32
    %c0_i32_0 = arith.constant 0 : i32
    %c0_i32_1 = arith.constant 0 : i32
    return %c0_i32, %c0_i32_0 : i32, i32
  }
  func.func @transform_12(%arg0: i32) -> (i32, i32) {
    %c0_i32 = arith.constant 0 : i32
    %c0_i32_0 = arith.constant 0 : i32
    %c0_i32_1 = arith.constant 0 : i32
    return %c0_i32, %c0_i32_0 : i32, i32
  }
  func.func @transform_13(%arg0: i32) -> (i32, i32) {
    %c0_i32 = arith.constant 0 : i32
    %c0_i32_0 = arith.constant 0 : i32
    %c0_i32_1 = arith.constant 0 : i32
    return %c0_i32, %c0_i32_0 : i32, i32
  }
  func.func @transform_14(%arg0: i32) -> (i32, i32) {
    %c0_i32 = arith.constant 0 : i32
    %c0_i32_0 = arith.constant 0 : i32
    %c0_i32_1 = arith.constant 0 : i32
    return %c0_i32, %c0_i32_0 : i32, i32
  }
  func.func @transform_15(%arg0: i32) -> (i32, i32) {
    %c0_i32 = arith.constant 0 : i32
    %c0_i32_0 = arith.constant 0 : i32
    %c0_i32_1 = arith.constant 0 : i32
    return %c0_i32, %c0_i32_0 : i32, i32
  }
  func.func @transform_16(%arg0: i32) -> (i32, i32) {
    %c0_i32 = arith.constant 0 : i32
    %c0_i32_0 = arith.constant 0 : i32
    %c0_i32_1 = arith.constant 0 : i32
    return %c0_i32, %c0_i32_0 : i32, i32
  }
  func.func @transform_17(%arg0: i32) -> (i32, i32) {
    %c0_i32 = arith.constant 0 : i32
    %c0_i32_0 = arith.constant 0 : i32
    %c0_i32_1 = arith.constant 0 : i32
    return %c0_i32, %c0_i32_0 : i32, i32
  }
  func.func @transform_18(%arg0: i32) -> (i32, i32) {
    %c0_i32 = arith.constant 0 : i32
    %c0_i32_0 = arith.constant 0 : i32
    %c0_i32_1 = arith.constant 0 : i32
    return %c0_i32, %c0_i32_0 : i32, i32
  }
}

</mosaic_0001>

<llo_original>
// kernel: cldnn_forward.1
$region0: #{cldnn_forward.1}
  #allocation0 [shape = 'u32[]', space=smem, size = 0x4, offset = 0x4, fixed_abs, tag = 'smem constant byte address 0x4 - core index']
  #allocation1 [shape = 'u32[144,128]{1,0:T(1,128)}', space=vmem, size = 0x12000, scoped, tag = 'internal scratch']
  #allocation2 [shape = 'f32[16,8]{1,0:T(8,128)}', space=vmem, size = 0x2000, scoped, tag = 'scratch operand']
  #allocation3 [shape = 'f32[16,64]{1,0:T(8,128)}', space=vmem, size = 0x2000, scoped, tag = 'scratch operand']
  #allocation4 [shape = 'f32[16,64]{1,0:T(8,128)}', space=vmem, size = 0x2000, scoped, tag = 'scratch operand']
  %s0 = inlined_call_operand.vmem [shape: f32[2,8,8], index: 0, kind: input, shape index: {}]
  %s1 = inlined_call_operand.vmem [shape: f32[8,24], index: 1, kind: input, shape index: {}]
  %s2 = inlined_call_operand.vmem [shape: f32[1,24], index: 2, kind: input, shape index: {}]
  %s3 = inlined_call_operand.vmem [shape: f32[8,8], index: 3, kind: input, shape index: {}]
  %s4 = inlined_call_operand.hbm [shape: f32[1,8], index: 4, kind: input, shape index: {}]
  %s5 = inlined_call_operand.hbm [shape: f32[8,256], index: 5, kind: input, shape index: {}]
  %s6 = inlined_call_operand.vmem [shape: f32[64,256], index: 6, kind: input, shape index: {}]
  %s7 = inlined_call_operand.hbm [shape: f32[1,256], index: 7, kind: input, shape index: {}]
  %s8 = inlined_call_operand.hbm [shape: f32[8,256], index: 8, kind: input, shape index: {}]
  %s9 = inlined_call_operand.hbm [shape: f32[64,256], index: 9, kind: input, shape index: {}]
  %s10 = inlined_call_operand.hbm [shape: f32[1,256], index: 10, kind: input, shape index: {}]
  %s11 = inlined_call_operand.hbm [shape: f32[128,256], index: 11, kind: input, shape index: {}]
  %s12 = inlined_call_operand.hbm [shape: f32[64,256], index: 12, kind: input, shape index: {}]
  %s13 = inlined_call_operand.hbm [shape: f32[1,256], index: 13, kind: input, shape index: {}]
  %s14 = inlined_call_operand.hbm [shape: f32[128,256], index: 14, kind: input, shape index: {}]
  %s15 = inlined_call_operand.hbm [shape: f32[1,256], index: 15, kind: input, shape index: {}]
  %s16 = inlined_call_operand.vmem [shape: f32[128,8], index: 16, kind: input, shape index: {}]
  %s17 = inlined_call_operand.hbm [shape: f32[1,8], index: 17, kind: input, shape index: {}]
  %s18 = inlined_call_operand.hbm [shape: f32[2,8], index: 18, kind: output, shape index: {}]
  %s19 = sld [smem:[#allocation0]]
  $region130: #{cldnn_forward.1} parent=0
    _
  %s21 = ssub.s32 1, %s19
  %s22 = scalar_select 0, %s21, %s19
  $region1: #{cldnn_forward.1} parent=0
    #allocation5 [shape = 'u8[512]{0}', space=vmem, size = 0x400, scoped, tag = 'input window, operand 4, single buffered']
    #allocation6 [shape = 's32[1]{0}', space=sflag, size = 0x4, scoped, tag = 'scoped memory for cldnn_forward.1']
    #allocation7 [shape = 's32[1]{0}', space=sflag, size = 0x4, scoped, tag = 'scoped memory for cldnn_forward.1']
    #allocation8 [shape = 'u8[8192]{0}', space=vmem, size = 0x2000, scoped, tag = 'input window, operand 5, single buffered']
    #allocation9 [shape = 's32[1]{0}', space=sflag, size = 0x4, scoped, tag = 'scoped memory for cldnn_forward.1']
    #allocation10 [shape = 'u8[1024]{0}', space=vmem, size = 0x400, scoped, tag = 'input window, operand 7, single buffered']
    #allocation11 [shape = 'u8[8192]{0}', space=vmem, size = 0x2000, scoped, tag = 'input window, operand 8, single buffered']
    #allocation12 [shape = 's32[1]{0}', space=sflag, size = 0x4, scoped, tag = 'scoped memory for cldnn_forward.1']
    #allocation13 [shape = 'u8[65536]{0}', space=vmem, size = 0x10000, scoped, tag = 'input window, operand 9, single buffered']
    #allocation14 [shape = 'u8[1024]{0}', space=vmem, size = 0x400, scoped, tag = 'input window, operand 10, single buffered']
    #allocation15 [shape = 's32[1]{0}', space=sflag, size = 0x4, scoped, tag = 'scoped memory for cldnn_forward.1']
    #allocation16 [shape = 'u8[131072]{0}', space=vmem, size = 0x20000, scoped, tag = 'input window, operand 11, single buffered']
    #allocation17 [shape = 'u8[65536]{0}', space=vmem, size = 0x10000, scoped, tag = 'input window, operand 12, single buffered']
    #allocation18 [shape = 's32[1]{0}', space=sflag, size = 0x4, scoped, tag = 'scoped memory for cldnn_forward.1']
    #allocation19 [shape = 'u8[1024]{0}', space=vmem, size = 0x400, scoped, tag = 'input window, operand 13, single buffered']
    #allocation20 [shape = 'u8[131072]{0}', space=vmem, size = 0x20000, scoped, tag = 'input window, operand 14, single buffered']
    #allocation21 [shape = 's32[1]{0}', space=sflag, size = 0x4, scoped, tag = 'scoped memory for cldnn_forward.1']
    #allocation22 [shape = 'u8[1024]{0}', space=vmem, size = 0x400, scoped, tag = 'input window, operand 15, single buffered']
    #allocation23 [shape = 'u8[512]{0}', space=vmem, size = 0x400, scoped, tag = 'input window, operand 17, single buffered']
    #allocation24 [shape = 's32[1]{0}', space=sflag, size = 0x4, scoped, tag = 'scoped memory for cldnn_forward.1']
    #allocation25 [shape = 'u8[1024]{0}', space=vmem, size = 0x400, scoped, tag = 'output window, operand 0, single buffered']
    %23 = vsyncpa [#allocation6], 0
    %24 = vsyncpa [#allocation9], 0
    %25 = vsyncpa [#allocation12], 0
    %26 = vsyncpa [#allocation15], 0
    %27 = vsyncpa [#allocation18], 0
    %28 = vsyncpa [#allocation21], 0
    %29 = vsyncpa [#allocation24], 0
    %30 = vsyncpa [#allocation7], 0
    // Predicated region
    $region2: #{cldnn_forward.1} parent=1 // pred_check
      _
    $region3: #{cldnn_forward.1} parent=1 // pred_check_branch
      %32 = sbr.rel (0) target = $region5
    $region4: #{cldnn_forward.1} parent=1 // pred_region
      _
    $region5: #{cldnn_forward.1} parent=1 // pred_fallthru
      _
    // Predicated region
    $region6: #{cldnn_forward.1} parent=1 // pred_check
      _
    $region7: #{cldnn_forward.1} parent=1 // pred_check_branch
      %34 = sbr.rel (0) target = $region9
    $region8: #{cldnn_forward.1} parent=1 // pred_region
      _
    $region9: #{cldnn_forward.1} parent=1 // pred_fallthru
      _
    // Predicated region
    $region10: #{cldnn_forward.1} parent=1 // pred_check
      _
    $region11: #{cldnn_forward.1} parent=1 // pred_check_branch
      %36 = sbr.rel (0) target = $region13
    $region12: #{cldnn_forward.1} parent=1 // pred_region
      _
    $region13: #{cldnn_forward.1} parent=1 // pred_fallthru
      _
    // Predicated region
    $region14: #{cldnn_forward.1} parent=1 // pred_check
      _
    $region15: #{cldnn_forward.1} parent=1 // pred_check_branch
      %38 = sbr.rel (0) target = $region17
    $region16: #{cldnn_forward.1} parent=1 // pred_region
      _
    $region17: #{cldnn_forward.1} parent=1 // pred_fallthru
      _
    // Predicated region
    $region18: #{cldnn_forward.1} parent=1 // pred_check
      _
    $region19: #{cldnn_forward.1} parent=1 // pred_check_branch
      %40 = sbr.rel (0) target = $region21
    $region20: #{cldnn_forward.1} parent=1 // pred_region
      %s42 = ssub.s32 16, 16
      %43 = vsyncadd [#allocation6], %s42
      %s45 = sshll.u32 [#allocation5], 4
      %s46 = int_to_ptr.vmem [resolvable:$true] %s45
      %48 = dma.hbm_to_vmem [thread:$0]  %s4, 16, %s46, [#allocation6]
    $region21: #{cldnn_forward.1} parent=1 // pred_fallthru
      _
    // Predicated region
    $region22: #{cldnn_forward.1} parent=1 // pred_check
      _
    $region23: #{cldnn_forward.1} parent=1 // pred_check_branch
      %50 = sbr.rel (0) target = $region25
    $region24: #{cldnn_forward.1} parent=1 // pred_region
      %s52 = ssub.s32 256, 256
      %53 = vsyncadd [#allocation9], %s52
      %s55 = sshll.u32 [#allocation8], 4
      %s56 = int_to_ptr.vmem [resolvable:$true] %s55
      %58 = dma.hbm_to_vmem [thread:$0]  %s5, 256, %s56, [#allocation9]
    $region25: #{cldnn_forward.1} parent=1 // pred_fallthru
      _
    // Predicated region
    $region26: #{cldnn_forward.1} parent=1 // pred_check
      _
    $region27: #{cldnn_forward.1} parent=1 // pred_check_branch
      %60 = sbr.rel (0) target = $region29
    $region28: #{cldnn_forward.1} parent=1 // pred_region
      _
    $region29: #{cldnn_forward.1} parent=1 // pred_fallthru
      _
    // Predicated region
    $region30: #{cldnn_forward.1} parent=1 // pred_check
      _
    $region31: #{cldnn_forward.1} parent=1 // pred_check_branch
      %62 = sbr.rel (0) target = $region33
    $region32: #{cldnn_forward.1} parent=1 // pred_region
      %s64 = ssub.s32 32, 32
      %65 = vsyncadd [#allocation9], %s64
      %s67 = sshll.u32 [#allocation10], 4
      %s68 = int_to_ptr.vmem [resolvable:$true] %s67
      %70 = dma.hbm_to_vmem [thread:$0]  %s7, 32, %s68, [#allocation9]
    $region33: #{cldnn_forward.1} parent=1 // pred_fallthru
      _
    // Predicated region
    $region34: #{cldnn_forward.1} parent=1 // pred_check
      _
    $region35: #{cldnn_forward.1} parent=1 // pred_check_branch
      %72 = sbr.rel (0) target = $region37
    $region36: #{cldnn_forward.1} parent=1 // pred_region
      %s74 = ssub.s32 256, 256
      %75 = vsyncadd [#allocation12], %s74
      %s77 = sshll.u32 [#allocation11], 4
      %s78 = int_to_ptr.vmem [resolvable:$true] %s77
      %80 = dma.hbm_to_vmem [thread:$0]  %s8, 256, %s78, [#allocation12]
    $region37: #{cldnn_forward.1} parent=1 // pred_fallthru
      _
    // Predicated region
    $region38: #{cldnn_forward.1} parent=1 // pred_check
      _
    $region39: #{cldnn_forward.1} parent=1 // pred_check_branch
      %82 = sbr.rel (0) target = $region41
    $region40: #{cldnn_forward.1} parent=1 // pred_region
      %s84 = ssub.s32 2048, 2048
      %85 = vsyncadd [#allocation12], %s84
      %s86 = sshll.u32 [#allocation13], 4
      %s87 = int_to_ptr.vmem [resolvable:$true] %s86
      %92 = dma.hbm_to_vmem [thread:$0]  %s9, 2048, %s87, [#allocation12], 256, 256, 16
    $region41: #{cldnn_forward.1} parent=1 // pred_fallthru
      _
    // Predicated region
    $region42: #{cldnn_forward.1} parent=1 // pred_check
      _
    $region43: #{cldnn_forward.1} parent=1 // pred_check_branch
      %94 = sbr.rel (0) target = $region45
    $region44: #{cldnn_forward.1} parent=1 // pred_region
      %s96 = ssub.s32 32, 32
      %97 = vsyncadd [#allocation15], %s96
      %s99 = sshll.u32 [#allocation14], 4
      %s100 = int_to_ptr.vmem [resolvable:$true] %s99
      %102 = dma.hbm_to_vmem [thread:$0]  %s10, 32, %s100, [#allocation15]
    $region45: #{cldnn_forward.1} parent=1 // pred_fallthru
      _
    // Predicated region
    $region46: #{cldnn_forward.1} parent=1 // pred_check
      _
    $region47: #{cldnn_forward.1} parent=1 // pred_check_branch
      %104 = sbr.rel (0) target = $region49
    $region48: #{cldnn_forward.1} parent=1 // pred_region
      %s106 = ssub.s32 4096, 4096
      %107 = vsyncadd [#allocation15], %s106
      %s108 = sshll.u32 [#allocation16], 4
      %s109 = int_to_ptr.vmem [resolvable:$true] %s108
      %114 = dma.hbm_to_vmem [thread:$0]  %s11, 4096, %s109, [#allocation15], 256, 256, 16
    $region49: #{cldnn_forward.1} parent=1 // pred_fallthru
      _
    // Predicated region
    $region50: #{cldnn_forward.1} parent=1 // pred_check
      _
    $region51: #{cldnn_forward.1} parent=1 // pred_check_branch
      %116 = sbr.rel (0) target = $region53
    $region52: #{cldnn_forward.1} parent=1 // pred_region
      %s118 = ssub.s32 2048, 2048
      %119 = vsyncadd [#allocation18], %s118
      %s120 = sshll.u32 [#allocation17], 4
      %s121 = int_to_ptr.vmem [resolvable:$true] %s120
      %126 = dma.hbm_to_vmem [thread:$0]  %s12, 2048, %s121, [#allocation18], 256, 256, 16
    $region53: #{cldnn_forward.1} parent=1 // pred_fallthru
      _
    // Predicated region
    $region54: #{cldnn_forward.1} parent=1 // pred_check
      _
    $region55: #{cldnn_forward.1} parent=1 // pred_check_branch
      %128 = sbr.rel (0) target = $region57
    $region56: #{cldnn_forward.1} parent=1 // pred_region
      %s130 = ssub.s32 32, 32
      %131 = vsyncadd [#allocation18], %s130
      %s133 = sshll.u32 [#allocation19], 4
      %s134 = int_to_ptr.vmem [resolvable:$true] %s133
      %136 = dma.hbm_to_vmem [thread:$0]  %s13, 32, %s134, [#allocation18]
    $region57: #{cldnn_forward.1} parent=1 // pred_fallthru
      _
    // Predicated region
    $region58: #{cldnn_forward.1} parent=1 // pred_check
      _
    $region59: #{cldnn_forward.1} parent=1 // pred_check_branch
      %138 = sbr.rel (0) target = $region61
    $region60: #{cldnn_forward.1} parent=1 // pred_region
      %s140 = ssub.s32 4096, 4096
      %141 = vsyncadd [#allocation21], %s140
      %s142 = sshll.u32 [#allocation20], 4
      %s143 = int_to_ptr.vmem [resolvable:$true] %s142
      %148 = dma.hbm_to_vmem [thread:$0]  %s14, 4096, %s143, [#allocation21], 256, 256, 16
    $region61: #{cldnn_forward.1} parent=1 // pred_fallthru
      _
    // Predicated region
    $region62: #{cldnn_forward.1} parent=1 // pred_check
      _
    $region63: #{cldnn_forward.1} parent=1 // pred_check_branch
      %150 = sbr.rel (0) target = $region65
    $region64: #{cldnn_forward.1} parent=1 // pred_region
      %s152 = ssub.s32 32, 32
      %153 = vsyncadd [#allocation21], %s152
      %s155 = sshll.u32 [#allocation22], 4
      %s156 = int_to_ptr.vmem [resolvable:$true] %s155
      %158 = dma.hbm_to_vmem [thread:$0]  %s15, 32, %s156, [#allocation21]
    $region65: #{cldnn_forward.1} parent=1 // pred_fallthru
      _
    // Predicated region
    $region66: #{cldnn_forward.1} parent=1 // pred_check
      _
    $region67: #{cldnn_forward.1} parent=1 // pred_check_branch
      %160 = sbr.rel (0) target = $region69
    $region68: #{cldnn_forward.1} parent=1 // pred_region
      _
    $region69: #{cldnn_forward.1} parent=1 // pred_fallthru
      _
    // Predicated region
    $region70: #{cldnn_forward.1} parent=1 // pred_check
      _
    $region71: #{cldnn_forward.1} parent=1 // pred_check_branch
      %162 = sbr.rel (0) target = $region73
    $region72: #{cldnn_forward.1} parent=1 // pred_region
      %s164 = ssub.s32 16, 16
      %165 = vsyncadd [#allocation24], %s164
      %s167 = sshll.u32 [#allocation23], 4
      %s168 = int_to_ptr.vmem [resolvable:$true] %s167
      %170 = dma.hbm_to_vmem [thread:$0]  %s17, 16, %s168, [#allocation24]
    $region73: #{cldnn_forward.1} parent=1 // pred_fallthru
      _
    // Predicated region
    $region74: #{cldnn_forward.1} parent=1 // pred_check
      _
    $region75: #{cldnn_forward.1} parent=1 // pred_check_branch
      %172 = sbr.rel (0) target = $region77
    $region76: #{cldnn_forward.1} parent=1 // pred_region
      %173 = dma.done [#allocation6], 16
    $region77: #{cldnn_forward.1} parent=1 // pred_fallthru
      _
    // Predicated region
    $region78: #{cldnn_forward.1} parent=1 // pred_check
      _
    $region79: #{cldnn_forward.1} parent=1 // pred_check_branch
      %175 = sbr.rel (0) target = $region81
    $region80: #{cldnn_forward.1} parent=1 // pred_region
      %176 = dma.done [#allocation9], 256
    $region81: #{cldnn_forward.1} parent=1 // pred_fallthru
      _
    // Predicated region
    $region82: #{cldnn_forward.1} parent=1 // pred_check
      _
    $region83: #{cldnn_forward.1} parent=1 // pred_check_branch
      %178 = sbr.rel (0) target = $region85
    $region84: #{cldnn_forward.1} parent=1 // pred_region
      %179 = dma.done [#allocation9], 32
    $region85: #{cldnn_forward.1} parent=1 // pred_fallthru
      _
    // Predicated region
    $region86: #{cldnn_forward.1} parent=1 // pred_check
      _
    $region87: #{cldnn_forward.1} parent=1 // pred_check_branch
      %181 = sbr.rel (0) target = $region89
    $region88: #{cldnn_forward.1} parent=1 // pred_region
      %182 = dma.done [#allocation12], 256
    $region89: #{cldnn_forward.1} parent=1 // pred_fallthru
      _
    // Predicated region
    $region90: #{cldnn_forward.1} parent=1 // pred_check
      _
    $region91: #{cldnn_forward.1} parent=1 // pred_check_branch
      %184 = sbr.rel (0) target = $region93
    $region92: #{cldnn_forward.1} parent=1 // pred_region
      %185 = dma.done [#allocation12], 2048
    $region93: #{cldnn_forward.1} parent=1 // pred_fallthru
      _
    // Predicated region
    $region94: #{cldnn_forward.1} parent=1 // pred_check
      _
    $region95: #{cldnn_forward.1} parent=1 // pred_check_branch
      %187 = sbr.rel (0) target = $region97
    $region96: #{cldnn_forward.1} parent=1 // pred_region
      %188 = dma.done [#allocation15], 32
    $region97: #{cldnn_forward.1} parent=1 // pred_fallthru
      _
    // Predicated region
    $region98: #{cldnn_forward.1} parent=1 // pred_check
      _
    $region99: #{cldnn_forward.1} parent=1 // pred_check_branch
      %190 = sbr.rel (0) target = $region101
    $region100: #{cldnn_forward.1} parent=1 // pred_region
      %191 = dma.done [#allocation15], 4096
    $region101: #{cldnn_forward.1} parent=1 // pred_fallthru
      _
    // Predicated region
    $region102: #{cldnn_forward.1} parent=1 // pred_check
      _
    $region103: #{cldnn_forward.1} parent=1 // pred_check_branch
      %193 = sbr.rel (0) target = $region105
    $region104: #{cldnn_forward.1} parent=1 // pred_region
      %194 = dma.done [#allocation18], 2048
    $region105: #{cldnn_forward.1} parent=1 // pred_fallthru
      _
    // Predicated region
    $region106: #{cldnn_forward.1} parent=1 // pred_check
      _
    $region107: #{cldnn_forward.1} parent=1 // pred_check_branch
      %196 = sbr.rel (0) target = $region109
    $region108: #{cldnn_forward.1} parent=1 // pred_region
      %197 = dma.done [#allocation18], 32
    $region109: #{cldnn_forward.1} parent=1 // pred_fallthru
      _
    // Predicated region
    $region110: #{cldnn_forward.1} parent=1 // pred_check
      _
    $region111: #{cldnn_forward.1} parent=1 // pred_check_branch
      %199 = sbr.rel (0) target = $region113
    $region112: #{cldnn_forward.1} parent=1 // pred_region
      %200 = dma.done [#allocation21], 4096
    $region113: #{cldnn_forward.1} parent=1 // pred_fallthru
      _
    // Predicated region
    $region114: #{cldnn_forward.1} parent=1 // pred_check
      _
    $region115: #{cldnn_forward.1} parent=1 // pred_check_branch
      %202 = sbr.rel (0) target = $region117
    $region116: #{cldnn_forward.1} parent=1 // pred_region
      %203 = dma.done [#allocation21], 32
    $region117: #{cldnn_forward.1} parent=1 // pred_fallthru
      _
    // Predicated region
    $region118: #{cldnn_forward.1} parent=1 // pred_check
      _
    $region119: #{cldnn_forward.1} parent=1 // pred_check_branch
      %205 = sbr.rel (0) target = $region121
    $region120: #{cldnn_forward.1} parent=1 // pred_region
      %206 = dma.done [#allocation24], 16
    $region121: #{cldnn_forward.1} parent=1 // pred_fallthru
      _
    %v207 = vld [vmem:[%s0] sm:$0xff]
    %v208 = vld [vmem:[%s0 + $0x8] sm:$0xff]
    %209 = vxpose.xlu0.b32.start [1/16] %v207, 128
    %210 = vxpose.xlu0.b32.cont [2/16] 0.0, 128
    %211 = vxpose.xlu0.b32.cont [3/16] 0.0, 128
    %212 = vxpose.xlu0.b32.cont [4/16] 0.0, 128
    %213 = vxpose.xlu0.b32.cont [5/16] 0.0, 128
    %214 = vxpose.xlu0.b32.cont [6/16] 0.0, 128
    %215 = vxpose.xlu0.b32.cont [7/16] 0.0, 128
    %216 = vxpose.xlu0.b32.cont [8/16] 0.0, 128
    %217 = vxpose.xlu0.b32.cont [9/16] 0.0, 128
    %218 = vxpose.xlu0.b32.cont [10/16] 0.0, 128
    %219 = vxpose.xlu0.b32.cont [11/16] 0.0, 128
    %220 = vxpose.xlu0.b32.cont [12/16] 0.0, 128
    %221 = vxpose.xlu0.b32.cont [13/16] 0.0, 128
    %222 = vxpose.xlu0.b32.cont [14/16] 0.0, 128
    %223 = vxpose.xlu0.b32.cont [15/16] 0.0, 128
    %224 = vxpose.xlu0.b32.end [16/16] 0.0, 128
    %v225 = vpop.trf.xlu0
    %v226 = vpop.trf.xlu0
    %v227 = vpop.trf.xlu0
    %v228 = vpop.trf.xlu0
    %v229 = vpop.trf.xlu0
    %v230 = vpop.trf.xlu0
    %v231 = vpop.trf.xlu0
    %v232 = vpop.trf.xlu0
    %v233 = vpop.trf.xlu0
    %v234 = vpop.trf.xlu0
    %v235 = vpop.trf.xlu0
    %v236 = vpop.trf.xlu0
    %v237 = vpop.trf.xlu0
    %v238 = vpop.trf.xlu0
    %v239 = vpop.trf.xlu0
    %v240 = vpop.trf.xlu0
    %241 = vxpose.xlu0.b32.start [1/16] %v208, 128
    %242 = vxpose.xlu0.b32.cont [2/16] 0.0, 128
    %243 = vxpose.xlu0.b32.cont [3/16] 0.0, 128
    %244 = vxpose.xlu0.b32.cont [4/16] 0.0, 128
    %245 = vxpose.xlu0.b32.cont [5/16] 0.0, 128
    %246 = vxpose.xlu0.b32.cont [6/16] 0.0, 128
    %247 = vxpose.xlu0.b32.cont [7/16] 0.0, 128
    %248 = vxpose.xlu0.b32.cont [8/16] 0.0, 128
    %249 = vxpose.xlu0.b32.cont [9/16] 0.0, 128
    %250 = vxpose.xlu0.b32.cont [10/16] 0.0, 128
    %251 = vxpose.xlu0.b32.cont [11/16] 0.0, 128
    %252 = vxpose.xlu0.b32.cont [12/16] 0.0, 128
    %253 = vxpose.xlu0.b32.cont [13/16] 0.0, 128
    %254 = vxpose.xlu0.b32.cont [14/16] 0.0, 128
    %255 = vxpose.xlu0.b32.cont [15/16] 0.0, 128
    %256 = vxpose.xlu0.b32.end [16/16] 0.0, 128
    %v257 = vpop.trf.xlu0
    %v258 = vpop.trf.xlu0
    %v259 = vpop.trf.xlu0
    %v260 = vpop.trf.xlu0
    %v261 = vpop.trf.xlu0
    %v262 = vpop.trf.xlu0
    %v263 = vpop.trf.xlu0
    %v264 = vpop.trf.xlu0
    %v265 = vpop.trf.xlu0
    %v266 = vpop.trf.xlu0
    %v267 = vpop.trf.xlu0
    %v268 = vpop.trf.xlu0
    %v269 = vpop.trf.xlu0
    %v270 = vpop.trf.xlu0
    %v271 = vpop.trf.xlu0
    %v272 = vpop.trf.xlu0
    %v273 = vld [vmem:[%s1] sm:$0xff]
    %v274 = vld [vmem:[%s2] sm:$0x1]
    %v276 = vlaneseq
    %v277 = vshrl.u32 %v276, 7
    %v278 = vsub.s32 0, %v277
    %v279 = vrot.slane %v274, %v278
    %vm281 = vcmask 64512
    %v283 = vsel %vm281, %v225, 0
    %v286 = vsel %vm281, %v257, 0
    %288 = vmatprep.subr.mxu0 0.0
    %289 = vmatpush1.msra.mxu0 0.0
    %290 = vmatprep.subr.mxu0 0.0
    %291 = vmatpush1.msra.mxu0 0.0
    %292 = vmatprep.subr.mxu0 0.0
    %293 = vmatpush1.msra.mxu0 0.0
    %294 = vmatprep.subr.mxu0 0.0
    %295 = vmatpush1.msra.mxu0 0.0
    %296 = vmatprep.subr.mxu0 0.0
    %297 = vmatpush1.msra.mxu0 0.0
    %298 = vmatprep.subr.mxu0 0.0
    %299 = vmatpush1.msra.mxu0 0.0
    %300 = vmatprep.subr.mxu0 0.0
    %301 = vmatpush1.msra.mxu0 0.0
    %302 = vmatprep.subr.mxu0 0.0
    %303 = vmatpush1.msra.mxu0 0.0
    %304 = vmatprep.subr.mxu0 0.0
    %305 = vmatpush1.msra.mxu0 0.0
    %306 = vmatprep.subr.mxu0 0.0
    %307 = vmatpush1.msra.mxu0 0.0
    %308 = vmatprep.subr.mxu0 0.0
    %309 = vmatpush1.msra.mxu0 0.0
    %310 = vmatprep.subr.mxu0 0.0
    %311 = vmatpush1.msra.mxu0 0.0
    %312 = vmatprep.subr.mxu0 0.0
    %313 = vmatpush1.msra.mxu0 0.0
    %314 = vmatprep.subr.mxu0 0.0
    %315 = vmatpush1.msra.mxu0 0.0
    %316 = vmatprep.subr.mxu0 0.0
    %317 = vmatpush1.msra.mxu0 0.0
    %318 = vmatprep.subr.mxu0 0.0
    %319 = vmatpush1.msra.mxu0 %v273
    %320 = vmatprep.subr.mxu0 0.0
    %321 = vmatpush2.msra.mxu0 0.0
    %322 = vmatprep.subr.mxu0 0.0
    %323 = vmatpush2.msra.mxu0 0.0
    %324 = vmatprep.subr.mxu0 0.0
    %325 = vmatpush2.msra.mxu0 0.0
    %326 = vmatprep.subr.mxu0 0.0
    %327 = vmatpush2.msra.mxu0 0.0
    %328 = vmatprep.subr.mxu0 0.0
    %329 = vmatpush2.msra.mxu0 0.0
    %330 = vmatprep.subr.mxu0 0.0
    %331 = vmatpush2.msra.mxu0 0.0
    %332 = vmatprep.subr.mxu0 0.0
    %333 = vmatpush2.msra.mxu0 0.0
    %334 = vmatprep.subr.mxu0 0.0
    %335 = vmatpush2.msra.mxu0 0.0
    %336 = vmatprep.subr.mxu0 0.0
    %337 = vmatpush2.msra.mxu0 0.0
    %338 = vmatprep.subr.mxu0 0.0
    %339 = vmatpush2.msra.mxu0 0.0
    %340 = vmatprep.subr.mxu0 0.0
    %341 = vmatpush2.msra.mxu0 0.0
    %342 = vmatprep.subr.mxu0 0.0
    %343 = vmatpush2.msra.mxu0 0.0
    %344 = vmatprep.subr.mxu0 0.0
    %345 = vmatpush2.msra.mxu0 0.0
    %346 = vmatprep.subr.mxu0 0.0
    %347 = vmatpush2.msra.mxu0 0.0
    %348 = vmatprep.subr.mxu0 0.0
    %349 = vmatpush2.msra.mxu0 0.0
    %350 = vmatprep.subr.mxu0 0.0
    %351 = vmatpush2.msra.mxu0 0.0
    %352 = vmatprep.mubr.f32.mxu0 0.0
    %353 = vmatmul.mubr.f32.gmra.mxu0 %v283
    %v354 = vpop.f32.mrf.mxu0
    %v355 = vadd.f32 %v279, %v354
    %v356 = vpop.f32.mrf.mxu0
    %357 = vmatprep.mubr.f32.mxu0 0.0
    %358 = vmatmul.mubr.f32.gmra.mxu0 %v286
    %v359 = vpop.f32.mrf.mxu0
    %v360 = vadd.f32 %v279, %v359
    %v361 = vpop.f32.mrf.mxu0
    %362 = vdwg.mxu0
    %v363 = vld [vmem:[%s3] sm:$0xff]
    %v364 = vld [vmem:[#allocation5] sm:$0x1]
    %v365 = vmul.f32 %v355, 0.70710677
    %367 = vrot.lane.b32.xlu0 %v355, 120
    %v368 = vpop.permute.xlu0 %367
    %370 = vxpose.xlu0.b32.start [1/16] %v368, 128
    %371 = vxpose.xlu0.b32.cont [2/16] 0.0, 128
    %372 = vxpose.xlu0.b32.cont [3/16] 0.0, 128
    %373 = vxpose.xlu0.b32.cont [4/16] 0.0, 128
    %374 = vxpose.xlu0.b32.cont [5/16] 0.0, 128
    %375 = vxpose.xlu0.b32.cont [6/16] 0.0, 128
    %376 = vxpose.xlu0.b32.cont [7/16] 0.0, 128
    %377 = vxpose.xlu0.b32.cont [8/16] 0.0, 128
    %378 = vxpose.xlu0.b32.cont [9/16] 0.0, 128
    %379 = vxpose.xlu0.b32.cont [10/16] 0.0, 128
    %380 = vxpose.xlu0.b32.cont [11/16] 0.0, 128
    %381 = vxpose.xlu0.b32.cont [12/16] 0.0, 128
    %382 = vxpose.xlu0.b32.cont [13/16] 0.0, 128
    %383 = vxpose.xlu0.b32.cont [14/16] 0.0, 128
    %384 = vxpose.xlu0.b32.cont [15/16] 0.0, 128
    %385 = vxpose.xlu0.b32.end [16/16] 0.0, 128
    %v386 = vpop.trf.xlu0
    %v387 = vpop.trf.xlu0
    %v388 = vpop.trf.xlu0
    %v389 = vpop.trf.xlu0
    %v390 = vpop.trf.xlu0
    %v391 = vpop.trf.xlu0
    %v392 = vpop.trf.xlu0
    %v393 = vpop.trf.xlu0
    %v394 = vpop.trf.xlu0
    %v395 = vpop.trf.xlu0
    %v396 = vpop.trf.xlu0
    %v397 = vpop.trf.xlu0
    %v398 = vpop.trf.xlu0
    %v399 = vpop.trf.xlu0
    %v400 = vpop.trf.xlu0
    %v401 = vpop.trf.xlu0
    %402 = vrot.lane.b32.xlu0 %v355, 112
    %v403 = vpop.permute.xlu0 %402
    %405 = vxpose.xlu0.b32.start [1/16] %v403, 128
    %406 = vxpose.xlu0.b32.cont [2/16] 0.0, 128
    %407 = vxpose.xlu0.b32.cont [3/16] 0.0, 128
    %408 = vxpose.xlu0.b32.cont [4/16] 0.0, 128
    %409 = vxpose.xlu0.b32.cont [5/16] 0.0, 128
    %410 = vxpose.xlu0.b32.cont [6/16] 0.0, 128
    %411 = vxpose.xlu0.b32.cont [7/16] 0.0, 128
    %412 = vxpose.xlu0.b32.cont [8/16] 0.0, 128
    %413 = vxpose.xlu0.b32.cont [9/16] 0.0, 128
    %414 = vxpose.xlu0.b32.cont [10/16] 0.0, 128
    %415 = vxpose.xlu0.b32.cont [11/16] 0.0, 128
    %416 = vxpose.xlu0.b32.cont [12/16] 0.0, 128
    %417 = vxpose.xlu0.b32.cont [13/16] 0.0, 128
    %418 = vxpose.xlu0.b32.cont [14/16] 0.0, 128
    %419 = vxpose.xlu0.b32.cont [15/16] 0.0, 128
    %420 = vxpose.xlu0.b32.end [16/16] 0.0, 128
    %v421 = vpop.trf.xlu0
    %v422 = vpop.trf.xlu0
    %v423 = vpop.trf.xlu0
    %v424 = vpop.trf.xlu0
    %v425 = vpop.trf.xlu0
    %v426 = vpop.trf.xlu0
    %v427 = vpop.trf.xlu0
    %v428 = vpop.trf.xlu0
    %v429 = vpop.trf.xlu0
    %v430 = vpop.trf.xlu0
    %v431 = vpop.trf.xlu0
    %v432 = vpop.trf.xlu0
    %v433 = vpop.trf.xlu0
    %v434 = vpop.trf.xlu0
    %v435 = vpop.trf.xlu0
    %v436 = vpop.trf.xlu0
    %v438 = vlaneseq
    %v439 = vshrl.u32 %v438, 7
    %v440 = vsub.s32 0, %v439
    %v441 = vrot.slane %v364, %v440
    %v443 = vadd.f32 %v441, %v225
    %445 = vset.pattern.permute.xlu0 0
    %446 = vperm.xlu0 %445, %v365
    %v447 = vpop.permute.xlu0 %446
    %v449 = vlaneseq
    %v450 = vshrl.u32 %v449, 7
    %v451 = vsub.s32 0, %v450
    %v452 = vrot.slane %v386, %v451
    %v453 = vmul.f32 %v447, %v452
    %454 = vset.pattern.permute.xlu0 1
    %455 = vperm.xlu0 %454, %v365
    %v456 = vpop.permute.xlu0 %455
    %v458 = vlaneseq
    %v459 = vshrl.u32 %v458, 7
    %v460 = vsub.s32 1, %v459
    %v461 = vrot.slane %v386, %v460
    %v462 = vmul.f32 %v456, %v461
    %v463 = vadd.f32 %v453, %v462
    %v464 = vsel %vm281, %v463, -inf
    %465 = vmax.xlane.f32.xlu0 %v464
    %v466 = vpop.xlane.xlu0 %465
    %v467 = vsub.f32 %v463, %v466
    %v468 = vmul.f32 %v467, 1.442695
    %v469 = vpow.pop %v468
    %v470 = vsel %vm281, %v469, 0.0
    %471 = vadd.xlane.f32.xlu0 %v470
    %v472 = vpop.xlane.xlu0 %471
    %v473 = vrcp.pop %v472
    %v474 = vmul.f32 %v469, %v473
    %v475 = vlaneseq
    %v476 = vshrl.u32 %v475, 7
    %v477 = vsub.s32 0, %v476
    %v478 = vrot.slane %v421, %v477
    %v479 = vmul.f32 %v474, %v478
    %v480 = vsel %vm281, %v479, 0.0
    %481 = vadd.xlane.f32.xlu0 %v480
    %v482 = vpop.xlane.xlu0 %481
    %v483 = vlaneseq
    %v484 = vshrl.u32 %v483, 7
    %v485 = vsub.s32 1, %v484
    %v486 = vrot.slane %v421, %v485
    %v487 = vmul.f32 %v474, %v486
    %v488 = vsel %vm281, %v487, 0.0
    %489 = vadd.xlane.f32.xlu0 %v488
    %v490 = vpop.xlane.xlu0 %489
    %v491 = vlaneseq
    %v492 = vshrl.u32 %v491, 7
    %v493 = vsub.s32 0, %v492
    %v494 = vrot.slane %v363, %v493
    %v495 = vmul.f32 %v482, %v494
    %v496 = vadd.f32 %v443, %v495
    %v497 = vlaneseq
    %v498 = vshrl.u32 %v497, 7
    %v499 = vsub.s32 1, %v498
    %v500 = vrot.slane %v363, %v499
    %v501 = vmul.f32 %v490, %v500
    %v502 = vadd.f32 %v496, %v501
    %503 = vset.pattern.permute.xlu0 2
    %504 = vperm.xlu0 %503, %v365
    %v505 = vpop.permute.xlu0 %504
    %v507 = vlaneseq
    %v508 = vshrl.u32 %v507, 7
    %v509 = vsub.s32 2, %v508
    %v510 = vrot.slane %v386, %v509
    %v511 = vmul.f32 %v505, %v510
    %512 = vset.pattern.permute.xlu0 3
    %513 = vperm.xlu0 %512, %v365
    %v514 = vpop.permute.xlu0 %513
    %v516 = vlaneseq
    %v517 = vshrl.u32 %v516, 7
    %v518 = vsub.s32 3, %v517
    %v519 = vrot.slane %v386, %v518
    %v520 = vmul.f32 %v514, %v519
    %v521 = vadd.f32 %v511, %v520
    %v522 = vsel %vm281, %v521, -inf
    %523 = vmax.xlane.f32.xlu0 %v522
    %v524 = vpop.xlane.xlu0 %523
    %v525 = vsub.f32 %v521, %v524
    %v526 = vmul.f32 %v525, 1.442695
    %v527 = vpow.pop %v526
    %v528 = vsel %vm281, %v527, 0.0
    %529 = vadd.xlane.f32.xlu0 %v528
    %v530 = vpop.xlane.xlu0 %529
    %v531 = vrcp.pop %v530
    %v532 = vmul.f32 %v527, %v531
    %v533 = vlaneseq
    %v534 = vshrl.u32 %v533, 7
    %v535 = vsub.s32 2, %v534
    %v536 = vrot.slane %v421, %v535
    %v537 = vmul.f32 %v532, %v536
    %v538 = vsel %vm281, %v537, 0.0
    %539 = vadd.xlane.f32.xlu0 %v538
    %v540 = vpop.xlane.xlu0 %539
    %v541 = vlaneseq
    %v542 = vshrl.u32 %v541, 7
    %v543 = vsub.s32 3, %v542
    %v544 = vrot.slane %v421, %v543
    %v545 = vmul.f32 %v532, %v544
    %v546 = vsel %vm281, %v545, 0.0
    %547 = vadd.xlane.f32.xlu0 %v546
    %v548 = vpop.xlane.xlu0 %547
    %v549 = vlaneseq
    %v550 = vshrl.u32 %v549, 7
    %v551 = vsub.s32 2, %v550
    %v552 = vrot.slane %v363, %v551
    %v553 = vmul.f32 %v540, %v552
    %v554 = vadd.f32 %v502, %v553
    %v555 = vlaneseq
    %v556 = vshrl.u32 %v555, 7
    %v557 = vsub.s32 3, %v556
    %v558 = vrot.slane %v363, %v557
    %v559 = vmul.f32 %v548, %v558
    %v560 = vadd.f32 %v554, %v559
    %561 = vset.pattern.permute.xlu0 4
    %562 = vperm.xlu0 %561, %v365
    %v563 = vpop.permute.xlu0 %562
    %v565 = vlaneseq
    %v566 = vshrl.u32 %v565, 7
    %v567 = vsub.s32 4, %v566
    %v568 = vrot.slane %v386, %v567
    %v569 = vmul.f32 %v563, %v568
    %570 = vset.pattern.permute.xlu0 5
    %571 = vperm.xlu0 %570, %v365
    %v572 = vpop.permute.xlu0 %571
    %v574 = vlaneseq
    %v575 = vshrl.u32 %v574, 7
    %v576 = vsub.s32 5, %v575
    %v577 = vrot.slane %v386, %v576
    %v578 = vmul.f32 %v572, %v577
    %v579 = vadd.f32 %v569, %v578
    %v580 = vsel %vm281, %v579, -inf
    %581 = vmax.xlane.f32.xlu0 %v580
    %v582 = vpop.xlane.xlu0 %581
    %v583 = vsub.f32 %v579, %v582
    %v584 = vmul.f32 %v583, 1.442695
    %v585 = vpow.pop %v584
    %v586 = vsel %vm281, %v585, 0.0
    %587 = vadd.xlane.f32.xlu0 %v586
    %v588 = vpop.xlane.xlu0 %587
    %v589 = vrcp.pop %v588
    %v590 = vmul.f32 %v585, %v589
    %v591 = vlaneseq
    %v592 = vshrl.u32 %v591, 7
    %v593 = vsub.s32 4, %v592
    %v594 = vrot.slane %v421, %v593
    %v595 = vmul.f32 %v590, %v594
    %v596 = vsel %vm281, %v595, 0.0
    %597 = vadd.xlane.f32.xlu0 %v596
    %v598 = vpop.xlane.xlu0 %597
    %v599 = vlaneseq
    %v600 = vshrl.u32 %v599, 7
    %v601 = vsub.s32 5, %v600
    %v602 = vrot.slane %v421, %v601
    %v603 = vmul.f32 %v590, %v602
    %v604 = vsel %vm281, %v603, 0.0
    %605 = vadd.xlane.f32.xlu0 %v604
    %v606 = vpop.xlane.xlu0 %605
    %v607 = vlaneseq
    %v608 = vshrl.u32 %v607, 7
    %v609 = vsub.s32 4, %v608
    %v610 = vrot.slane %v363, %v609
    %v611 = vmul.f32 %v598, %v610
    %v612 = vadd.f32 %v560, %v611
    %v613 = vlaneseq
    %v614 = vshrl.u32 %v613, 7
    %v615 = vsub.s32 5, %v614
    %v616 = vrot.slane %v363, %v615
    %v617 = vmul.f32 %v606, %v616
    %v618 = vadd.f32 %v612, %v617
    %619 = vset.pattern.permute.xlu0 6
    %620 = vperm.xlu0 %619, %v365
    %v621 = vpop.permute.xlu0 %620
    %v623 = vlaneseq
    %v624 = vshrl.u32 %v623, 7
    %v625 = vsub.s32 6, %v624
    %v626 = vrot.slane %v386, %v625
    %v627 = vmul.f32 %v621, %v626
    %628 = vset.pattern.permute.xlu0 7
    %629 = vperm.xlu0 %628, %v365
    %v630 = vpop.permute.xlu0 %629
    %v632 = vlaneseq
    %v633 = vshrl.u32 %v632, 7
    %v634 = vsub.s32 7, %v633
    %v635 = vrot.slane %v386, %v634
    %v636 = vmul.f32 %v630, %v635
    %v637 = vadd.f32 %v627, %v636
    %v638 = vsel %vm281, %v637, -inf
    %639 = vmax.xlane.f32.xlu0 %v638
    %v640 = vpop.xlane.xlu0 %639
    %v641 = vsub.f32 %v637, %v640
    %v642 = vmul.f32 %v641, 1.442695
    %v643 = vpow.pop %v642
    %v644 = vsel %vm281, %v643, 0.0
    %645 = vadd.xlane.f32.xlu0 %v644
    %v646 = vpop.xlane.xlu0 %645
    %v647 = vrcp.pop %v646
    %v648 = vmul.f32 %v643, %v647
    %v649 = vlaneseq
    %v650 = vshrl.u32 %v649, 7
    %v651 = vsub.s32 6, %v650
    %v652 = vrot.slane %v421, %v651
    %v653 = vmul.f32 %v648, %v652
    %v654 = vsel %vm281, %v653, 0.0
    %655 = vadd.xlane.f32.xlu0 %v654
    %v656 = vpop.xlane.xlu0 %655
    %v657 = vlaneseq
    %v658 = vshrl.u32 %v657, 7
    %v659 = vsub.s32 7, %v658
    %v660 = vrot.slane %v421, %v659
    %v661 = vmul.f32 %v648, %v660
    %v662 = vsel %vm281, %v661, 0.0
    %663 = vadd.xlane.f32.xlu0 %v662
    %v664 = vpop.xlane.xlu0 %663
    %v665 = vlaneseq
    %v666 = vshrl.u32 %v665, 7
    %v667 = vsub.s32 6, %v666
    %v668 = vrot.slane %v363, %v667
    %v669 = vmul.f32 %v656, %v668
    %v670 = vadd.f32 %v618, %v669
    %v671 = vlaneseq
    %v672 = vshrl.u32 %v671, 7
    %v673 = vsub.s32 7, %v672
    %v674 = vrot.slane %v363, %v673
    %v675 = vmul.f32 %v664, %v674
    %v676 = vadd.f32 %v670, %v675
    %vm677 = vcmask 57344
    %678 = vst.msk [vmem:[#allocation2] sm:$0x1] %vm677, %v676
    %vm679 = vcmask 58369
    %680 = vst.msk [vmem:[#allocation2 + $0x1] sm:$0x2] %vm679, %v676
    %vm681 = vcmask 59394
    %682 = vst.msk [vmem:[#allocation2 + $0x2] sm:$0x4] %vm681, %v676
    %vm683 = vcmask 60419
    %684 = vst.msk [vmem:[#allocation2 + $0x3] sm:$0x8] %vm683, %v676
    %vm685 = vcmask 61444
    %686 = vst.msk [vmem:[#allocation2 + $0x4] sm:$0x10] %vm685, %v676
    %vm687 = vcmask 62469
    %688 = vst.msk [vmem:[#allocation2 + $0x5] sm:$0x20] %vm687, %v676
    %vm689 = vcmask 63494
    %690 = vst.msk [vmem:[#allocation2 + $0x6] sm:$0x40] %vm689, %v676
    %vm691 = vcmask 64519
    %692 = vst.msk [vmem:[#allocation2 + $0x7] sm:$0x80] %vm691, %v676
    %v693 = vmul.f32 %v360, 0.70710677
    %695 = vrot.lane.b32.xlu0 %v360, 120
    %v696 = vpop.permute.xlu0 %695
    %698 = vxpose.xlu0.b32.start [1/16] %v696, 128
    %699 = vxpose.xlu0.b32.cont [2/16] 0.0, 128
    %700 = vxpose.xlu0.b32.cont [3/16] 0.0, 128
    %701 = vxpose.xlu0.b32.cont [4/16] 0.0, 128
    %702 = vxpose.xlu0.b32.cont [5/16] 0.0, 128
    %703 = vxpose.xlu0.b32.cont [6/16] 0.0, 128
    %704 = vxpose.xlu0.b32.cont [7/16] 0.0, 128
    %705 = vxpose.xlu0.b32.cont [8/16] 0.0, 128
    %706 = vxpose.xlu0.b32.cont [9/16] 0.0, 128
    %707 = vxpose.xlu0.b32.cont [10/16] 0.0, 128
    %708 = vxpose.xlu0.b32.cont [11/16] 0.0, 128
    %709 = vxpose.xlu0.b32.cont [12/16] 0.0, 128
    %710 = vxpose.xlu0.b32.cont [13/16] 0.0, 128
    %711 = vxpose.xlu0.b32.cont [14/16] 0.0, 128
    %712 = vxpose.xlu0.b32.cont [15/16] 0.0, 128
    %713 = vxpose.xlu0.b32.end [16/16] 0.0, 128
    %v714 = vpop.trf.xlu0
    %v715 = vpop.trf.xlu0
    %v716 = vpop.trf.xlu0
    %v717 = vpop.trf.xlu0
    %v718 = vpop.trf.xlu0
    %v719 = vpop.trf.xlu0
    %v720 = vpop.trf.xlu0
    %v721 = vpop.trf.xlu0
    %v722 = vpop.trf.xlu0
    %v723 = vpop.trf.xlu0
    %v724 = vpop.trf.xlu0
    %v725 = vpop.trf.xlu0
    %v726 = vpop.trf.xlu0
    %v727 = vpop.trf.xlu0
    %v728 = vpop.trf.xlu0
    %v729 = vpop.trf.xlu0
    %730 = vrot.lane.b32.xlu0 %v360, 112
    %v731 = vpop.permute.xlu0 %730
    %733 = vxpose.xlu0.b32.start [1/16] %v731, 128
    %734 = vxpose.xlu0.b32.cont [2/16] 0.0, 128
    %735 = vxpose.xlu0.b32.cont [3/16] 0.0, 128
    %736 = vxpose.xlu0.b32.cont [4/16] 0.0, 128
    %737 = vxpose.xlu0.b32.cont [5/16] 0.0, 128
    %738 = vxpose.xlu0.b32.cont [6/16] 0.0, 128
    %739 = vxpose.xlu0.b32.cont [7/16] 0.0, 128
    %740 = vxpose.xlu0.b32.cont [8/16] 0.0, 128
    %741 = vxpose.xlu0.b32.cont [9/16] 0.0, 128
    %742 = vxpose.xlu0.b32.cont [10/16] 0.0, 128
    %743 = vxpose.xlu0.b32.cont [11/16] 0.0, 128
    %744 = vxpose.xlu0.b32.cont [12/16] 0.0, 128
    %745 = vxpose.xlu0.b32.cont [13/16] 0.0, 128
    %746 = vxpose.xlu0.b32.cont [14/16] 0.0, 128
    %747 = vxpose.xlu0.b32.cont [15/16] 0.0, 128
    %748 = vxpose.xlu0.b32.end [16/16] 0.0, 128
    %v749 = vpop.trf.xlu0
    %v750 = vpop.trf.xlu0
    %v751 = vpop.trf.xlu0
    %v752 = vpop.trf.xlu0
    %v753 = vpop.trf.xlu0
    %v754 = vpop.trf.xlu0
    %v755 = vpop.trf.xlu0
    %v756 = vpop.trf.xlu0
    %v757 = vpop.trf.xlu0
    %v758 = vpop.trf.xlu0
    %v759 = vpop.trf.xlu0
    %v760 = vpop.trf.xlu0
    %v761 = vpop.trf.xlu0
    %v762 = vpop.trf.xlu0
    %v763 = vpop.trf.xlu0
    %v764 = vpop.trf.xlu0
    %v765 = vadd.f32 %v441, %v257
    %767 = vset.pattern.permute.xlu0 0
    %768 = vperm.xlu0 %767, %v693
    %v769 = vpop.permute.xlu0 %768
    %v771 = vlaneseq
    %v772 = vshrl.u32 %v771, 7
    %v773 = vsub.s32 0, %v772
    %v774 = vrot.slane %v714, %v773
    %v775 = vmul.f32 %v769, %v774
    %776 = vset.pattern.permute.xlu0 1
    %777 = vperm.xlu0 %776, %v693
    %v778 = vpop.permute.xlu0 %777
    %v780 = vlaneseq
    %v781 = vshrl.u32 %v780, 7
    %v782 = vsub.s32 1, %v781
    %v783 = vrot.slane %v714, %v782
    %v784 = vmul.f32 %v778, %v783
    %v785 = vadd.f32 %v775, %v784
    %v786 = vsel %vm281, %v785, -inf
    %787 = vmax.xlane.f32.xlu0 %v786
    %v788 = vpop.xlane.xlu0 %787
    %v789 = vsub.f32 %v785, %v788
    %v790 = vmul.f32 %v789, 1.442695
    %v791 = vpow.pop %v790
    %v792 = vsel %vm281, %v791, 0.0
    %793 = vadd.xlane.f32.xlu0 %v792
    %v794 = vpop.xlane.xlu0 %793
    %v795 = vrcp.pop %v794
    %v796 = vmul.f32 %v791, %v795
    %v797 = vlaneseq
    %v798 = vshrl.u32 %v797, 7
    %v799 = vsub.s32 0, %v798
    %v800 = vrot.slane %v749, %v799
    %v801 = vmul.f32 %v796, %v800
    %v802 = vsel %vm281, %v801, 0.0
    %803 = vadd.xlane.f32.xlu0 %v802
    %v804 = vpop.xlane.xlu0 %803
    %v805 = vlaneseq
    %v806 = vshrl.u32 %v805, 7
    %v807 = vsub.s32 1, %v806
    %v808 = vrot.slane %v749, %v807
    %v809 = vmul.f32 %v796, %v808
    %v810 = vsel %vm281, %v809, 0.0
    %811 = vadd.xlane.f32.xlu0 %v810
    %v812 = vpop.xlane.xlu0 %811
    %v813 = vmul.f32 %v804, %v494
    %v814 = vadd.f32 %v765, %v813
    %v815 = vmul.f32 %v812, %v500
    %v816 = vadd.f32 %v814, %v815
    %817 = vset.pattern.permute.xlu0 2
    %818 = vperm.xlu0 %817, %v693
    %v819 = vpop.permute.xlu0 %818
    %v821 = vlaneseq
    %v822 = vshrl.u32 %v821, 7
    %v823 = vsub.s32 2, %v822
    %v824 = vrot.slane %v714, %v823
    %v825 = vmul.f32 %v819, %v824
    %826 = vset.pattern.permute.xlu0 3
    %827 = vperm.xlu0 %826, %v693
    %v828 = vpop.permute.xlu0 %827
    %v830 = vlaneseq
    %v831 = vshrl.u32 %v830, 7
    %v832 = vsub.s32 3, %v831
    %v833 = vrot.slane %v714, %v832
    %v834 = vmul.f32 %v828, %v833
    %v835 = vadd.f32 %v825, %v834
    %v836 = vsel %vm281, %v835, -inf
    %837 = vmax.xlane.f32.xlu0 %v836
    %v838 = vpop.xlane.xlu0 %837
    %v839 = vsub.f32 %v835, %v838
    %v840 = vmul.f32 %v839, 1.442695
    %v841 = vpow.pop %v840
    %v842 = vsel %vm281, %v841, 0.0
    %843 = vadd.xlane.f32.xlu0 %v842
    %v844 = vpop.xlane.xlu0 %843
    %v845 = vrcp.pop %v844
    %v846 = vmul.f32 %v841, %v845
    %v847 = vlaneseq
    %v848 = vshrl.u32 %v847, 7
    %v849 = vsub.s32 2, %v848
    %v850 = vrot.slane %v749, %v849
    %v851 = vmul.f32 %v846, %v850
    %v852 = vsel %vm281, %v851, 0.0
    %853 = vadd.xlane.f32.xlu0 %v852
    %v854 = vpop.xlane.xlu0 %853
    %v855 = vlaneseq
    %v856 = vshrl.u32 %v855, 7
    %v857 = vsub.s32 3, %v856
    %v858 = vrot.slane %v749, %v857
    %v859 = vmul.f32 %v846, %v858
    %v860 = vsel %vm281, %v859, 0.0
    %861 = vadd.xlane.f32.xlu0 %v860
    %v862 = vpop.xlane.xlu0 %861
    %v863 = vmul.f32 %v854, %v552
    %v864 = vadd.f32 %v816, %v863
    %v865 = vmul.f32 %v862, %v558
    %v866 = vadd.f32 %v864, %v865
    %867 = vset.pattern.permute.xlu0 4
    %868 = vperm.xlu0 %867, %v693
    %v869 = vpop.permute.xlu0 %868
    %v871 = vlaneseq
    %v872 = vshrl.u32 %v871, 7
    %v873 = vsub.s32 4, %v872
    %v874 = vrot.slane %v714, %v873
    %v875 = vmul.f32 %v869, %v874
    %876 = vset.pattern.permute.xlu0 5
    %877 = vperm.xlu0 %876, %v693
    %v878 = vpop.permute.xlu0 %877
    %v880 = vlaneseq
    %v881 = vshrl.u32 %v880, 7
    %v882 = vsub.s32 5, %v881
    %v883 = vrot.slane %v714, %v882
    %v884 = vmul.f32 %v878, %v883
    %v885 = vadd.f32 %v875, %v884
    %v886 = vsel %vm281, %v885, -inf
    %887 = vmax.xlane.f32.xlu0 %v886
    %v888 = vpop.xlane.xlu0 %887
    %v889 = vsub.f32 %v885, %v888
    %v890 = vmul.f32 %v889, 1.442695
    %v891 = vpow.pop %v890
    %v892 = vsel %vm281, %v891, 0.0
    %893 = vadd.xlane.f32.xlu0 %v892
    %v894 = vpop.xlane.xlu0 %893
    %v895 = vrcp.pop %v894
    %v896 = vmul.f32 %v891, %v895
    %v897 = vlaneseq
    %v898 = vshrl.u32 %v897, 7
    %v899 = vsub.s32 4, %v898
    %v900 = vrot.slane %v749, %v899
    %v901 = vmul.f32 %v896, %v900
    %v902 = vsel %vm281, %v901, 0.0
    %903 = vadd.xlane.f32.xlu0 %v902
    %v904 = vpop.xlane.xlu0 %903
    %v905 = vlaneseq
    %v906 = vshrl.u32 %v905, 7
    %v907 = vsub.s32 5, %v906
    %v908 = vrot.slane %v749, %v907
    %v909 = vmul.f32 %v896, %v908
    %v910 = vsel %vm281, %v909, 0.0
    %911 = vadd.xlane.f32.xlu0 %v910
    %v912 = vpop.xlane.xlu0 %911
    %v913 = vmul.f32 %v904, %v610
    %v914 = vadd.f32 %v866, %v913
    %v915 = vmul.f32 %v912, %v616
    %v916 = vadd.f32 %v914, %v915
    %917 = vset.pattern.permute.xlu0 6
    %918 = vperm.xlu0 %917, %v693
    %v919 = vpop.permute.xlu0 %918
    %v921 = vlaneseq
    %v922 = vshrl.u32 %v921, 7
    %v923 = vsub.s32 6, %v922
    %v924 = vrot.slane %v714, %v923
    %v925 = vmul.f32 %v919, %v924
    %926 = vset.pattern.permute.xlu0 7
    %927 = vperm.xlu0 %926, %v693
    %v928 = vpop.permute.xlu0 %927
    %v930 = vlaneseq
    %v931 = vshrl.u32 %v930, 7
    %v932 = vsub.s32 7, %v931
    %v933 = vrot.slane %v714, %v932
    %v934 = vmul.f32 %v928, %v933
    %v935 = vadd.f32 %v925, %v934
    %v936 = vsel %vm281, %v935, -inf
    %937 = vmax.xlane.f32.xlu0 %v936
    %v938 = vpop.xlane.xlu0 %937
    %v939 = vsub.f32 %v935, %v938
    %v940 = vmul.f32 %v939, 1.442695
    %v941 = vpow.pop %v940
    %v942 = vsel %vm281, %v941, 0.0
    %943 = vadd.xlane.f32.xlu0 %v942
    %v944 = vpop.xlane.xlu0 %943
    %v945 = vrcp.pop %v944
    %v946 = vmul.f32 %v941, %v945
    %v947 = vlaneseq
    %v948 = vshrl.u32 %v947, 7
    %v949 = vsub.s32 6, %v948
    %v950 = vrot.slane %v749, %v949
    %v951 = vmul.f32 %v946, %v950
    %v952 = vsel %vm281, %v951, 0.0
    %953 = vadd.xlane.f32.xlu0 %v952
    %v954 = vpop.xlane.xlu0 %953
    %v955 = vlaneseq
    %v956 = vshrl.u32 %v955, 7
    %v957 = vsub.s32 7, %v956
    %v958 = vrot.slane %v749, %v957
    %v959 = vmul.f32 %v946, %v958
    %v960 = vsel %vm281, %v959, 0.0
    %961 = vadd.xlane.f32.xlu0 %v960
    %v962 = vpop.xlane.xlu0 %961
    %v963 = vmul.f32 %v954, %v668
    %v964 = vadd.f32 %v916, %v963
    %v965 = vmul.f32 %v962, %v674
    %v966 = vadd.f32 %v964, %v965
    %967 = vst.msk [vmem:[#allocation2 + $0x1] sm:$0x1] %vm677, %v966
    %968 = vst.msk [vmem:[#allocation2 + $0x2] sm:$0x2] %vm679, %v966
    %969 = vst.msk [vmem:[#allocation2 + $0x3] sm:$0x4] %vm681, %v966
    %970 = vst.msk [vmem:[#allocation2 + $0x4] sm:$0x8] %vm683, %v966
    %971 = vst.msk [vmem:[#allocation2 + $0x5] sm:$0x10] %vm685, %v966
    %972 = vst.msk [vmem:[#allocation2 + $0x6] sm:$0x20] %vm687, %v966
    %973 = vst.msk [vmem:[#allocation2 + $0x7] sm:$0x40] %vm689, %v966
    %974 = vst.msk [vmem:[#allocation2 + $0x8] sm:$0x80] %vm691, %v966
    %v975 = vld [vmem:[#allocation2] sm:$0xff]
    %v976 = vld [vmem:[#allocation2 + $0x8] sm:$0xff]
    %v977 = vld [vmem:[#allocation8] sm:$0xff]
    %v978 = vld [vmem:[#allocation8 + $0x8] sm:$0xff]
    %v979 = vld [vmem:[#allocation10] sm:$0x3]
    %v981 = vlaneseq
    %v982 = vshrl.u32 %v981, 7
    %v983 = vsub.s32 0, %v982
    %v984 = vrot.slane %v979, %v983
    %v985 = vlaneseq
    %v986 = vshrl.u32 %v985, 7
    %v987 = vsub.s32 1, %v986
    %v988 = vrot.slane %v979, %v987
    %v992 = vsel %vm281, %v975, 0
    %v995 = vsel %vm281, %v976, 0
    %997 = vmatprep.subr.mxu0 0.0
    %998 = vmatpush1.msra.mxu0 0.0
    %999 = vmatprep.subr.mxu0 0.0
    %1000 = vmatpush1.msra.mxu0 0.0
    %1001 = vmatprep.subr.mxu0 0.0
    %1002 = vmatpush1.msra.mxu0 0.0
    %1003 = vmatprep.subr.mxu0 0.0
    %1004 = vmatpush1.msra.mxu0 0.0
    %1005 = vmatprep.subr.mxu0 0.0
    %1006 = vmatpush1.msra.mxu0 0.0
    %1007 = vmatprep.subr.mxu0 0.0
    %1008 = vmatpush1.msra.mxu0 0.0
    %1009 = vmatprep.subr.mxu0 0.0
    %1010 = vmatpush1.msra.mxu0 0.0
    %1011 = vmatprep.subr.mxu0 0.0
    %1012 = vmatpush1.msra.mxu0 0.0
    %1013 = vmatprep.subr.mxu0 0.0
    %1014 = vmatpush1.msra.mxu0 0.0
    %1015 = vmatprep.subr.mxu0 0.0
    %1016 = vmatpush1.msra.mxu0 0.0
    %1017 = vmatprep.subr.mxu0 0.0
    %1018 = vmatpush1.msra.mxu0 0.0
    %1019 = vmatprep.subr.mxu0 0.0
    %1020 = vmatpush1.msra.mxu0 0.0
    %1021 = vmatprep.subr.mxu0 0.0
    %1022 = vmatpush1.msra.mxu0 0.0
    %1023 = vmatprep.subr.mxu0 0.0
    %1024 = vmatpush1.msra.mxu0 0.0
    %1025 = vmatprep.subr.mxu0 0.0
    %1026 = vmatpush1.msra.mxu0 0.0
    %1027 = vmatprep.subr.mxu0 %v978
    %1028 = vmatpush1.msra.mxu0 %v977
    %1029 = vmatprep.subr.mxu0 0.0
    %1030 = vmatpush2.msra.mxu0 0.0
    %1031 = vmatprep.subr.mxu0 0.0
    %1032 = vmatpush2.msra.mxu0 0.0
    %1033 = vmatprep.subr.mxu0 0.0
    %1034 = vmatpush2.msra.mxu0 0.0
    %1035 = vmatprep.subr.mxu0 0.0
    %1036 = vmatpush2.msra.mxu0 0.0
    %1037 = vmatprep.subr.mxu0 0.0
    %1038 = vmatpush2.msra.mxu0 0.0
    %1039 = vmatprep.subr.mxu0 0.0
    %1040 = vmatpush2.msra.mxu0 0.0
    %1041 = vmatprep.subr.mxu0 0.0
    %1042 = vmatpush2.msra.mxu0 0.0
    %1043 = vmatprep.subr.mxu0 0.0
    %1044 = vmatpush2.msra.mxu0 0.0
    %1045 = vmatprep.subr.mxu0 0.0
    %1046 = vmatpush2.msra.mxu0 0.0
    %1047 = vmatprep.subr.mxu0 0.0
    %1048 = vmatpush2.msra.mxu0 0.0
    %1049 = vmatprep.subr.mxu0 0.0
    %1050 = vmatpush2.msra.mxu0 0.0
    %1051 = vmatprep.subr.mxu0 0.0
    %1052 = vmatpush2.msra.mxu0 0.0
    %1053 = vmatprep.subr.mxu0 0.0
    %1054 = vmatpush2.msra.mxu0 0.0
    %1055 = vmatprep.subr.mxu0 0.0
    %1056 = vmatpush2.msra.mxu0 0.0
    %1057 = vmatprep.subr.mxu0 0.0
    %1058 = vmatpush2.msra.mxu0 0.0
    %1059 = vmatprep.subr.mxu0 0.0
    %1060 = vmatpush2.msra.mxu0 0.0
    %1061 = vmatprep.mubr.f32.mxu0 0.0
    %1062 = vmatmul.mubr.f32.gmra.mxu0 %v992
    %v1063 = vpop.f32.mrf.mxu0
    %v1064 = vadd.f32 %v984, %v1063
    %v1065 = vpop.f32.mrf.mxu0
    %v1066 = vadd.f32 %v988, %v1065
    %1067 = vmatprep.mubr.f32.mxu0 0.0
    %1068 = vmatmul.mubr.f32.gmra.mxu0 %v995
    %v1069 = vpop.f32.mrf.mxu0
    %v1070 = vadd.f32 %v984, %v1069
    %v1071 = vpop.f32.mrf.mxu0
    %v1072 = vadd.f32 %v988, %v1071
    %1073 = vdwg.mxu0
    %v1074 = vld [vmem:[#allocation11] sm:$0xff]
    %v1075 = vld [vmem:[#allocation11 + $0x8] sm:$0xff]
    %v1076 = vld [vmem:[#allocation14] sm:$0x3]
    %v1078 = vlaneseq
    %v1079 = vshrl.u32 %v1078, 7
    %v1080 = vsub.s32 0, %v1079
    %v1081 = vrot.slane %v1076, %v1080
    %v1082 = vlaneseq
    %v1083 = vshrl.u32 %v1082, 7
    %v1084 = vsub.s32 1, %v1083
    %v1085 = vrot.slane %v1076, %v1084
    %1088 = vmatprep.subr.mxu0 0.0
    %1089 = vmatpush1.msra.mxu0 0.0
    %1090 = vmatprep.subr.mxu0 0.0
    %1091 = vmatpush1.msra.mxu0 0.0
    %1092 = vmatprep.subr.mxu0 0.0
    %1093 = vmatpush1.msra.mxu0 0.0
    %1094 = vmatprep.subr.mxu0 0.0
    %1095 = vmatpush1.msra.mxu0 0.0
    %1096 = vmatprep.subr.mxu0 0.0
    %1097 = vmatpush1.msra.mxu0 0.0
    %1098 = vmatprep.subr.mxu0 0.0
    %1099 = vmatpush1.msra.mxu0 0.0
    %1100 = vmatprep.subr.mxu0 0.0
    %1101 = vmatpush1.msra.mxu0 0.0
    %1102 = vmatprep.subr.mxu0 0.0
    %1103 = vmatpush1.msra.mxu0 0.0
    %1104 = vmatprep.subr.mxu0 0.0
    %1105 = vmatpush1.msra.mxu0 0.0
    %1106 = vmatprep.subr.mxu0 0.0
    %1107 = vmatpush1.msra.mxu0 0.0
    %1108 = vmatprep.subr.mxu0 0.0
    %1109 = vmatpush1.msra.mxu0 0.0
    %1110 = vmatprep.subr.mxu0 0.0
    %1111 = vmatpush1.msra.mxu0 0.0
    %1112 = vmatprep.subr.mxu0 0.0
    %1113 = vmatpush1.msra.mxu0 0.0
    %1114 = vmatprep.subr.mxu0 0.0
    %1115 = vmatpush1.msra.mxu0 0.0
    %1116 = vmatprep.subr.mxu0 0.0
    %1117 = vmatpush1.msra.mxu0 0.0
    %1118 = vmatprep.subr.mxu0 %v1075
    %1119 = vmatpush1.msra.mxu0 %v1074
    %1120 = vmatprep.subr.mxu0 0.0
    %1121 = vmatpush2.msra.mxu0 0.0
    %1122 = vmatprep.subr.mxu0 0.0
    %1123 = vmatpush2.msra.mxu0 0.0
    %1124 = vmatprep.subr.mxu0 0.0
    %1125 = vmatpush2.msra.mxu0 0.0
    %1126 = vmatprep.subr.mxu0 0.0
    %1127 = vmatpush2.msra.mxu0 0.0
    %1128 = vmatprep.subr.mxu0 0.0
    %1129 = vmatpush2.msra.mxu0 0.0
    %1130 = vmatprep.subr.mxu0 0.0
    %1131 = vmatpush2.msra.mxu0 0.0
    %1132 = vmatprep.subr.mxu0 0.0
    %1133 = vmatpush2.msra.mxu0 0.0
    %1134 = vmatprep.subr.mxu0 0.0
    %1135 = vmatpush2.msra.mxu0 0.0
    %1136 = vmatprep.subr.mxu0 0.0
    %1137 = vmatpush2.msra.mxu0 0.0
    %1138 = vmatprep.subr.mxu0 0.0
    %1139 = vmatpush2.msra.mxu0 0.0
    %1140 = vmatprep.subr.mxu0 0.0
    %1141 = vmatpush2.msra.mxu0 0.0
    %1142 = vmatprep.subr.mxu0 0.0
    %1143 = vmatpush2.msra.mxu0 0.0
    %1144 = vmatprep.subr.mxu0 0.0
    %1145 = vmatpush2.msra.mxu0 0.0
    %1146 = vmatprep.subr.mxu0 0.0
    %1147 = vmatpush2.msra.mxu0 0.0
    %1148 = vmatprep.subr.mxu0 0.0
    %1149 = vmatpush2.msra.mxu0 0.0
    %1150 = vmatprep.subr.mxu0 0.0
    %1151 = vmatpush2.msra.mxu0 0.0
    %1152 = vmatprep.mubr.f32.mxu0 0.0
    %1153 = vmatmul.mubr.f32.gmra.mxu0 %v992
    %v1154 = vpop.f32.mrf.mxu0
    %v1155 = vadd.f32 %v1081, %v1154
    %v1156 = vpop.f32.mrf.mxu0
    %v1157 = vadd.f32 %v1085, %v1156
    %1158 = vmatprep.mubr.f32.mxu0 0.0
    %1159 = vmatmul.mubr.f32.gmra.mxu0 %v995
    %v1160 = vpop.f32.mrf.mxu0
    %v1161 = vadd.f32 %v1081, %v1160
    %v1162 = vpop.f32.mrf.mxu0
    %v1163 = vadd.f32 %v1085, %v1162
    %1164 = vdwg.mxu0
    %v1165 = vld [vmem:[%s6] sm:$0xff]
    %v1166 = vld [vmem:[%s6 + $0x8] sm:$0xff]
    %v1167 = vld [vmem:[%s6 + $0x10] sm:$0xff]
    %v1168 = vld [vmem:[%s6 + $0x18] sm:$0xff]
    %v1169 = vld [vmem:[%s6 + $0x20] sm:$0xff]
    %v1170 = vld [vmem:[%s6 + $0x28] sm:$0xff]
    %v1171 = vld [vmem:[%s6 + $0x30] sm:$0xff]
    %v1172 = vld [vmem:[%s6 + $0x38] sm:$0xff]
    %v1173 = vld [vmem:[%s6 + $0x40] sm:$0xff]
    %v1174 = vld [vmem:[%s6 + $0x48] sm:$0xff]
    %v1175 = vld [vmem:[%s6 + $0x50] sm:$0xff]
    %v1176 = vld [vmem:[%s6 + $0x58] sm:$0xff]
    %v1177 = vld [vmem:[%s6 + $0x60] sm:$0xff]
    %v1178 = vld [vmem:[%s6 + $0x68] sm:$0xff]
    %v1179 = vld [vmem:[%s6 + $0x70] sm:$0xff]
    %v1180 = vld [vmem:[%s6 + $0x78] sm:$0xff]
    %v1181 = vld [vmem:[#allocation13] sm:$0xff]
    %v1182 = vld [vmem:[#allocation13 + $0x8] sm:$0xff]
    %v1183 = vld [vmem:[#allocation13 + $0x10] sm:$0xff]
    %v1184 = vld [vmem:[#allocation13 + $0x18] sm:$0xff]
    %v1185 = vld [vmem:[#allocation13 + $0x20] sm:$0xff]
    %v1186 = vld [vmem:[#allocation13 + $0x28] sm:$0xff]
    %v1187 = vld [vmem:[#allocation13 + $0x30] sm:$0xff]
    %v1188 = vld [vmem:[#allocation13 + $0x38] sm:$0xff]
    %v1189 = vld [vmem:[#allocation13 + $0x40] sm:$0xff]
    %v1190 = vld [vmem:[#allocation13 + $0x48] sm:$0xff]
    %v1191 = vld [vmem:[#allocation13 + $0x50] sm:$0xff]
    %v1192 = vld [vmem:[#allocation13 + $0x58] sm:$0xff]
    %v1193 = vld [vmem:[#allocation13 + $0x60] sm:$0xff]
    %v1194 = vld [vmem:[#allocation13 + $0x68] sm:$0xff]
    %v1195 = vld [vmem:[#allocation13 + $0x70] sm:$0xff]
    %v1196 = vld [vmem:[#allocation13 + $0x78] sm:$0xff]
    %v1197 = vxor.u32 %v1064, 2147483648
    %v1198 = vxor.u32 %v1066, 2147483648
    %v1199 = vmul.f32 %v1197, 1.442695
    %v1200 = vpow.pop %v1199
    %v1201 = vmul.f32 %v1198, 1.442695
    %v1202 = vpow.pop %v1201
    %v1203 = vadd.f32 %v1200, 1.0
    %v1204 = vadd.f32 %v1202, 1.0
    %v1205 = vrcp.pop %v1203
    %v1206 = vmul.f32 1.0, %v1205
    %v1207 = vrcp.pop %v1204
    %v1208 = vmul.f32 1.0, %v1207
    %v1209 = vtanh.pop %v1066
    %1211 = vrot.lane.b32.xlu0 %v1209, 64
    %v1212 = vpop.permute.xlu0 %1211
    %v1214 = vmul.f32 %v1206, %v1212
    %v1215 = vtanh.pop %v1214
    %v1216 = vmul.f32 %v1208, %v1215
    %vm1217 = vcmask 517120
    %1218 = vst.msk [vmem:[#allocation3] sm:$0x3] %vm1217, %v1216
    %v1219 = vxor.u32 %v1161, 2147483648
    %v1220 = vxor.u32 %v1163, 2147483648
    %v1221 = vmul.f32 %v1219, 1.442695
    %v1222 = vpow.pop %v1221
    %v1223 = vmul.f32 %v1220, 1.442695
    %v1224 = vpow.pop %v1223
    %v1225 = vadd.f32 %v1222, 1.0
    %v1226 = vadd.f32 %v1224, 1.0
    %v1227 = vrcp.pop %v1225
    %v1228 = vmul.f32 1.0, %v1227
    %v1229 = vrcp.pop %v1226
    %v1230 = vmul.f32 1.0, %v1229
    %v1231 = vtanh.pop %v1163
    %1233 = vrot.lane.b32.xlu0 %v1231, 64
    %v1234 = vpop.permute.xlu0 %1233
    %v1236 = vmul.f32 %v1228, %v1234
    %v1237 = vtanh.pop %v1236
    %v1238 = vmul.f32 %v1230, %v1237
    %vm1239 = vcmask 523270
    %1240 = vst.msk [vmem:[#allocation4 + $0x8] sm:$0xc0] %vm1239, %v1238
    %vm1241 = vcmask 523264
    %v1243 = vsel %vm1241, %v1216, 0
    %1245 = vmatprep.subr.mxu0 0.0
    %1246 = vmatpush1.msra.mxu0 0.0
    %1247 = vmatprep.subr.mxu0 0.0
    %1248 = vmatpush1.msra.mxu0 0.0
    %1249 = vmatprep.subr.mxu0 0.0
    %1250 = vmatpush1.msra.mxu0 0.0
    %1251 = vmatprep.subr.mxu0 0.0
    %1252 = vmatpush1.msra.mxu0 0.0
    %1253 = vmatprep.subr.mxu0 0.0
    %1254 = vmatpush1.msra.mxu0 0.0
    %1255 = vmatprep.subr.mxu0 0.0
    %1256 = vmatpush1.msra.mxu0 0.0
    %1257 = vmatprep.subr.mxu0 0.0
    %1258 = vmatpush1.msra.mxu0 0.0
    %1259 = vmatprep.subr.mxu0 0.0
    %1260 = vmatpush1.msra.mxu0 0.0
    %1261 = vmatprep.subr.mxu0 %v1180
    %1262 = vmatpush1.msra.mxu0 %v1179
    %1263 = vmatprep.subr.mxu0 %v1178
    %1264 = vmatpush1.msra.mxu0 %v1177
    %1265 = vmatprep.subr.mxu0 %v1176
    %1266 = vmatpush1.msra.mxu0 %v1175
    %1267 = vmatprep.subr.mxu0 %v1174
    %1268 = vmatpush1.msra.mxu0 %v1173
    %1269 = vmatprep.subr.mxu0 %v1172
    %1270 = vmatpush1.msra.mxu0 %v1171
    %1271 = vmatprep.subr.mxu0 %v1170
    %1272 = vmatpush1.msra.mxu0 %v1169
    %1273 = vmatprep.subr.mxu0 %v1168
    %1274 = vmatpush1.msra.mxu0 %v1167
    %1275 = vmatprep.subr.mxu0 %v1166
    %1276 = vmatpush1.msra.mxu0 %v1165
    %1277 = vmatprep.subr.mxu0 0.0
    %1278 = vmatpush2.msra.mxu0 0.0
    %1279 = vmatprep.subr.mxu0 0.0
    %1280 = vmatpush2.msra.mxu0 0.0
    %1281 = vmatprep.subr.mxu0 0.0
    %1282 = vmatpush2.msra.mxu0 0.0
    %1283 = vmatprep.subr.mxu0 0.0
    %1284 = vmatpush2.msra.mxu0 0.0
    %1285 = vmatprep.subr.mxu0 0.0
    %1286 = vmatpush2.msra.mxu0 0.0
    %1287 = vmatprep.subr.mxu0 0.0
    %1288 = vmatpush2.msra.mxu0 0.0
    %1289 = vmatprep.subr.mxu0 0.0
    %1290 = vmatpush2.msra.mxu0 0.0
    %1291 = vmatprep.subr.mxu0 0.0
    %1292 = vmatpush2.msra.mxu0 0.0
    %1293 = vmatprep.subr.mxu0 0.0
    %1294 = vmatpush2.msra.mxu0 0.0
    %1295 = vmatprep.subr.mxu0 0.0
    %1296 = vmatpush2.msra.mxu0 0.0
    %1297 = vmatprep.subr.mxu0 0.0
    %1298 = vmatpush2.msra.mxu0 0.0
    %1299 = vmatprep.subr.mxu0 0.0
    %1300 = vmatpush2.msra.mxu0 0.0
    %1301 = vmatprep.subr.mxu0 0.0
    %1302 = vmatpush2.msra.mxu0 0.0
    %1303 = vmatprep.subr.mxu0 0.0
    %1304 = vmatpush2.msra.mxu0 0.0
    %1305 = vmatprep.subr.mxu0 0.0
    %1306 = vmatpush2.msra.mxu0 0.0
    %1307 = vmatprep.subr.mxu0 0.0
    %1308 = vmatpush2.msra.mxu0 0.0
    %1309 = vmatprep.mubr.f32.mxu0 0.0
    %1310 = vmatmul.mubr.f32.gmra.mxu0 %v1243
    %v1311 = vpop.f32.mrf.mxu0
    %v1312 = vadd.f32 0.0, %v1311
    %v1313 = vpop.f32.mrf.mxu0
    %v1314 = vadd.f32 0.0, %v1313
    %1315 = vdwg.mxu0
    %v1318 = vrot.slane %v1312, 6
    %v1319 = vrot.slane %v1314, 6
    %v1322 = vadd.f32 %v1064, %v1318
    %v1323 = vadd.f32 %v1066, %v1319
    %v1324 = vxor.u32 %v1322, 2147483648
    %v1325 = vxor.u32 %v1323, 2147483648
    %v1326 = vmul.f32 %v1324, 1.442695
    %v1327 = vpow.pop %v1326
    %v1328 = vmul.f32 %v1325, 1.442695
    %v1329 = vpow.pop %v1328
    %v1330 = vadd.f32 %v1327, 1.0
    %v1331 = vadd.f32 %v1329, 1.0
    %v1332 = vrcp.pop %v1330
    %v1333 = vmul.f32 1.0, %v1332
    %v1334 = vrcp.pop %v1331
    %v1335 = vmul.f32 1.0, %v1334
    %v1336 = vtanh.pop %v1323
    %v1338 = vrot.slane %v1214, 6
    %1339 = vrot.lane.b32.xlu0 %v1338, 64
    %v1340 = vpop.permute.xlu0 %1339
    %v1342 = vmul.f32 %v1333, %v1340
    %1344 = vrot.lane.b32.xlu0 %v1336, 64
    %v1345 = vpop.permute.xlu0 %1344
    %v1347 = vmul.f32 %v1333, %v1345
    %1349 = vrot.lane.b32.xlu0 %v1347, 64
    %v1350 = vpop.permute.xlu0 %1349
    %v1352 = vadd.f32 %v1342, %v1350
    %v1353 = vtanh.pop %v1352
    %1355 = vrot.lane.b32.xlu0 %v1353, 64
    %v1356 = vpop.permute.xlu0 %1355
    %v1358 = vmul.f32 %v1335, %v1356
    %vm1359 = vcmask 519170
    %1360 = vst.msk [vmem:[#allocation3] sm:$0xc] %vm1359, %v1358
    %v1362 = vrot.slane %v1238, 6
    %v1363 = vsel %vm1241, %v1362, 0
    %1365 = vmatprep.subr.mxu0 0.0
    %1366 = vmatpush1.msra.mxu0 0.0
    %1367 = vmatprep.subr.mxu0 0.0
    %1368 = vmatpush1.msra.mxu0 0.0
    %1369 = vmatprep.subr.mxu0 0.0
    %1370 = vmatpush1.msra.mxu0 0.0
    %1371 = vmatprep.subr.mxu0 0.0
    %1372 = vmatpush1.msra.mxu0 0.0
    %1373 = vmatprep.subr.mxu0 0.0
    %1374 = vmatpush1.msra.mxu0 0.0
    %1375 = vmatprep.subr.mxu0 0.0
    %1376 = vmatpush1.msra.mxu0 0.0
    %1377 = vmatprep.subr.mxu0 0.0
    %1378 = vmatpush1.msra.mxu0 0.0
    %1379 = vmatprep.subr.mxu0 0.0
    %1380 = vmatpush1.msra.mxu0 0.0
    %1381 = vmatprep.subr.mxu0 %v1196
    %1382 = vmatpush1.msra.mxu0 %v1195
    %1383 = vmatprep.subr.mxu0 %v1194
    %1384 = vmatpush1.msra.mxu0 %v1193
    %1385 = vmatprep.subr.mxu0 %v1192
    %1386 = vmatpush1.msra.mxu0 %v1191
    %1387 = vmatprep.subr.mxu0 %v1190
    %1388 = vmatpush1.msra.mxu0 %v1189
    %1389 = vmatprep.subr.mxu0 %v1188
    %1390 = vmatpush1.msra.mxu0 %v1187
    %1391 = vmatprep.subr.mxu0 %v1186
    %1392 = vmatpush1.msra.mxu0 %v1185
    %1393 = vmatprep.subr.mxu0 %v1184
    %1394 = vmatpush1.msra.mxu0 %v1183
    %1395 = vmatprep.subr.mxu0 %v1182
    %1396 = vmatpush1.msra.mxu0 %v1181
    %1397 = vmatprep.subr.mxu0 0.0
    %1398 = vmatpush2.msra.mxu0 0.0
    %1399 = vmatprep.subr.mxu0 0.0
    %1400 = vmatpush2.msra.mxu0 0.0
    %1401 = vmatprep.subr.mxu0 0.0
    %1402 = vmatpush2.msra.mxu0 0.0
    %1403 = vmatprep.subr.mxu0 0.0
    %1404 = vmatpush2.msra.mxu0 0.0
    %1405 = vmatprep.subr.mxu0 0.0
    %1406 = vmatpush2.msra.mxu0 0.0
    %1407 = vmatprep.subr.mxu0 0.0
    %1408 = vmatpush2.msra.mxu0 0.0
    %1409 = vmatprep.subr.mxu0 0.0
    %1410 = vmatpush2.msra.mxu0 0.0
    %1411 = vmatprep.subr.mxu0 0.0
    %1412 = vmatpush2.msra.mxu0 0.0
    %1413 = vmatprep.subr.mxu0 0.0
    %1414 = vmatpush2.msra.mxu0 0.0
    %1415 = vmatprep.subr.mxu0 0.0
    %1416 = vmatpush2.msra.mxu0 0.0
    %1417 = vmatprep.subr.mxu0 0.0
    %1418 = vmatpush2.msra.mxu0 0.0
    %1419 = vmatprep.subr.mxu0 0.0
    %1420 = vmatpush2.msra.mxu0 0.0
    %1421 = vmatprep.subr.mxu0 0.0
    %1422 = vmatpush2.msra.mxu0 0.0
    %1423 = vmatprep.subr.mxu0 0.0
    %1424 = vmatpush2.msra.mxu0 0.0
    %1425 = vmatprep.subr.mxu0 0.0
    %1426 = vmatpush2.msra.mxu0 0.0
    %1427 = vmatprep.subr.mxu0 0.0
    %1428 = vmatpush2.msra.mxu0 0.0
    %1429 = vmatprep.mubr.f32.mxu0 0.0
    %1430 = vmatmul.mubr.f32.gmra.mxu0 %v1363
    %v1431 = vpop.f32.mrf.mxu0
    %v1432 = vadd.f32 0.0, %v1431
    %v1433 = vpop.f32.mrf.mxu0
    %v1434 = vadd.f32 0.0, %v1433
    %1435 = vdwg.mxu0
    %v1438 = vrot.slane %v1432, 4
    %v1439 = vrot.slane %v1434, 4
    %v1442 = vadd.f32 %v1161, %v1438
    %v1443 = vadd.f32 %v1163, %v1439
    %v1444 = vxor.u32 %v1442, 2147483648
    %v1445 = vxor.u32 %v1443, 2147483648
    %v1446 = vmul.f32 %v1444, 1.442695
    %v1447 = vpow.pop %v1446
    %v1448 = vmul.f32 %v1445, 1.442695
    %v1449 = vpow.pop %v1448
    %v1450 = vadd.f32 %v1447, 1.0
    %v1451 = vadd.f32 %v1449, 1.0
    %v1452 = vrcp.pop %v1450
    %v1453 = vmul.f32 1.0, %v1452
    %v1454 = vrcp.pop %v1451
    %v1455 = vmul.f32 1.0, %v1454
    %v1456 = vtanh.pop %v1443
    %v1458 = vrot.slane %v1236, 2
    %1459 = vrot.lane.b32.xlu0 %v1458, 64
    %v1460 = vpop.permute.xlu0 %1459
    %v1462 = vmul.f32 %v1453, %v1460
    %1464 = vrot.lane.b32.xlu0 %v1456, 64
    %v1465 = vpop.permute.xlu0 %1464
    %v1467 = vmul.f32 %v1453, %v1465
    %1469 = vrot.lane.b32.xlu0 %v1467, 64
    %v1470 = vpop.permute.xlu0 %1469
    %v1472 = vadd.f32 %v1462, %v1470
    %v1473 = vtanh.pop %v1472
    %1475 = vrot.lane.b32.xlu0 %v1473, 64
    %v1476 = vpop.permute.xlu0 %1475
    %v1478 = vmul.f32 %v1455, %v1476
    %vm1479 = vcmask 521220
    %1480 = vst.msk [vmem:[#allocation4 + $0x8] sm:$0x30] %vm1479, %v1478
    %v1482 = vrot.slane %v1358, 2
    %v1483 = vsel %vm1241, %v1482, 0
    %1485 = vmatprep.subr.mxu0 0.0
    %1486 = vmatpush1.msra.mxu0 0.0
    %1487 = vmatprep.subr.mxu0 0.0
    %1488 = vmatpush1.msra.mxu0 0.0
    %1489 = vmatprep.subr.mxu0 0.0
    %1490 = vmatpush1.msra.mxu0 0.0
    %1491 = vmatprep.subr.mxu0 0.0
    %1492 = vmatpush1.msra.mxu0 0.0
    %1493 = vmatprep.subr.mxu0 0.0
    %1494 = vmatpush1.msra.mxu0 0.0
    %1495 = vmatprep.subr.mxu0 0.0
    %1496 = vmatpush1.msra.mxu0 0.0
    %1497 = vmatprep.subr.mxu0 0.0
    %1498 = vmatpush1.msra.mxu0 0.0
    %1499 = vmatprep.subr.mxu0 0.0
    %1500 = vmatpush1.msra.mxu0 0.0
    %1501 = vmatprep.subr.mxu0 %v1180
    %1502 = vmatpush1.msra.mxu0 %v1179
    %1503 = vmatprep.subr.mxu0 %v1178
    %1504 = vmatpush1.msra.mxu0 %v1177
    %1505 = vmatprep.subr.mxu0 %v1176
    %1506 = vmatpush1.msra.mxu0 %v1175
    %1507 = vmatprep.subr.mxu0 %v1174
    %1508 = vmatpush1.msra.mxu0 %v1173
    %1509 = vmatprep.subr.mxu0 %v1172
    %1510 = vmatpush1.msra.mxu0 %v1171
    %1511 = vmatprep.subr.mxu0 %v1170
    %1512 = vmatpush1.msra.mxu0 %v1169
    %1513 = vmatprep.subr.mxu0 %v1168
    %1514 = vmatpush1.msra.mxu0 %v1167
    %1515 = vmatprep.subr.mxu0 %v1166
    %1516 = vmatpush1.msra.mxu0 %v1165
    %1517 = vmatprep.subr.mxu0 0.0
    %1518 = vmatpush2.msra.mxu0 0.0
    %1519 = vmatprep.subr.mxu0 0.0
    %1520 = vmatpush2.msra.mxu0 0.0
    %1521 = vmatprep.subr.mxu0 0.0
    %1522 = vmatpush2.msra.mxu0 0.0
    %1523 = vmatprep.subr.mxu0 0.0
    %1524 = vmatpush2.msra.mxu0 0.0
    %1525 = vmatprep.subr.mxu0 0.0
    %1526 = vmatpush2.msra.mxu0 0.0
    %1527 = vmatprep.subr.mxu0 0.0
    %1528 = vmatpush2.msra.mxu0 0.0
    %1529 = vmatprep.subr.mxu0 0.0
    %1530 = vmatpush2.msra.mxu0 0.0
    %1531 = vmatprep.subr.mxu0 0.0
    %1532 = vmatpush2.msra.mxu0 0.0
    %1533 = vmatprep.subr.mxu0 0.0
    %1534 = vmatpush2.msra.mxu0 0.0
    %1535 = vmatprep.subr.mxu0 0.0
    %1536 = vmatpush2.msra.mxu0 0.0
    %1537 = vmatprep.subr.mxu0 0.0
    %1538 = vmatpush2.msra.mxu0 0.0
    %1539 = vmatprep.subr.mxu0 0.0
    %1540 = vmatpush2.msra.mxu0 0.0
    %1541 = vmatprep.subr.mxu0 0.0
    %1542 = vmatpush2.msra.mxu0 0.0
    %1543 = vmatprep.subr.mxu0 0.0
    %1544 = vmatpush2.msra.mxu0 0.0
    %1545 = vmatprep.subr.mxu0 0.0
    %1546 = vmatpush2.msra.mxu0 0.0
    %1547 = vmatprep.subr.mxu0 0.0
    %1548 = vmatpush2.msra.mxu0 0.0
    %1549 = vmatprep.mubr.f32.mxu0 0.0
    %1550 = vmatmul.mubr.f32.gmra.mxu0 %v1483
    %v1551 = vpop.f32.mrf.mxu0
    %v1552 = vadd.f32 0.0, %v1551
    %v1553 = vpop.f32.mrf.mxu0
    %v1554 = vadd.f32 0.0, %v1553
    %1555 = vdwg.mxu0
    %v1558 = vrot.slane %v1552, 4
    %v1559 = vrot.slane %v1554, 4
    %v1562 = vadd.f32 %v1064, %v1558
    %v1563 = vadd.f32 %v1066, %v1559
    %v1564 = vxor.u32 %v1562, 2147483648
    %v1565 = vxor.u32 %v1563, 2147483648
    %v1566 = vmul.f32 %v1564, 1.442695
    %v1567 = vpow.pop %v1566
    %v1568 = vmul.f32 %v1565, 1.442695
    %v1569 = vpow.pop %v1568
    %v1570 = vadd.f32 %v1567, 1.0
    %v1571 = vadd.f32 %v1569, 1.0
    %v1572 = vrcp.pop %v1570
    %v1573 = vmul.f32 1.0, %v1572
    %v1574 = vrcp.pop %v1571
    %v1575 = vmul.f32 1.0, %v1574
    %v1576 = vtanh.pop %v1563
    %v1578 = vrot.slane %v1352, 6
    %v1580 = vmul.f32 %v1573, %v1578
    %1582 = vrot.lane.b32.xlu0 %v1576, 64
    %v1583 = vpop.permute.xlu0 %1582
    %v1585 = vmul.f32 %v1573, %v1583
    %1587 = vrot.lane.b32.xlu0 %v1585, 64
    %v1588 = vpop.permute.xlu0 %1587
    %v1590 = vadd.f32 %v1580, %v1588
    %v1591 = vtanh.pop %v1590
    %1593 = vrot.lane.b32.xlu0 %v1591, 64
    %v1594 = vpop.permute.xlu0 %1593
    %v1596 = vmul.f32 %v1575, %v1594
    %1597 = vst.msk [vmem:[#allocation3] sm:$0x30] %vm1479, %v1596
    %v1599 = vrot.slane %v1478, 4
    %v1600 = vsel %vm1241, %v1599, 0
    %1602 = vmatprep.subr.mxu0 0.0
    %1603 = vmatpush1.msra.mxu0 0.0
    %1604 = vmatprep.subr.mxu0 0.0
    %1605 = vmatpush1.msra.mxu0 0.0
    %1606 = vmatprep.subr.mxu0 0.0
    %1607 = vmatpush1.msra.mxu0 0.0
    %1608 = vmatprep.subr.mxu0 0.0
    %1609 = vmatpush1.msra.mxu0 0.0
    %1610 = vmatprep.subr.mxu0 0.0
    %1611 = vmatpush1.msra.mxu0 0.0
    %1612 = vmatprep.subr.mxu0 0.0
    %1613 = vmatpush1.msra.mxu0 0.0
    %1614 = vmatprep.subr.mxu0 0.0
    %1615 = vmatpush1.msra.mxu0 0.0
    %1616 = vmatprep.subr.mxu0 0.0
    %1617 = vmatpush1.msra.mxu0 0.0
    %1618 = vmatprep.subr.mxu0 %v1196
    %1619 = vmatpush1.msra.mxu0 %v1195
    %1620 = vmatprep.subr.mxu0 %v1194
    %1621 = vmatpush1.msra.mxu0 %v1193
    %1622 = vmatprep.subr.mxu0 %v1192
    %1623 = vmatpush1.msra.mxu0 %v1191
    %1624 = vmatprep.subr.mxu0 %v1190
    %1625 = vmatpush1.msra.mxu0 %v1189
    %1626 = vmatprep.subr.mxu0 %v1188
    %1627 = vmatpush1.msra.mxu0 %v1187
    %1628 = vmatprep.subr.mxu0 %v1186
    %1629 = vmatpush1.msra.mxu0 %v1185
    %1630 = vmatprep.subr.mxu0 %v1184
    %1631 = vmatpush1.msra.mxu0 %v1183
    %1632 = vmatprep.subr.mxu0 %v1182
    %1633 = vmatpush1.msra.mxu0 %v1181
    %1634 = vmatprep.subr.mxu0 0.0
    %1635 = vmatpush2.msra.mxu0 0.0
    %1636 = vmatprep.subr.mxu0 0.0
    %1637 = vmatpush2.msra.mxu0 0.0
    %1638 = vmatprep.subr.mxu0 0.0
    %1639 = vmatpush2.msra.mxu0 0.0
    %1640 = vmatprep.subr.mxu0 0.0
    %1641 = vmatpush2.msra.mxu0 0.0
    %1642 = vmatprep.subr.mxu0 0.0
    %1643 = vmatpush2.msra.mxu0 0.0
    %1644 = vmatprep.subr.mxu0 0.0
    %1645 = vmatpush2.msra.mxu0 0.0
    %1646 = vmatprep.subr.mxu0 0.0
    %1647 = vmatpush2.msra.mxu0 0.0
    %1648 = vmatprep.subr.mxu0 0.0
    %1649 = vmatpush2.msra.mxu0 0.0
    %1650 = vmatprep.subr.mxu0 0.0
    %1651 = vmatpush2.msra.mxu0 0.0
    %1652 = vmatprep.subr.mxu0 0.0
    %1653 = vmatpush2.msra.mxu0 0.0
    %1654 = vmatprep.subr.mxu0 0.0
    %1655 = vmatpush2.msra.mxu0 0.0
    %1656 = vmatprep.subr.mxu0 0.0
    %1657 = vmatpush2.msra.mxu0 0.0
    %1658 = vmatprep.subr.mxu0 0.0
    %1659 = vmatpush2.msra.mxu0 0.0
    %1660 = vmatprep.subr.mxu0 0.0
    %1661 = vmatpush2.msra.mxu0 0.0
    %1662 = vmatprep.subr.mxu0 0.0
    %1663 = vmatpush2.msra.mxu0 0.0
    %1664 = vmatprep.subr.mxu0 0.0
    %1665 = vmatpush2.msra.mxu0 0.0
    %1666 = vmatprep.mubr.f32.mxu0 0.0
    %1667 = vmatmul.mubr.f32.gmra.mxu0 %v1600
    %v1668 = vpop.f32.mrf.mxu0
    %v1669 = vadd.f32 0.0, %v1668
    %v1670 = vpop.f32.mrf.mxu0
    %v1671 = vadd.f32 0.0, %v1670
    %1672 = vdwg.mxu0
    %v1675 = vrot.slane %v1669, 6
    %v1676 = vrot.slane %v1671, 6
    %v1679 = vadd.f32 %v1161, %v1675
    %v1680 = vadd.f32 %v1163, %v1676
    %v1681 = vxor.u32 %v1679, 2147483648
    %v1682 = vxor.u32 %v1680, 2147483648
    %v1683 = vmul.f32 %v1681, 1.442695
    %v1684 = vpow.pop %v1683
    %v1685 = vmul.f32 %v1682, 1.442695
    %v1686 = vpow.pop %v1685
    %v1687 = vadd.f32 %v1684, 1.0
    %v1688 = vadd.f32 %v1686, 1.0
    %v1689 = vrcp.pop %v1687
    %v1690 = vmul.f32 1.0, %v1689
    %v1691 = vrcp.pop %v1688
    %v1692 = vmul.f32 1.0, %v1691
    %v1693 = vtanh.pop %v1680
    %v1695 = vrot.slane %v1472, 2
    %v1697 = vmul.f32 %v1690, %v1695
    %1699 = vrot.lane.b32.xlu0 %v1693, 64
    %v1700 = vpop.permute.xlu0 %1699
    %v1702 = vmul.f32 %v1690, %v1700
    %1704 = vrot.lane.b32.xlu0 %v1702, 64
    %v1705 = vpop.permute.xlu0 %1704
    %v1707 = vadd.f32 %v1697, %v1705
    %v1708 = vtanh.pop %v1707
    %1710 = vrot.lane.b32.xlu0 %v1708, 64
    %v1711 = vpop.permute.xlu0 %1710
    %v1713 = vmul.f32 %v1692, %v1711
    %1714 = vst.msk [vmem:[#allocation4 + $0x8] sm:$0xc] %vm1359, %v1713
    %v1716 = vrot.slane %v1596, 4
    %v1717 = vsel %vm1241, %v1716, 0
    %1719 = vmatprep.subr.mxu0 0.0
    %1720 = vmatpush1.msra.mxu0 0.0
    %1721 = vmatprep.subr.mxu0 0.0
    %1722 = vmatpush1.msra.mxu0 0.0
    %1723 = vmatprep.subr.mxu0 0.0
    %1724 = vmatpush1.msra.mxu0 0.0
    %1725 = vmatprep.subr.mxu0 0.0
    %1726 = vmatpush1.msra.mxu0 0.0
    %1727 = vmatprep.subr.mxu0 0.0
    %1728 = vmatpush1.msra.mxu0 0.0
    %1729 = vmatprep.subr.mxu0 0.0
    %1730 = vmatpush1.msra.mxu0 0.0
    %1731 = vmatprep.subr.mxu0 0.0
    %1732 = vmatpush1.msra.mxu0 0.0
    %1733 = vmatprep.subr.mxu0 0.0
    %1734 = vmatpush1.msra.mxu0 0.0
    %1735 = vmatprep.subr.mxu0 %v1180
    %1736 = vmatpush1.msra.mxu0 %v1179
    %1737 = vmatprep.subr.mxu0 %v1178
    %1738 = vmatpush1.msra.mxu0 %v1177
    %1739 = vmatprep.subr.mxu0 %v1176
    %1740 = vmatpush1.msra.mxu0 %v1175
    %1741 = vmatprep.subr.mxu0 %v1174
    %1742 = vmatpush1.msra.mxu0 %v1173
    %1743 = vmatprep.subr.mxu0 %v1172
    %1744 = vmatpush1.msra.mxu0 %v1171
    %1745 = vmatprep.subr.mxu0 %v1170
    %1746 = vmatpush1.msra.mxu0 %v1169
    %1747 = vmatprep.subr.mxu0 %v1168
    %1748 = vmatpush1.msra.mxu0 %v1167
    %1749 = vmatprep.subr.mxu0 %v1166
    %1750 = vmatpush1.msra.mxu0 %v1165
    %1751 = vmatprep.subr.mxu0 0.0
    %1752 = vmatpush2.msra.mxu0 0.0
    %1753 = vmatprep.subr.mxu0 0.0
    %1754 = vmatpush2.msra.mxu0 0.0
    %1755 = vmatprep.subr.mxu0 0.0
    %1756 = vmatpush2.msra.mxu0 0.0
    %1757 = vmatprep.subr.mxu0 0.0
    %1758 = vmatpush2.msra.mxu0 0.0
    %1759 = vmatprep.subr.mxu0 0.0
    %1760 = vmatpush2.msra.mxu0 0.0
    %1761 = vmatprep.subr.mxu0 0.0
    %1762 = vmatpush2.msra.mxu0 0.0
    %1763 = vmatprep.subr.mxu0 0.0
    %1764 = vmatpush2.msra.mxu0 0.0
    %1765 = vmatprep.subr.mxu0 0.0
    %1766 = vmatpush2.msra.mxu0 0.0
    %1767 = vmatprep.subr.mxu0 0.0
    %1768 = vmatpush2.msra.mxu0 0.0
    %1769 = vmatprep.subr.mxu0 0.0
    %1770 = vmatpush2.msra.mxu0 0.0
    %1771 = vmatprep.subr.mxu0 0.0
    %1772 = vmatpush2.msra.mxu0 0.0
    %1773 = vmatprep.subr.mxu0 0.0
    %1774 = vmatpush2.msra.mxu0 0.0
    %1775 = vmatprep.subr.mxu0 0.0
    %1776 = vmatpush2.msra.mxu0 0.0
    %1777 = vmatprep.subr.mxu0 0.0
    %1778 = vmatpush2.msra.mxu0 0.0
    %1779 = vmatprep.subr.mxu0 0.0
    %1780 = vmatpush2.msra.mxu0 0.0
    %1781 = vmatprep.subr.mxu0 0.0
    %1782 = vmatpush2.msra.mxu0 0.0
    %1783 = vmatprep.mubr.f32.mxu0 0.0
    %1784 = vmatmul.mubr.f32.gmra.mxu0 %v1717
    %v1785 = vpop.f32.mrf.mxu0
    %v1786 = vadd.f32 0.0, %v1785
    %v1787 = vpop.f32.mrf.mxu0
    %v1788 = vadd.f32 0.0, %v1787
    %1789 = vdwg.mxu0
    %v1792 = vrot.slane %v1786, 2
    %v1793 = vrot.slane %v1788, 2
    %v1796 = vadd.f32 %v1064, %v1792
    %v1797 = vadd.f32 %v1066, %v1793
    %v1798 = vxor.u32 %v1796, 2147483648
    %v1799 = vxor.u32 %v1797, 2147483648
    %v1800 = vmul.f32 %v1798, 1.442695
    %v1801 = vpow.pop %v1800
    %v1802 = vmul.f32 %v1799, 1.442695
    %v1803 = vpow.pop %v1802
    %v1804 = vadd.f32 %v1801, 1.0
    %v1805 = vadd.f32 %v1803, 1.0
    %v1806 = vrcp.pop %v1804
    %v1807 = vmul.f32 1.0, %v1806
    %v1808 = vrcp.pop %v1805
    %v1809 = vmul.f32 1.0, %v1808
    %v1810 = vtanh.pop %v1797
    %v1812 = vrot.slane %v1590, 6
    %v1814 = vmul.f32 %v1807, %v1812
    %1816 = vrot.lane.b32.xlu0 %v1810, 64
    %v1817 = vpop.permute.xlu0 %1816
    %v1819 = vmul.f32 %v1807, %v1817
    %1821 = vrot.lane.b32.xlu0 %v1819, 64
    %v1822 = vpop.permute.xlu0 %1821
    %v1824 = vadd.f32 %v1814, %v1822
    %v1825 = vtanh.pop %v1824
    %1827 = vrot.lane.b32.xlu0 %v1825, 64
    %v1828 = vpop.permute.xlu0 %1827
    %v1830 = vmul.f32 %v1809, %v1828
    %1831 = vst.msk [vmem:[#allocation3] sm:$0xc0] %vm1239, %v1830
    %v1833 = vrot.slane %v1713, 2
    %v1834 = vsel %vm1241, %v1833, 0
    %1836 = vmatprep.subr.mxu0 0.0
    %1837 = vmatpush1.msra.mxu0 0.0
    %1838 = vmatprep.subr.mxu0 0.0
    %1839 = vmatpush1.msra.mxu0 0.0
    %1840 = vmatprep.subr.mxu0 0.0
    %1841 = vmatpush1.msra.mxu0 0.0
    %1842 = vmatprep.subr.mxu0 0.0
    %1843 = vmatpush1.msra.mxu0 0.0
    %1844 = vmatprep.subr.mxu0 0.0
    %1845 = vmatpush1.msra.mxu0 0.0
    %1846 = vmatprep.subr.mxu0 0.0
    %1847 = vmatpush1.msra.mxu0 0.0
    %1848 = vmatprep.subr.mxu0 0.0
    %1849 = vmatpush1.msra.mxu0 0.0
    %1850 = vmatprep.subr.mxu0 0.0
    %1851 = vmatpush1.msra.mxu0 0.0
    %1852 = vmatprep.subr.mxu0 %v1196
    %1853 = vmatpush1.msra.mxu0 %v1195
    %1854 = vmatprep.subr.mxu0 %v1194
    %1855 = vmatpush1.msra.mxu0 %v1193
    %1856 = vmatprep.subr.mxu0 %v1192
    %1857 = vmatpush1.msra.mxu0 %v1191
    %1858 = vmatprep.subr.mxu0 %v1190
    %1859 = vmatpush1.msra.mxu0 %v1189
    %1860 = vmatprep.subr.mxu0 %v1188
    %1861 = vmatpush1.msra.mxu0 %v1187
    %1862 = vmatprep.subr.mxu0 %v1186
    %1863 = vmatpush1.msra.mxu0 %v1185
    %1864 = vmatprep.subr.mxu0 %v1184
    %1865 = vmatpush1.msra.mxu0 %v1183
    %1866 = vmatprep.subr.mxu0 %v1182
    %1867 = vmatpush1.msra.mxu0 %v1181
    %1868 = vmatprep.subr.mxu0 0.0
    %1869 = vmatpush2.msra.mxu0 0.0
    %1870 = vmatprep.subr.mxu0 0.0
    %1871 = vmatpush2.msra.mxu0 0.0
    %1872 = vmatprep.subr.mxu0 0.0
    %1873 = vmatpush2.msra.mxu0 0.0
    %1874 = vmatprep.subr.mxu0 0.0
    %1875 = vmatpush2.msra.mxu0 0.0
    %1876 = vmatprep.subr.mxu0 0.0
    %1877 = vmatpush2.msra.mxu0 0.0
    %1878 = vmatprep.subr.mxu0 0.0
    %1879 = vmatpush2.msra.mxu0 0.0
    %1880 = vmatprep.subr.mxu0 0.0
    %1881 = vmatpush2.msra.mxu0 0.0
    %1882 = vmatprep.subr.mxu0 0.0
    %1883 = vmatpush2.msra.mxu0 0.0
    %1884 = vmatprep.subr.mxu0 0.0
    %1885 = vmatpush2.msra.mxu0 0.0
    %1886 = vmatprep.subr.mxu0 0.0
    %1887 = vmatpush2.msra.mxu0 0.0
    %1888 = vmatprep.subr.mxu0 0.0
    %1889 = vmatpush2.msra.mxu0 0.0
    %1890 = vmatprep.subr.mxu0 0.0
    %1891 = vmatpush2.msra.mxu0 0.0
    %1892 = vmatprep.subr.mxu0 0.0
    %1893 = vmatpush2.msra.mxu0 0.0
    %1894 = vmatprep.subr.mxu0 0.0
    %1895 = vmatpush2.msra.mxu0 0.0
    %1896 = vmatprep.subr.mxu0 0.0
    %1897 = vmatpush2.msra.mxu0 0.0
    %1898 = vmatprep.subr.mxu0 0.0
    %1899 = vmatpush2.msra.mxu0 0.0
    %1900 = vmatprep.mubr.f32.mxu0 0.0
    %1901 = vmatmul.mubr.f32.gmra.mxu0 %v1834
    %v1902 = vpop.f32.mrf.mxu0
    %v1903 = vadd.f32 0.0, %v1902
    %v1904 = vpop.f32.mrf.mxu0
    %v1905 = vadd.f32 0.0, %v1904
    %1906 = vdwg.mxu0
    %v1907 = vadd.f32 %v1161, %v1903
    %v1908 = vadd.f32 %v1163, %v1905
    %v1909 = vxor.u32 %v1907, 2147483648
    %v1910 = vxor.u32 %v1908, 2147483648
    %v1911 = vmul.f32 %v1909, 1.442695
    %v1912 = vpow.pop %v1911
    %v1913 = vmul.f32 %v1910, 1.442695
    %v1914 = vpow.pop %v1913
    %v1915 = vadd.f32 %v1912, 1.0
    %v1916 = vadd.f32 %v1914, 1.0
    %v1917 = vrcp.pop %v1915
    %v1918 = vmul.f32 1.0, %v1917
    %v1919 = vrcp.pop %v1916
    %v1920 = vmul.f32 1.0, %v1919
    %v1921 = vtanh.pop %v1908
    %v1923 = vrot.slane %v1707, 2
    %v1925 = vmul.f32 %v1918, %v1923
    %1927 = vrot.lane.b32.xlu0 %v1921, 64
    %v1928 = vpop.permute.xlu0 %1927
    %v1930 = vmul.f32 %v1918, %v1928
    %1932 = vrot.lane.b32.xlu0 %v1930, 64
    %v1933 = vpop.permute.xlu0 %1932
    %v1935 = vadd.f32 %v1925, %v1933
    %v1936 = vtanh.pop %v1935
    %1938 = vrot.lane.b32.xlu0 %v1936, 64
    %v1939 = vpop.permute.xlu0 %1938
    %v1941 = vmul.f32 %v1920, %v1939
    %1942 = vst.msk [vmem:[#allocation4 + $0x8] sm:$0x3] %vm1217, %v1941
    %v1944 = vrot.slane %v1830, 6
    %v1945 = vsel %vm1241, %v1944, 0
    %1947 = vmatprep.subr.mxu0 0.0
    %1948 = vmatpush1.msra.mxu0 0.0
    %1949 = vmatprep.subr.mxu0 0.0
    %1950 = vmatpush1.msra.mxu0 0.0
    %1951 = vmatprep.subr.mxu0 0.0
    %1952 = vmatpush1.msra.mxu0 0.0
    %1953 = vmatprep.subr.mxu0 0.0
    %1954 = vmatpush1.msra.mxu0 0.0
    %1955 = vmatprep.subr.mxu0 0.0
    %1956 = vmatpush1.msra.mxu0 0.0
    %1957 = vmatprep.subr.mxu0 0.0
    %1958 = vmatpush1.msra.mxu0 0.0
    %1959 = vmatprep.subr.mxu0 0.0
    %1960 = vmatpush1.msra.mxu0 0.0
    %1961 = vmatprep.subr.mxu0 0.0
    %1962 = vmatpush1.msra.mxu0 0.0
    %1963 = vmatprep.subr.mxu0 %v1180
    %1964 = vmatpush1.msra.mxu0 %v1179
    %1965 = vmatprep.subr.mxu0 %v1178
    %1966 = vmatpush1.msra.mxu0 %v1177
    %1967 = vmatprep.subr.mxu0 %v1176
    %1968 = vmatpush1.msra.mxu0 %v1175
    %1969 = vmatprep.subr.mxu0 %v1174
    %1970 = vmatpush1.msra.mxu0 %v1173
    %1971 = vmatprep.subr.mxu0 %v1172
    %1972 = vmatpush1.msra.mxu0 %v1171
    %1973 = vmatprep.subr.mxu0 %v1170
    %1974 = vmatpush1.msra.mxu0 %v1169
    %1975 = vmatprep.subr.mxu0 %v1168
    %1976 = vmatpush1.msra.mxu0 %v1167
    %1977 = vmatprep.subr.mxu0 %v1166
    %1978 = vmatpush1.msra.mxu0 %v1165
    %1979 = vmatprep.subr.mxu0 0.0
    %1980 = vmatpush2.msra.mxu0 0.0
    %1981 = vmatprep.subr.mxu0 0.0
    %1982 = vmatpush2.msra.mxu0 0.0
    %1983 = vmatprep.subr.mxu0 0.0
    %1984 = vmatpush2.msra.mxu0 0.0
    %1985 = vmatprep.subr.mxu0 0.0
    %1986 = vmatpush2.msra.mxu0 0.0
    %1987 = vmatprep.subr.mxu0 0.0
    %1988 = vmatpush2.msra.mxu0 0.0
    %1989 = vmatprep.subr.mxu0 0.0
    %1990 = vmatpush2.msra.mxu0 0.0
    %1991 = vmatprep.subr.mxu0 0.0
    %1992 = vmatpush2.msra.mxu0 0.0
    %1993 = vmatprep.subr.mxu0 0.0
    %1994 = vmatpush2.msra.mxu0 0.0
    %1995 = vmatprep.subr.mxu0 0.0
    %1996 = vmatpush2.msra.mxu0 0.0
    %1997 = vmatprep.subr.mxu0 0.0
    %1998 = vmatpush2.msra.mxu0 0.0
    %1999 = vmatprep.subr.mxu0 0.0
    %2000 = vmatpush2.msra.mxu0 0.0
    %2001 = vmatprep.subr.mxu0 0.0
    %2002 = vmatpush2.msra.mxu0 0.0
    %2003 = vmatprep.subr.mxu0 0.0
    %2004 = vmatpush2.msra.mxu0 0.0
    %2005 = vmatprep.subr.mxu0 0.0
    %2006 = vmatpush2.msra.mxu0 0.0
    %2007 = vmatprep.subr.mxu0 0.0
    %2008 = vmatpush2.msra.mxu0 0.0
    %2009 = vmatprep.subr.mxu0 0.0
    %2010 = vmatpush2.msra.mxu0 0.0
    %2011 = vmatprep.mubr.f32.mxu0 0.0
    %2012 = vmatmul.mubr.f32.gmra.mxu0 %v1945
    %v2013 = vpop.f32.mrf.mxu0
    %v2014 = vadd.f32 0.0, %v2013
    %v2015 = vpop.f32.mrf.mxu0
    %v2016 = vadd.f32 0.0, %v2015
    %2017 = vdwg.mxu0
    %v2018 = vadd.f32 %v1070, %v2014
    %v2019 = vadd.f32 %v1072, %v2016
    %v2020 = vxor.u32 %v2018, 2147483648
    %v2021 = vxor.u32 %v2019, 2147483648
    %v2022 = vmul.f32 %v2020, 1.442695
    %v2023 = vpow.pop %v2022
    %v2024 = vmul.f32 %v2021, 1.442695
    %v2025 = vpow.pop %v2024
    %v2026 = vadd.f32 %v2023, 1.0
    %v2027 = vadd.f32 %v2025, 1.0
    %v2028 = vrcp.pop %v2026
    %v2029 = vmul.f32 1.0, %v2028
    %v2030 = vrcp.pop %v2027
    %v2031 = vmul.f32 1.0, %v2030
    %v2032 = vtanh.pop %v2019
    %v2034 = vrot.slane %v1824, 6
    %v2036 = vmul.f32 %v2029, %v2034
    %2038 = vrot.lane.b32.xlu0 %v2032, 64
    %v2039 = vpop.permute.xlu0 %2038
    %v2041 = vmul.f32 %v2029, %v2039
    %2043 = vrot.lane.b32.xlu0 %v2041, 64
    %v2044 = vpop.permute.xlu0 %2043
    %v2046 = vadd.f32 %v2036, %v2044
    %v2047 = vtanh.pop %v2046
    %2049 = vrot.lane.b32.xlu0 %v2047, 64
    %v2050 = vpop.permute.xlu0 %2049
    %v2052 = vmul.f32 %v2031, %v2050
    %2053 = vst.msk [vmem:[#allocation3 + $0x8] sm:$0x3] %vm1217, %v2052
    %v2055 = vsel %vm1241, %v1941, 0
    %2057 = vmatprep.subr.mxu0 0.0
    %2058 = vmatpush1.msra.mxu0 0.0
    %2059 = vmatprep.subr.mxu0 0.0
    %2060 = vmatpush1.msra.mxu0 0.0
    %2061 = vmatprep.subr.mxu0 0.0
    %2062 = vmatpush1.msra.mxu0 0.0
    %2063 = vmatprep.subr.mxu0 0.0
    %2064 = vmatpush1.msra.mxu0 0.0
    %2065 = vmatprep.subr.mxu0 0.0
    %2066 = vmatpush1.msra.mxu0 0.0
    %2067 = vmatprep.subr.mxu0 0.0
    %2068 = vmatpush1.msra.mxu0 0.0
    %2069 = vmatprep.subr.mxu0 0.0
    %2070 = vmatpush1.msra.mxu0 0.0
    %2071 = vmatprep.subr.mxu0 0.0
    %2072 = vmatpush1.msra.mxu0 0.0
    %2073 = vmatprep.subr.mxu0 %v1196
    %2074 = vmatpush1.msra.mxu0 %v1195
    %2075 = vmatprep.subr.mxu0 %v1194
    %2076 = vmatpush1.msra.mxu0 %v1193
    %2077 = vmatprep.subr.mxu0 %v1192
    %2078 = vmatpush1.msra.mxu0 %v1191
    %2079 = vmatprep.subr.mxu0 %v1190
    %2080 = vmatpush1.msra.mxu0 %v1189
    %2081 = vmatprep.subr.mxu0 %v1188
    %2082 = vmatpush1.msra.mxu0 %v1187
    %2083 = vmatprep.subr.mxu0 %v1186
    %2084 = vmatpush1.msra.mxu0 %v1185
    %2085 = vmatprep.subr.mxu0 %v1184
    %2086 = vmatpush1.msra.mxu0 %v1183
    %2087 = vmatprep.subr.mxu0 %v1182
    %2088 = vmatpush1.msra.mxu0 %v1181
    %2089 = vmatprep.subr.mxu0 0.0
    %2090 = vmatpush2.msra.mxu0 0.0
    %2091 = vmatprep.subr.mxu0 0.0
    %2092 = vmatpush2.msra.mxu0 0.0
    %2093 = vmatprep.subr.mxu0 0.0
    %2094 = vmatpush2.msra.mxu0 0.0
    %2095 = vmatprep.subr.mxu0 0.0
    %2096 = vmatpush2.msra.mxu0 0.0
    %2097 = vmatprep.subr.mxu0 0.0
    %2098 = vmatpush2.msra.mxu0 0.0
    %2099 = vmatprep.subr.mxu0 0.0
    %2100 = vmatpush2.msra.mxu0 0.0
    %2101 = vmatprep.subr.mxu0 0.0
    %2102 = vmatpush2.msra.mxu0 0.0
    %2103 = vmatprep.subr.mxu0 0.0
    %2104 = vmatpush2.msra.mxu0 0.0
    %2105 = vmatprep.subr.mxu0 0.0
    %2106 = vmatpush2.msra.mxu0 0.0
    %2107 = vmatprep.subr.mxu0 0.0
    %2108 = vmatpush2.msra.mxu0 0.0
    %2109 = vmatprep.subr.mxu0 0.0
    %2110 = vmatpush2.msra.mxu0 0.0
    %2111 = vmatprep.subr.mxu0 0.0
    %2112 = vmatpush2.msra.mxu0 0.0
    %2113 = vmatprep.subr.mxu0 0.0
    %2114 = vmatpush2.msra.mxu0 0.0
    %2115 = vmatprep.subr.mxu0 0.0
    %2116 = vmatpush2.msra.mxu0 0.0
    %2117 = vmatprep.subr.mxu0 0.0
    %2118 = vmatpush2.msra.mxu0 0.0
    %2119 = vmatprep.subr.mxu0 0.0
    %2120 = vmatpush2.msra.mxu0 0.0
    %2121 = vmatprep.mubr.f32.mxu0 0.0
    %2122 = vmatmul.mubr.f32.gmra.mxu0 %v2055
    %v2123 = vpop.f32.mrf.mxu0
    %v2124 = vadd.f32 0.0, %v2123
    %v2125 = vpop.f32.mrf.mxu0
    %v2126 = vadd.f32 0.0, %v2125
    %2127 = vdwg.mxu0
    %v2130 = vrot.slane %v2124, 2
    %v2131 = vrot.slane %v2126, 2
    %v2134 = vadd.f32 %v1155, %v2130
    %v2135 = vadd.f32 %v1157, %v2131
    %v2136 = vxor.u32 %v2134, 2147483648
    %v2137 = vxor.u32 %v2135, 2147483648
    %v2138 = vmul.f32 %v2136, 1.442695
    %v2139 = vpow.pop %v2138
    %v2140 = vmul.f32 %v2137, 1.442695
    %v2141 = vpow.pop %v2140
    %v2142 = vadd.f32 %v2139, 1.0
    %v2143 = vadd.f32 %v2141, 1.0
    %v2144 = vrcp.pop %v2142
    %v2145 = vmul.f32 1.0, %v2144
    %v2146 = vrcp.pop %v2143
    %v2147 = vmul.f32 1.0, %v2146
    %v2148 = vtanh.pop %v2135
    %v2150 = vrot.slane %v1935, 2
    %v2152 = vmul.f32 %v2145, %v2150
    %2154 = vrot.lane.b32.xlu0 %v2148, 64
    %v2155 = vpop.permute.xlu0 %2154
    %v2157 = vmul.f32 %v2145, %v2155
    %2159 = vrot.lane.b32.xlu0 %v2157, 64
    %v2160 = vpop.permute.xlu0 %2159
    %v2162 = vadd.f32 %v2152, %v2160
    %v2163 = vtanh.pop %v2162
    %2165 = vrot.lane.b32.xlu0 %v2163, 64
    %v2166 = vpop.permute.xlu0 %2165
    %v2168 = vmul.f32 %v2147, %v2166
    %2169 = vst.msk [vmem:[#allocation4] sm:$0xc0] %vm1239, %v2168
    %v2171 = vsel %vm1241, %v2052, 0
    %2173 = vmatprep.subr.mxu0 0.0
    %2174 = vmatpush1.msra.mxu0 0.0
    %2175 = vmatprep.subr.mxu0 0.0
    %2176 = vmatpush1.msra.mxu0 0.0
    %2177 = vmatprep.subr.mxu0 0.0
    %2178 = vmatpush1.msra.mxu0 0.0
    %2179 = vmatprep.subr.mxu0 0.0
    %2180 = vmatpush1.msra.mxu0 0.0
    %2181 = vmatprep.subr.mxu0 0.0
    %2182 = vmatpush1.msra.mxu0 0.0
    %2183 = vmatprep.subr.mxu0 0.0
    %2184 = vmatpush1.msra.mxu0 0.0
    %2185 = vmatprep.subr.mxu0 0.0
    %2186 = vmatpush1.msra.mxu0 0.0
    %2187 = vmatprep.subr.mxu0 0.0
    %2188 = vmatpush1.msra.mxu0 0.0
    %2189 = vmatprep.subr.mxu0 %v1180
    %2190 = vmatpush1.msra.mxu0 %v1179
    %2191 = vmatprep.subr.mxu0 %v1178
    %2192 = vmatpush1.msra.mxu0 %v1177
    %2193 = vmatprep.subr.mxu0 %v1176
    %2194 = vmatpush1.msra.mxu0 %v1175
    %2195 = vmatprep.subr.mxu0 %v1174
    %2196 = vmatpush1.msra.mxu0 %v1173
    %2197 = vmatprep.subr.mxu0 %v1172
    %2198 = vmatpush1.msra.mxu0 %v1171
    %2199 = vmatprep.subr.mxu0 %v1170
    %2200 = vmatpush1.msra.mxu0 %v1169
    %2201 = vmatprep.subr.mxu0 %v1168
    %2202 = vmatpush1.msra.mxu0 %v1167
    %2203 = vmatprep.subr.mxu0 %v1166
    %2204 = vmatpush1.msra.mxu0 %v1165
    %2205 = vmatprep.subr.mxu0 0.0
    %2206 = vmatpush2.msra.mxu0 0.0
    %2207 = vmatprep.subr.mxu0 0.0
    %2208 = vmatpush2.msra.mxu0 0.0
    %2209 = vmatprep.subr.mxu0 0.0
    %2210 = vmatpush2.msra.mxu0 0.0
    %2211 = vmatprep.subr.mxu0 0.0
    %2212 = vmatpush2.msra.mxu0 0.0
    %2213 = vmatprep.subr.mxu0 0.0
    %2214 = vmatpush2.msra.mxu0 0.0
    %2215 = vmatprep.subr.mxu0 0.0
    %2216 = vmatpush2.msra.mxu0 0.0
    %2217 = vmatprep.subr.mxu0 0.0
    %2218 = vmatpush2.msra.mxu0 0.0
    %2219 = vmatprep.subr.mxu0 0.0
    %2220 = vmatpush2.msra.mxu0 0.0
    %2221 = vmatprep.subr.mxu0 0.0
    %2222 = vmatpush2.msra.mxu0 0.0
    %2223 = vmatprep.subr.mxu0 0.0
    %2224 = vmatpush2.msra.mxu0 0.0
    %2225 = vmatprep.subr.mxu0 0.0
    %2226 = vmatpush2.msra.mxu0 0.0
    %2227 = vmatprep.subr.mxu0 0.0
    %2228 = vmatpush2.msra.mxu0 0.0
    %2229 = vmatprep.subr.mxu0 0.0
    %2230 = vmatpush2.msra.mxu0 0.0
    %2231 = vmatprep.subr.mxu0 0.0
    %2232 = vmatpush2.msra.mxu0 0.0
    %2233 = vmatprep.subr.mxu0 0.0
    %2234 = vmatpush2.msra.mxu0 0.0
    %2235 = vmatprep.subr.mxu0 0.0
    %2236 = vmatpush2.msra.mxu0 0.0
    %2237 = vmatprep.mubr.f32.mxu0 0.0
    %2238 = vmatmul.mubr.f32.gmra.mxu0 %v2171
    %v2239 = vpop.f32.mrf.mxu0
    %v2240 = vadd.f32 0.0, %v2239
    %v2241 = vpop.f32.mrf.mxu0
    %v2242 = vadd.f32 0.0, %v2241
    %2243 = vdwg.mxu0
    %v2246 = vrot.slane %v2240, 6
    %v2247 = vrot.slane %v2242, 6
    %v2250 = vadd.f32 %v1070, %v2246
    %v2251 = vadd.f32 %v1072, %v2247
    %v2252 = vxor.u32 %v2250, 2147483648
    %v2253 = vxor.u32 %v2251, 2147483648
    %v2254 = vmul.f32 %v2252, 1.442695
    %v2255 = vpow.pop %v2254
    %v2256 = vmul.f32 %v2253, 1.442695
    %v2257 = vpow.pop %v2256
    %v2258 = vadd.f32 %v2255, 1.0
    %v2259 = vadd.f32 %v2257, 1.0
    %v2260 = vrcp.pop %v2258
    %v2261 = vmul.f32 1.0, %v2260
    %v2262 = vrcp.pop %v2259
    %v2263 = vmul.f32 1.0, %v2262
    %v2264 = vtanh.pop %v2251
    %v2266 = vrot.slane %v2046, 6
    %v2268 = vmul.f32 %v2261, %v2266
    %2270 = vrot.lane.b32.xlu0 %v2264, 64
    %v2271 = vpop.permute.xlu0 %2270
    %v2273 = vmul.f32 %v2261, %v2271
    %2275 = vrot.lane.b32.xlu0 %v2273, 64
    %v2276 = vpop.permute.xlu0 %2275
    %v2278 = vadd.f32 %v2268, %v2276
    %v2279 = vtanh.pop %v2278
    %2281 = vrot.lane.b32.xlu0 %v2279, 64
    %v2282 = vpop.permute.xlu0 %2281
    %v2284 = vmul.f32 %v2263, %v2282
    %2285 = vst.msk [vmem:[#allocation3 + $0x8] sm:$0xc] %vm1359, %v2284
    %v2287 = vrot.slane %v2168, 6
    %v2288 = vsel %vm1241, %v2287, 0
    %2290 = vmatprep.subr.mxu0 0.0
    %2291 = vmatpush1.msra.mxu0 0.0
    %2292 = vmatprep.subr.mxu0 0.0
    %2293 = vmatpush1.msra.mxu0 0.0
    %2294 = vmatprep.subr.mxu0 0.0
    %2295 = vmatpush1.msra.mxu0 0.0
    %2296 = vmatprep.subr.mxu0 0.0
    %2297 = vmatpush1.msra.mxu0 0.0
    %2298 = vmatprep.subr.mxu0 0.0
    %2299 = vmatpush1.msra.mxu0 0.0
    %2300 = vmatprep.subr.mxu0 0.0
    %2301 = vmatpush1.msra.mxu0 0.0
    %2302 = vmatprep.subr.mxu0 0.0
    %2303 = vmatpush1.msra.mxu0 0.0
    %2304 = vmatprep.subr.mxu0 0.0
    %2305 = vmatpush1.msra.mxu0 0.0
    %2306 = vmatprep.subr.mxu0 %v1196
    %2307 = vmatpush1.msra.mxu0 %v1195
    %2308 = vmatprep.subr.mxu0 %v1194
    %2309 = vmatpush1.msra.mxu0 %v1193
    %2310 = vmatprep.subr.mxu0 %v1192
    %2311 = vmatpush1.msra.mxu0 %v1191
    %2312 = vmatprep.subr.mxu0 %v1190
    %2313 = vmatpush1.msra.mxu0 %v1189
    %2314 = vmatprep.subr.mxu0 %v1188
    %2315 = vmatpush1.msra.mxu0 %v1187
    %2316 = vmatprep.subr.mxu0 %v1186
    %2317 = vmatpush1.msra.mxu0 %v1185
    %2318 = vmatprep.subr.mxu0 %v1184
    %2319 = vmatpush1.msra.mxu0 %v1183
    %2320 = vmatprep.subr.mxu0 %v1182
    %2321 = vmatpush1.msra.mxu0 %v1181
    %2322 = vmatprep.subr.mxu0 0.0
    %2323 = vmatpush2.msra.mxu0 0.0
    %2324 = vmatprep.subr.mxu0 0.0
    %2325 = vmatpush2.msra.mxu0 0.0
    %2326 = vmatprep.subr.mxu0 0.0
    %2327 = vmatpush2.msra.mxu0 0.0
    %2328 = vmatprep.subr.mxu0 0.0
    %2329 = vmatpush2.msra.mxu0 0.0
    %2330 = vmatprep.subr.mxu0 0.0
    %2331 = vmatpush2.msra.mxu0 0.0
    %2332 = vmatprep.subr.mxu0 0.0
    %2333 = vmatpush2.msra.mxu0 0.0
    %2334 = vmatprep.subr.mxu0 0.0
    %2335 = vmatpush2.msra.mxu0 0.0
    %2336 = vmatprep.subr.mxu0 0.0
    %2337 = vmatpush2.msra.mxu0 0.0
    %2338 = vmatprep.subr.mxu0 0.0
    %2339 = vmatpush2.msra.mxu0 0.0
    %2340 = vmatprep.subr.mxu0 0.0
    %2341 = vmatpush2.msra.mxu0 0.0
    %2342 = vmatprep.subr.mxu0 0.0
    %2343 = vmatpush2.msra.mxu0 0.0
    %2344 = vmatprep.subr.mxu0 0.0
    %2345 = vmatpush2.msra.mxu0 0.0
    %2346 = vmatprep.subr.mxu0 0.0
    %2347 = vmatpush2.msra.mxu0 0.0
    %2348 = vmatprep.subr.mxu0 0.0
    %2349 = vmatpush2.msra.mxu0 0.0
    %2350 = vmatprep.subr.mxu0 0.0
    %2351 = vmatpush2.msra.mxu0 0.0
    %2352 = vmatprep.subr.mxu0 0.0
    %2353 = vmatpush2.msra.mxu0 0.0
    %2354 = vmatprep.mubr.f32.mxu0 0.0
    %2355 = vmatmul.mubr.f32.gmra.mxu0 %v2288
    %v2356 = vpop.f32.mrf.mxu0
    %v2357 = vadd.f32 0.0, %v2356
    %v2358 = vpop.f32.mrf.mxu0
    %v2359 = vadd.f32 0.0, %v2358
    %2360 = vdwg.mxu0
    %v2363 = vrot.slane %v2357, 4
    %v2364 = vrot.slane %v2359, 4
    %v2367 = vadd.f32 %v1155, %v2363
    %v2368 = vadd.f32 %v1157, %v2364
    %v2369 = vxor.u32 %v2367, 2147483648
    %v2370 = vxor.u32 %v2368, 2147483648
    %v2371 = vmul.f32 %v2369, 1.442695
    %v2372 = vpow.pop %v2371
    %v2373 = vmul.f32 %v2370, 1.442695
    %v2374 = vpow.pop %v2373
    %v2375 = vadd.f32 %v2372, 1.0
    %v2376 = vadd.f32 %v2374, 1.0
    %v2377 = vrcp.pop %v2375
    %v2378 = vmul.f32 1.0, %v2377
    %v2379 = vrcp.pop %v2376
    %v2380 = vmul.f32 1.0, %v2379
    %v2381 = vtanh.pop %v2368
    %v2383 = vrot.slane %v2162, 2
    %v2385 = vmul.f32 %v2378, %v2383
    %2387 = vrot.lane.b32.xlu0 %v2381, 64
    %v2388 = vpop.permute.xlu0 %2387
    %v2390 = vmul.f32 %v2378, %v2388
    %2392 = vrot.lane.b32.xlu0 %v2390, 64
    %v2393 = vpop.permute.xlu0 %2392
    %v2395 = vadd.f32 %v2385, %v2393
    %v2396 = vtanh.pop %v2395
    %2398 = vrot.lane.b32.xlu0 %v2396, 64
    %v2399 = vpop.permute.xlu0 %2398
    %v2401 = vmul.f32 %v2380, %v2399
    %2402 = vst.msk [vmem:[#allocation4] sm:$0x30] %vm1479, %v2401
    %v2404 = vrot.slane %v2284, 2
    %v2405 = vsel %vm1241, %v2404, 0
    %2407 = vmatprep.subr.mxu0 0.0
    %2408 = vmatpush1.msra.mxu0 0.0
    %2409 = vmatprep.subr.mxu0 0.0
    %2410 = vmatpush1.msra.mxu0 0.0
    %2411 = vmatprep.subr.mxu0 0.0
    %2412 = vmatpush1.msra.mxu0 0.0
    %2413 = vmatprep.subr.mxu0 0.0
    %2414 = vmatpush1.msra.mxu0 0.0
    %2415 = vmatprep.subr.mxu0 0.0
    %2416 = vmatpush1.msra.mxu0 0.0
    %2417 = vmatprep.subr.mxu0 0.0
    %2418 = vmatpush1.msra.mxu0 0.0
    %2419 = vmatprep.subr.mxu0 0.0
    %2420 = vmatpush1.msra.mxu0 0.0
    %2421 = vmatprep.subr.mxu0 0.0
    %2422 = vmatpush1.msra.mxu0 0.0
    %2423 = vmatprep.subr.mxu0 %v1180
    %2424 = vmatpush1.msra.mxu0 %v1179
    %2425 = vmatprep.subr.mxu0 %v1178
    %2426 = vmatpush1.msra.mxu0 %v1177
    %2427 = vmatprep.subr.mxu0 %v1176
    %2428 = vmatpush1.msra.mxu0 %v1175
    %2429 = vmatprep.subr.mxu0 %v1174
    %2430 = vmatpush1.msra.mxu0 %v1173
    %2431 = vmatprep.subr.mxu0 %v1172
    %2432 = vmatpush1.msra.mxu0 %v1171
    %2433 = vmatprep.subr.mxu0 %v1170
    %2434 = vmatpush1.msra.mxu0 %v1169
    %2435 = vmatprep.subr.mxu0 %v1168
    %2436 = vmatpush1.msra.mxu0 %v1167
    %2437 = vmatprep.subr.mxu0 %v1166
    %2438 = vmatpush1.msra.mxu0 %v1165
    %2439 = vmatprep.subr.mxu0 0.0
    %2440 = vmatpush2.msra.mxu0 0.0
    %2441 = vmatprep.subr.mxu0 0.0
    %2442 = vmatpush2.msra.mxu0 0.0
    %2443 = vmatprep.subr.mxu0 0.0
    %2444 = vmatpush2.msra.mxu0 0.0
    %2445 = vmatprep.subr.mxu0 0.0
    %2446 = vmatpush2.msra.mxu0 0.0
    %2447 = vmatprep.subr.mxu0 0.0
    %2448 = vmatpush2.msra.mxu0 0.0
    %2449 = vmatprep.subr.mxu0 0.0
    %2450 = vmatpush2.msra.mxu0 0.0
    %2451 = vmatprep.subr.mxu0 0.0
    %2452 = vmatpush2.msra.mxu0 0.0
    %2453 = vmatprep.subr.mxu0 0.0
    %2454 = vmatpush2.msra.mxu0 0.0
    %2455 = vmatprep.subr.mxu0 0.0
    %2456 = vmatpush2.msra.mxu0 0.0
    %2457 = vmatprep.subr.mxu0 0.0
    %2458 = vmatpush2.msra.mxu0 0.0
    %2459 = vmatprep.subr.mxu0 0.0
    %2460 = vmatpush2.msra.mxu0 0.0
    %2461 = vmatprep.subr.mxu0 0.0
    %2462 = vmatpush2.msra.mxu0 0.0
    %2463 = vmatprep.subr.mxu0 0.0
    %2464 = vmatpush2.msra.mxu0 0.0
    %2465 = vmatprep.subr.mxu0 0.0
    %2466 = vmatpush2.msra.mxu0 0.0
    %2467 = vmatprep.subr.mxu0 0.0
    %2468 = vmatpush2.msra.mxu0 0.0
    %2469 = vmatprep.subr.mxu0 0.0
    %2470 = vmatpush2.msra.mxu0 0.0
    %2471 = vmatprep.mubr.f32.mxu0 0.0
    %2472 = vmatmul.mubr.f32.gmra.mxu0 %v2405
    %v2473 = vpop.f32.mrf.mxu0
    %v2474 = vadd.f32 0.0, %v2473
    %v2475 = vpop.f32.mrf.mxu0
    %v2476 = vadd.f32 0.0, %v2475
    %2477 = vdwg.mxu0
    %v2480 = vrot.slane %v2474, 4
    %v2481 = vrot.slane %v2476, 4
    %v2484 = vadd.f32 %v1070, %v2480
    %v2485 = vadd.f32 %v1072, %v2481
    %v2486 = vxor.u32 %v2484, 2147483648
    %v2487 = vxor.u32 %v2485, 2147483648
    %v2488 = vmul.f32 %v2486, 1.442695
    %v2489 = vpow.pop %v2488
    %v2490 = vmul.f32 %v2487, 1.442695
    %v2491 = vpow.pop %v2490
    %v2492 = vadd.f32 %v2489, 1.0
    %v2493 = vadd.f32 %v2491, 1.0
    %v2494 = vrcp.pop %v2492
    %v2495 = vmul.f32 1.0, %v2494
    %v2496 = vrcp.pop %v2493
    %v2497 = vmul.f32 1.0, %v2496
    %v2498 = vtanh.pop %v2485
    %v2500 = vrot.slane %v2278, 6
    %v2502 = vmul.f32 %v2495, %v2500
    %2504 = vrot.lane.b32.xlu0 %v2498, 64
    %v2505 = vpop.permute.xlu0 %2504
    %v2507 = vmul.f32 %v2495, %v2505
    %2509 = vrot.lane.b32.xlu0 %v2507, 64
    %v2510 = vpop.permute.xlu0 %2509
    %v2512 = vadd.f32 %v2502, %v2510
    %v2513 = vtanh.pop %v2512
    %2515 = vrot.lane.b32.xlu0 %v2513, 64
    %v2516 = vpop.permute.xlu0 %2515
    %v2518 = vmul.f32 %v2497, %v2516
    %2519 = vst.msk [vmem:[#allocation3 + $0x8] sm:$0x30] %vm1479, %v2518
    %v2521 = vrot.slane %v2401, 4
    %v2522 = vsel %vm1241, %v2521, 0
    %2524 = vmatprep.subr.mxu0 0.0
    %2525 = vmatpush1.msra.mxu0 0.0
    %2526 = vmatprep.subr.mxu0 0.0
    %2527 = vmatpush1.msra.mxu0 0.0
    %2528 = vmatprep.subr.mxu0 0.0
    %2529 = vmatpush1.msra.mxu0 0.0
    %2530 = vmatprep.subr.mxu0 0.0
    %2531 = vmatpush1.msra.mxu0 0.0
    %2532 = vmatprep.subr.mxu0 0.0
    %2533 = vmatpush1.msra.mxu0 0.0
    %2534 = vmatprep.subr.mxu0 0.0
    %2535 = vmatpush1.msra.mxu0 0.0
    %2536 = vmatprep.subr.mxu0 0.0
    %2537 = vmatpush1.msra.mxu0 0.0
    %2538 = vmatprep.subr.mxu0 0.0
    %2539 = vmatpush1.msra.mxu0 0.0
    %2540 = vmatprep.subr.mxu0 %v1196
    %2541 = vmatpush1.msra.mxu0 %v1195
    %2542 = vmatprep.subr.mxu0 %v1194
    %2543 = vmatpush1.msra.mxu0 %v1193
    %2544 = vmatprep.subr.mxu0 %v1192
    %2545 = vmatpush1.msra.mxu0 %v1191
    %2546 = vmatprep.subr.mxu0 %v1190
    %2547 = vmatpush1.msra.mxu0 %v1189
    %2548 = vmatprep.subr.mxu0 %v1188
    %2549 = vmatpush1.msra.mxu0 %v1187
    %2550 = vmatprep.subr.mxu0 %v1186
    %2551 = vmatpush1.msra.mxu0 %v1185
    %2552 = vmatprep.subr.mxu0 %v1184
    %2553 = vmatpush1.msra.mxu0 %v1183
    %2554 = vmatprep.subr.mxu0 %v1182
    %2555 = vmatpush1.msra.mxu0 %v1181
    %2556 = vmatprep.subr.mxu0 0.0
    %2557 = vmatpush2.msra.mxu0 0.0
    %2558 = vmatprep.subr.mxu0 0.0
    %2559 = vmatpush2.msra.mxu0 0.0
    %2560 = vmatprep.subr.mxu0 0.0
    %2561 = vmatpush2.msra.mxu0 0.0
    %2562 = vmatprep.subr.mxu0 0.0
    %2563 = vmatpush2.msra.mxu0 0.0
    %2564 = vmatprep.subr.mxu0 0.0
    %2565 = vmatpush2.msra.mxu0 0.0
    %2566 = vmatprep.subr.mxu0 0.0
    %2567 = vmatpush2.msra.mxu0 0.0
    %2568 = vmatprep.subr.mxu0 0.0
    %2569 = vmatpush2.msra.mxu0 0.0
    %2570 = vmatprep.subr.mxu0 0.0
    %2571 = vmatpush2.msra.mxu0 0.0
    %2572 = vmatprep.subr.mxu0 0.0
    %2573 = vmatpush2.msra.mxu0 0.0
    %2574 = vmatprep.subr.mxu0 0.0
    %2575 = vmatpush2.msra.mxu0 0.0
    %2576 = vmatprep.subr.mxu0 0.0
    %2577 = vmatpush2.msra.mxu0 0.0
    %2578 = vmatprep.subr.mxu0 0.0
    %2579 = vmatpush2.msra.mxu0 0.0
    %2580 = vmatprep.subr.mxu0 0.0
    %2581 = vmatpush2.msra.mxu0 0.0
    %2582 = vmatprep.subr.mxu0 0.0
    %2583 = vmatpush2.msra.mxu0 0.0
    %2584 = vmatprep.subr.mxu0 0.0
    %2585 = vmatpush2.msra.mxu0 0.0
    %2586 = vmatprep.subr.mxu0 0.0
    %2587 = vmatpush2.msra.mxu0 0.0
    %2588 = vmatprep.mubr.f32.mxu0 0.0
    %2589 = vmatmul.mubr.f32.gmra.mxu0 %v2522
    %v2590 = vpop.f32.mrf.mxu0
    %v2591 = vadd.f32 0.0, %v2590
    %v2592 = vpop.f32.mrf.mxu0
    %v2593 = vadd.f32 0.0, %v2592
    %2594 = vdwg.mxu0
    %v2597 = vrot.slane %v2591, 6
    %v2598 = vrot.slane %v2593, 6
    %v2601 = vadd.f32 %v1155, %v2597
    %v2602 = vadd.f32 %v1157, %v2598
    %v2603 = vxor.u32 %v2601, 2147483648
    %v2604 = vxor.u32 %v2602, 2147483648
    %v2605 = vmul.f32 %v2603, 1.442695
    %v2606 = vpow.pop %v2605
    %v2607 = vmul.f32 %v2604, 1.442695
    %v2608 = vpow.pop %v2607
    %v2609 = vadd.f32 %v2606, 1.0
    %v2610 = vadd.f32 %v2608, 1.0
    %v2611 = vrcp.pop %v2609
    %v2612 = vmul.f32 1.0, %v2611
    %v2613 = vrcp.pop %v2610
    %v2614 = vmul.f32 1.0, %v2613
    %v2615 = vtanh.pop %v2602
    %v2617 = vrot.slane %v2395, 2
    %v2619 = vmul.f32 %v2612, %v2617
    %2621 = vrot.lane.b32.xlu0 %v2615, 64
    %v2622 = vpop.permute.xlu0 %2621
    %v2624 = vmul.f32 %v2612, %v2622
    %2626 = vrot.lane.b32.xlu0 %v2624, 64
    %v2627 = vpop.permute.xlu0 %2626
    %v2629 = vadd.f32 %v2619, %v2627
    %v2630 = vtanh.pop %v2629
    %2632 = vrot.lane.b32.xlu0 %v2630, 64
    %v2633 = vpop.permute.xlu0 %2632
    %v2635 = vmul.f32 %v2614, %v2633
    %2636 = vst.msk [vmem:[#allocation4] sm:$0xc] %vm1359, %v2635
    %v2638 = vrot.slane %v2518, 4
    %v2639 = vsel %vm1241, %v2638, 0
    %2641 = vmatprep.subr.mxu0 0.0
    %2642 = vmatpush1.msra.mxu0 0.0
    %2643 = vmatprep.subr.mxu0 0.0
    %2644 = vmatpush1.msra.mxu0 0.0
    %2645 = vmatprep.subr.mxu0 0.0
    %2646 = vmatpush1.msra.mxu0 0.0
    %2647 = vmatprep.subr.mxu0 0.0
    %2648 = vmatpush1.msra.mxu0 0.0
    %2649 = vmatprep.subr.mxu0 0.0
    %2650 = vmatpush1.msra.mxu0 0.0
    %2651 = vmatprep.subr.mxu0 0.0
    %2652 = vmatpush1.msra.mxu0 0.0
    %2653 = vmatprep.subr.mxu0 0.0
    %2654 = vmatpush1.msra.mxu0 0.0
    %2655 = vmatprep.subr.mxu0 0.0
    %2656 = vmatpush1.msra.mxu0 0.0
    %2657 = vmatprep.subr.mxu0 %v1180
    %2658 = vmatpush1.msra.mxu0 %v1179
    %2659 = vmatprep.subr.mxu0 %v1178
    %2660 = vmatpush1.msra.mxu0 %v1177
    %2661 = vmatprep.subr.mxu0 %v1176
    %2662 = vmatpush1.msra.mxu0 %v1175
    %2663 = vmatprep.subr.mxu0 %v1174
    %2664 = vmatpush1.msra.mxu0 %v1173
    %2665 = vmatprep.subr.mxu0 %v1172
    %2666 = vmatpush1.msra.mxu0 %v1171
    %2667 = vmatprep.subr.mxu0 %v1170
    %2668 = vmatpush1.msra.mxu0 %v1169
    %2669 = vmatprep.subr.mxu0 %v1168
    %2670 = vmatpush1.msra.mxu0 %v1167
    %2671 = vmatprep.subr.mxu0 %v1166
    %2672 = vmatpush1.msra.mxu0 %v1165
    %2673 = vmatprep.subr.mxu0 0.0
    %2674 = vmatpush2.msra.mxu0 0.0
    %2675 = vmatprep.subr.mxu0 0.0
    %2676 = vmatpush2.msra.mxu0 0.0
    %2677 = vmatprep.subr.mxu0 0.0
    %2678 = vmatpush2.msra.mxu0 0.0
    %2679 = vmatprep.subr.mxu0 0.0
    %2680 = vmatpush2.msra.mxu0 0.0
    %2681 = vmatprep.subr.mxu0 0.0
    %2682 = vmatpush2.msra.mxu0 0.0
    %2683 = vmatprep.subr.mxu0 0.0
    %2684 = vmatpush2.msra.mxu0 0.0
    %2685 = vmatprep.subr.mxu0 0.0
    %2686 = vmatpush2.msra.mxu0 0.0
    %2687 = vmatprep.subr.mxu0 0.0
    %2688 = vmatpush2.msra.mxu0 0.0
    %2689 = vmatprep.subr.mxu0 0.0
    %2690 = vmatpush2.msra.mxu0 0.0
    %2691 = vmatprep.subr.mxu0 0.0
    %2692 = vmatpush2.msra.mxu0 0.0
    %2693 = vmatprep.subr.mxu0 0.0
    %2694 = vmatpush2.msra.mxu0 0.0
    %2695 = vmatprep.subr.mxu0 0.0
    %2696 = vmatpush2.msra.mxu0 0.0
    %2697 = vmatprep.subr.mxu0 0.0
    %2698 = vmatpush2.msra.mxu0 0.0
    %2699 = vmatprep.subr.mxu0 0.0
    %2700 = vmatpush2.msra.mxu0 0.0
    %2701 = vmatprep.subr.mxu0 0.0
    %2702 = vmatpush2.msra.mxu0 0.0
    %2703 = vmatprep.subr.mxu0 0.0
    %2704 = vmatpush2.msra.mxu0 0.0
    %2705 = vmatprep.mubr.f32.mxu0 0.0
    %2706 = vmatmul.mubr.f32.gmra.mxu0 %v2639
    %v2707 = vpop.f32.mrf.mxu0
    %v2708 = vadd.f32 0.0, %v2707
    %v2709 = vpop.f32.mrf.mxu0
    %v2710 = vadd.f32 0.0, %v2709
    %2711 = vdwg.mxu0
    %v2714 = vrot.slane %v2708, 2
    %v2715 = vrot.slane %v2710, 2
    %v2718 = vadd.f32 %v1070, %v2714
    %v2719 = vadd.f32 %v1072, %v2715
    %v2720 = vxor.u32 %v2718, 2147483648
    %v2721 = vxor.u32 %v2719, 2147483648
    %v2722 = vmul.f32 %v2720, 1.442695
    %v2723 = vpow.pop %v2722
    %v2724 = vmul.f32 %v2721, 1.442695
    %v2725 = vpow.pop %v2724
    %v2726 = vadd.f32 %v2723, 1.0
    %v2727 = vadd.f32 %v2725, 1.0
    %v2728 = vrcp.pop %v2726
    %v2729 = vmul.f32 1.0, %v2728
    %v2730 = vrcp.pop %v2727
    %v2731 = vmul.f32 1.0, %v2730
    %v2732 = vtanh.pop %v2719
    %v2734 = vrot.slane %v2512, 6
    %v2736 = vmul.f32 %v2729, %v2734
    %2738 = vrot.lane.b32.xlu0 %v2732, 64
    %v2739 = vpop.permute.xlu0 %2738
    %v2741 = vmul.f32 %v2729, %v2739
    %2743 = vrot.lane.b32.xlu0 %v2741, 64
    %v2744 = vpop.permute.xlu0 %2743
    %v2746 = vadd.f32 %v2736, %v2744
    %v2747 = vtanh.pop %v2746
    %2749 = vrot.lane.b32.xlu0 %v2747, 64
    %v2750 = vpop.permute.xlu0 %2749
    %v2752 = vmul.f32 %v2731, %v2750
    %2753 = vst.msk [vmem:[#allocation3 + $0x8] sm:$0xc0] %vm1239, %v2752
    %v2755 = vrot.slane %v2635, 2
    %v2756 = vsel %vm1241, %v2755, 0
    %2758 = vmatprep.subr.mxu0 0.0
    %2759 = vmatpush1.msra.mxu0 0.0
    %2760 = vmatprep.subr.mxu0 0.0
    %2761 = vmatpush1.msra.mxu0 0.0
    %2762 = vmatprep.subr.mxu0 0.0
    %2763 = vmatpush1.msra.mxu0 0.0
    %2764 = vmatprep.subr.mxu0 0.0
    %2765 = vmatpush1.msra.mxu0 0.0
    %2766 = vmatprep.subr.mxu0 0.0
    %2767 = vmatpush1.msra.mxu0 0.0
    %2768 = vmatprep.subr.mxu0 0.0
    %2769 = vmatpush1.msra.mxu0 0.0
    %2770 = vmatprep.subr.mxu0 0.0
    %2771 = vmatpush1.msra.mxu0 0.0
    %2772 = vmatprep.subr.mxu0 0.0
    %2773 = vmatpush1.msra.mxu0 0.0
    %2774 = vmatprep.subr.mxu0 %v1196
    %2775 = vmatpush1.msra.mxu0 %v1195
    %2776 = vmatprep.subr.mxu0 %v1194
    %2777 = vmatpush1.msra.mxu0 %v1193
    %2778 = vmatprep.subr.mxu0 %v1192
    %2779 = vmatpush1.msra.mxu0 %v1191
    %2780 = vmatprep.subr.mxu0 %v1190
    %2781 = vmatpush1.msra.mxu0 %v1189
    %2782 = vmatprep.subr.mxu0 %v1188
    %2783 = vmatpush1.msra.mxu0 %v1187
    %2784 = vmatprep.subr.mxu0 %v1186
    %2785 = vmatpush1.msra.mxu0 %v1185
    %2786 = vmatprep.subr.mxu0 %v1184
    %2787 = vmatpush1.msra.mxu0 %v1183
    %2788 = vmatprep.subr.mxu0 %v1182
    %2789 = vmatpush1.msra.mxu0 %v1181
    %2790 = vmatprep.subr.mxu0 0.0
    %2791 = vmatpush2.msra.mxu0 0.0
    %2792 = vmatprep.subr.mxu0 0.0
    %2793 = vmatpush2.msra.mxu0 0.0
    %2794 = vmatprep.subr.mxu0 0.0
    %2795 = vmatpush2.msra.mxu0 0.0
    %2796 = vmatprep.subr.mxu0 0.0
    %2797 = vmatpush2.msra.mxu0 0.0
    %2798 = vmatprep.subr.mxu0 0.0
    %2799 = vmatpush2.msra.mxu0 0.0
    %2800 = vmatprep.subr.mxu0 0.0
    %2801 = vmatpush2.msra.mxu0 0.0
    %2802 = vmatprep.subr.mxu0 0.0
    %2803 = vmatpush2.msra.mxu0 0.0
    %2804 = vmatprep.subr.mxu0 0.0
    %2805 = vmatpush2.msra.mxu0 0.0
    %2806 = vmatprep.subr.mxu0 0.0
    %2807 = vmatpush2.msra.mxu0 0.0
    %2808 = vmatprep.subr.mxu0 0.0
    %2809 = vmatpush2.msra.mxu0 0.0
    %2810 = vmatprep.subr.mxu0 0.0
    %2811 = vmatpush2.msra.mxu0 0.0
    %2812 = vmatprep.subr.mxu0 0.0
    %2813 = vmatpush2.msra.mxu0 0.0
    %2814 = vmatprep.subr.mxu0 0.0
    %2815 = vmatpush2.msra.mxu0 0.0
    %2816 = vmatprep.subr.mxu0 0.0
    %2817 = vmatpush2.msra.mxu0 0.0
    %2818 = vmatprep.subr.mxu0 0.0
    %2819 = vmatpush2.msra.mxu0 0.0
    %2820 = vmatprep.subr.mxu0 0.0
    %2821 = vmatpush2.msra.mxu0 0.0
    %2822 = vmatprep.mubr.f32.mxu0 0.0
    %2823 = vmatmul.mubr.f32.gmra.mxu0 %v2756
    %v2824 = vpop.f32.mrf.mxu0
    %v2825 = vadd.f32 0.0, %v2824
    %v2826 = vpop.f32.mrf.mxu0
    %v2827 = vadd.f32 0.0, %v2826
    %2828 = vdwg.mxu0
    %v2829 = vadd.f32 %v1155, %v2825
    %v2830 = vadd.f32 %v1157, %v2827
    %v2831 = vxor.u32 %v2829, 2147483648
    %v2832 = vxor.u32 %v2830, 2147483648
    %v2833 = vmul.f32 %v2831, 1.442695
    %v2834 = vpow.pop %v2833
    %v2835 = vmul.f32 %v2832, 1.442695
    %v2836 = vpow.pop %v2835
    %v2837 = vadd.f32 %v2834, 1.0
    %v2838 = vadd.f32 %v2836, 1.0
    %v2839 = vrcp.pop %v2837
    %v2840 = vmul.f32 1.0, %v2839
    %v2841 = vrcp.pop %v2838
    %v2842 = vmul.f32 1.0, %v2841
    %v2843 = vtanh.pop %v2830
    %v2845 = vrot.slane %v2629, 2
    %v2847 = vmul.f32 %v2840, %v2845
    %2849 = vrot.lane.b32.xlu0 %v2843, 64
    %v2850 = vpop.permute.xlu0 %2849
    %v2852 = vmul.f32 %v2840, %v2850
    %2854 = vrot.lane.b32.xlu0 %v2852, 64
    %v2855 = vpop.permute.xlu0 %2854
    %v2857 = vadd.f32 %v2847, %v2855
    %v2858 = vtanh.pop %v2857
    %2860 = vrot.lane.b32.xlu0 %v2858, 64
    %v2861 = vpop.permute.xlu0 %2860
    %v2863 = vmul.f32 %v2842, %v2861
    %2864 = vst.msk [vmem:[#allocation4] sm:$0x3] %vm1217, %v2863
    %v2865 = vld [vmem:[#allocation3] sm:$0xff]
    %v2866 = vld [vmem:[#allocation3 + $0x8] sm:$0xff]
    %v2867 = vld [vmem:[#allocation4] sm:$0xff]
    %v2868 = vld [vmem:[#allocation4 + $0x8] sm:$0xff]
    %v2869 = vld [vmem:[#allocation16] sm:$0xff]
    %v2870 = vld [vmem:[#allocation16 + $0x8] sm:$0xff]
    %v2871 = vld [vmem:[#allocation16 + $0x10] sm:$0xff]
    %v2872 = vld [vmem:[#allocation16 + $0x18] sm:$0xff]
    %v2873 = vld [vmem:[#allocation16 + $0x20] sm:$0xff]
    %v2874 = vld [vmem:[#allocation16 + $0x28] sm:$0xff]
    %v2875 = vld [vmem:[#allocation16 + $0x30] sm:$0xff]
    %v2876 = vld [vmem:[#allocation16 + $0x38] sm:$0xff]
    %v2877 = vld [vmem:[#allocation16 + $0x40] sm:$0xff]
    %v2878 = vld [vmem:[#allocation16 + $0x48] sm:$0xff]
    %v2879 = vld [vmem:[#allocation16 + $0x50] sm:$0xff]
    %v2880 = vld [vmem:[#allocation16 + $0x58] sm:$0xff]
    %v2881 = vld [vmem:[#allocation16 + $0x60] sm:$0xff]
    %v2882 = vld [vmem:[#allocation16 + $0x68] sm:$0xff]
    %v2883 = vld [vmem:[#allocation16 + $0x70] sm:$0xff]
    %v2884 = vld [vmem:[#allocation16 + $0x78] sm:$0xff]
    %v2885 = vld [vmem:[#allocation16 + $0x80] sm:$0xff]
    %v2886 = vld [vmem:[#allocation16 + $0x88] sm:$0xff]
    %v2887 = vld [vmem:[#allocation16 + $0x90] sm:$0xff]
    %v2888 = vld [vmem:[#allocation16 + $0x98] sm:$0xff]
    %v2889 = vld [vmem:[#allocation16 + $0xa0] sm:$0xff]
    %v2890 = vld [vmem:[#allocation16 + $0xa8] sm:$0xff]
    %v2891 = vld [vmem:[#allocation16 + $0xb0] sm:$0xff]
    %v2892 = vld [vmem:[#allocation16 + $0xb8] sm:$0xff]
    %v2893 = vld [vmem:[#allocation16 + $0xc0] sm:$0xff]
    %v2894 = vld [vmem:[#allocation16 + $0xc8] sm:$0xff]
    %v2895 = vld [vmem:[#allocation16 + $0xd0] sm:$0xff]
    %v2896 = vld [vmem:[#allocation16 + $0xd8] sm:$0xff]
    %v2897 = vld [vmem:[#allocation16 + $0xe0] sm:$0xff]
    %v2898 = vld [vmem:[#allocation16 + $0xe8] sm:$0xff]
    %v2899 = vld [vmem:[#allocation16 + $0xf0] sm:$0xff]
    %v2900 = vld [vmem:[#allocation16 + $0xf8] sm:$0xff]
    %v2902 = vsel %vm1241, %v2867, 0
    %v2905 = vsel %vm1241, %v2868, 0
    %2907 = vmatprep.subr.mxu0 0.0
    %2908 = vmatpush1.msra.mxu0 0.0
    %2909 = vmatprep.subr.mxu0 0.0
    %2910 = vmatpush1.msra.mxu0 0.0
    %2911 = vmatprep.subr.mxu0 0.0
    %2912 = vmatpush1.msra.mxu0 0.0
    %2913 = vmatprep.subr.mxu0 0.0
    %2914 = vmatpush1.msra.mxu0 0.0
    %2915 = vmatprep.subr.mxu0 0.0
    %2916 = vmatpush1.msra.mxu0 0.0
    %2917 = vmatprep.subr.mxu0 0.0
    %2918 = vmatpush1.msra.mxu0 0.0
    %2919 = vmatprep.subr.mxu0 0.0
    %2920 = vmatpush1.msra.mxu0 0.0
    %2921 = vmatprep.subr.mxu0 0.0
    %2922 = vmatpush1.msra.mxu0 0.0
    %2923 = vmatprep.subr.mxu0 %v2900
    %2924 = vmatpush1.msra.mxu0 %v2899
    %2925 = vmatprep.subr.mxu0 %v2898
    %2926 = vmatpush1.msra.mxu0 %v2897
    %2927 = vmatprep.subr.mxu0 %v2896
    %2928 = vmatpush1.msra.mxu0 %v2895
    %2929 = vmatprep.subr.mxu0 %v2894
    %2930 = vmatpush1.msra.mxu0 %v2893
    %2931 = vmatprep.subr.mxu0 %v2892
    %2932 = vmatpush1.msra.mxu0 %v2891
    %2933 = vmatprep.subr.mxu0 %v2890
    %2934 = vmatpush1.msra.mxu0 %v2889
    %2935 = vmatprep.subr.mxu0 %v2888
    %2936 = vmatpush1.msra.mxu0 %v2887
    %2937 = vmatprep.subr.mxu0 %v2886
    %2938 = vmatpush1.msra.mxu0 %v2885
    %2939 = vmatprep.subr.mxu0 0.0
    %2940 = vmatpush2.msra.mxu0 0.0
    %2941 = vmatprep.subr.mxu0 0.0
    %2942 = vmatpush2.msra.mxu0 0.0
    %2943 = vmatprep.subr.mxu0 0.0
    %2944 = vmatpush2.msra.mxu0 0.0
    %2945 = vmatprep.subr.mxu0 0.0
    %2946 = vmatpush2.msra.mxu0 0.0
    %2947 = vmatprep.subr.mxu0 0.0
    %2948 = vmatpush2.msra.mxu0 0.0
    %2949 = vmatprep.subr.mxu0 0.0
    %2950 = vmatpush2.msra.mxu0 0.0
    %2951 = vmatprep.subr.mxu0 0.0
    %2952 = vmatpush2.msra.mxu0 0.0
    %2953 = vmatprep.subr.mxu0 0.0
    %2954 = vmatpush2.msra.mxu0 0.0
    %2955 = vmatprep.subr.mxu0 0.0
    %2956 = vmatpush2.msra.mxu0 0.0
    %2957 = vmatprep.subr.mxu0 0.0
    %2958 = vmatpush2.msra.mxu0 0.0
    %2959 = vmatprep.subr.mxu0 0.0
    %2960 = vmatpush2.msra.mxu0 0.0
    %2961 = vmatprep.subr.mxu0 0.0
    %2962 = vmatpush2.msra.mxu0 0.0
    %2963 = vmatprep.subr.mxu0 0.0
    %2964 = vmatpush2.msra.mxu0 0.0
    %2965 = vmatprep.subr.mxu0 0.0
    %2966 = vmatpush2.msra.mxu0 0.0
    %2967 = vmatprep.subr.mxu0 0.0
    %2968 = vmatpush2.msra.mxu0 0.0
    %2969 = vmatprep.subr.mxu0 0.0
    %2970 = vmatpush2.msra.mxu0 0.0
    %2971 = vmatprep.mubr.f32.mxu0 0.0
    %2972 = vmatmul.mubr.f32.gmra.mxu0 %v2902
    %v2973 = vpop.f32.mrf.mxu0
    %v2974 = vadd.f32 0.0, %v2973
    %v2975 = vpop.f32.mrf.mxu0
    %v2976 = vadd.f32 0.0, %v2975
    %2977 = vmatprep.mubr.f32.mxu0 0.0
    %2978 = vmatmul.mubr.f32.gmra.mxu0 %v2905
    %v2979 = vpop.f32.mrf.mxu0
    %v2980 = vadd.f32 0.0, %v2979
    %v2981 = vpop.f32.mrf.mxu0
    %v2982 = vadd.f32 0.0, %v2981
    %2983 = vdwg.mxu0
    %v2985 = vsel %vm1241, %v2865, 0
    %v2988 = vsel %vm1241, %v2866, 0
    %2990 = vmatprep.subr.mxu0 0.0
    %2991 = vmatpush1.msra.mxu0 0.0
    %2992 = vmatprep.subr.mxu0 0.0
    %2993 = vmatpush1.msra.mxu0 0.0
    %2994 = vmatprep.subr.mxu0 0.0
    %2995 = vmatpush1.msra.mxu0 0.0
    %2996 = vmatprep.subr.mxu0 0.0
    %2997 = vmatpush1.msra.mxu0 0.0
    %2998 = vmatprep.subr.mxu0 0.0
    %2999 = vmatpush1.msra.mxu0 0.0
    %3000 = vmatprep.subr.mxu0 0.0
    %3001 = vmatpush1.msra.mxu0 0.0
    %3002 = vmatprep.subr.mxu0 0.0
    %3003 = vmatpush1.msra.mxu0 0.0
    %3004 = vmatprep.subr.mxu0 0.0
    %3005 = vmatpush1.msra.mxu0 0.0
    %3006 = vmatprep.subr.mxu0 %v2884
    %3007 = vmatpush1.msra.mxu0 %v2883
    %3008 = vmatprep.subr.mxu0 %v2882
    %3009 = vmatpush1.msra.mxu0 %v2881
    %3010 = vmatprep.subr.mxu0 %v2880
    %3011 = vmatpush1.msra.mxu0 %v2879
    %3012 = vmatprep.subr.mxu0 %v2878
    %3013 = vmatpush1.msra.mxu0 %v2877
    %3014 = vmatprep.subr.mxu0 %v2876
    %3015 = vmatpush1.msra.mxu0 %v2875
    %3016 = vmatprep.subr.mxu0 %v2874
    %3017 = vmatpush1.msra.mxu0 %v2873
    %3018 = vmatprep.subr.mxu0 %v2872
    %3019 = vmatpush1.msra.mxu0 %v2871
    %3020 = vmatprep.subr.mxu0 %v2870
    %3021 = vmatpush1.msra.mxu0 %v2869
    %3022 = vmatprep.subr.mxu0 0.0
    %3023 = vmatpush2.msra.mxu0 0.0
    %3024 = vmatprep.subr.mxu0 0.0
    %3025 = vmatpush2.msra.mxu0 0.0
    %3026 = vmatprep.subr.mxu0 0.0
    %3027 = vmatpush2.msra.mxu0 0.0
    %3028 = vmatprep.subr.mxu0 0.0
    %3029 = vmatpush2.msra.mxu0 0.0
    %3030 = vmatprep.subr.mxu0 0.0
    %3031 = vmatpush2.msra.mxu0 0.0
    %3032 = vmatprep.subr.mxu0 0.0
    %3033 = vmatpush2.msra.mxu0 0.0
    %3034 = vmatprep.subr.mxu0 0.0
    %3035 = vmatpush2.msra.mxu0 0.0
    %3036 = vmatprep.subr.mxu0 0.0
    %3037 = vmatpush2.msra.mxu0 0.0
    %3038 = vmatprep.subr.mxu0 0.0
    %3039 = vmatpush2.msra.mxu0 0.0
    %3040 = vmatprep.subr.mxu0 0.0
    %3041 = vmatpush2.msra.mxu0 0.0
    %3042 = vmatprep.subr.mxu0 0.0
    %3043 = vmatpush2.msra.mxu0 0.0
    %3044 = vmatprep.subr.mxu0 0.0
    %3045 = vmatpush2.msra.mxu0 0.0
    %3046 = vmatprep.subr.mxu0 0.0
    %3047 = vmatpush2.msra.mxu0 0.0
    %3048 = vmatprep.subr.mxu0 0.0
    %3049 = vmatpush2.msra.mxu0 0.0
    %3050 = vmatprep.subr.mxu0 0.0
    %3051 = vmatpush2.msra.mxu0 0.0
    %3052 = vmatprep.subr.mxu0 0.0
    %3053 = vmatpush2.msra.mxu0 0.0
    %3054 = vmatprep.mubr.f32.mxu0 0.0
    %3055 = vmatmul.mubr.f32.gmra.mxu0 %v2985
    %v3056 = vpop.f32.mrf.mxu0
    %v3057 = vadd.f32 %v2974, %v3056
    %v3058 = vpop.f32.mrf.mxu0
    %v3059 = vadd.f32 %v2976, %v3058
    %3060 = vmatprep.mubr.f32.mxu0 0.0
    %3061 = vmatmul.mubr.f32.gmra.mxu0 %v2988
    %v3062 = vpop.f32.mrf.mxu0
    %v3063 = vadd.f32 %v2980, %v3062
    %v3064 = vpop.f32.mrf.mxu0
    %v3065 = vadd.f32 %v2982, %v3064
    %3066 = vdwg.mxu0
    %v3067 = vld [vmem:[#allocation19] sm:$0x3]
    %v3069 = vlaneseq
    %v3070 = vshrl.u32 %v3069, 7
    %v3071 = vsub.s32 0, %v3070
    %v3072 = vrot.slane %v3067, %v3071
    %v3073 = vlaneseq
    %v3074 = vshrl.u32 %v3073, 7
    %v3075 = vsub.s32 1, %v3074
    %v3076 = vrot.slane %v3067, %v3075
    %v3079 = vadd.f32 %v3057, %v3072
    %v3080 = vadd.f32 %v3059, %v3076
    %v3081 = vadd.f32 %v3063, %v3072
    %v3082 = vadd.f32 %v3065, %v3076
    %v3083 = vld [vmem:[#allocation17] sm:$0xff]
    %v3084 = vld [vmem:[#allocation17 + $0x8] sm:$0xff]
    %v3085 = vld [vmem:[#allocation17 + $0x10] sm:$0xff]
    %v3086 = vld [vmem:[#allocation17 + $0x18] sm:$0xff]
    %v3087 = vld [vmem:[#allocation17 + $0x20] sm:$0xff]
    %v3088 = vld [vmem:[#allocation17 + $0x28] sm:$0xff]
    %v3089 = vld [vmem:[#allocation17 + $0x30] sm:$0xff]
    %v3090 = vld [vmem:[#allocation17 + $0x38] sm:$0xff]
    %v3091 = vld [vmem:[#allocation17 + $0x40] sm:$0xff]
    %v3092 = vld [vmem:[#allocation17 + $0x48] sm:$0xff]
    %v3093 = vld [vmem:[#allocation17 + $0x50] sm:$0xff]
    %v3094 = vld [vmem:[#allocation17 + $0x58] sm:$0xff]
    %v3095 = vld [vmem:[#allocation17 + $0x60] sm:$0xff]
    %v3096 = vld [vmem:[#allocation17 + $0x68] sm:$0xff]
    %v3097 = vld [vmem:[#allocation17 + $0x70] sm:$0xff]
    %v3098 = vld [vmem:[#allocation17 + $0x78] sm:$0xff]
    %v3099 = vxor.u32 %v3079, 2147483648
    %v3100 = vxor.u32 %v3080, 2147483648
    %v3101 = vmul.f32 %v3099, 1.442695
    %v3102 = vpow.pop %v3101
    %v3103 = vmul.f32 %v3100, 1.442695
    %v3104 = vpow.pop %v3103
    %v3105 = vadd.f32 %v3102, 1.0
    %v3106 = vadd.f32 %v3104, 1.0
    %v3107 = vrcp.pop %v3105
    %v3108 = vmul.f32 1.0, %v3107
    %v3109 = vrcp.pop %v3106
    %v3110 = vmul.f32 1.0, %v3109
    %v3111 = vtanh.pop %v3080
    %3113 = vrot.lane.b32.xlu0 %v3111, 64
    %v3114 = vpop.permute.xlu0 %3113
    %v3116 = vmul.f32 %v3108, %v3114
    %v3117 = vtanh.pop %v3116
    %v3118 = vmul.f32 %v3110, %v3117
    %v3120 = vsel %vm1241, %v3118, 0
    %3122 = vmatprep.subr.mxu0 0.0
    %3123 = vmatpush1.msra.mxu0 0.0
    %3124 = vmatprep.subr.mxu0 0.0
    %3125 = vmatpush1.msra.mxu0 0.0
    %3126 = vmatprep.subr.mxu0 0.0
    %3127 = vmatpush1.msra.mxu0 0.0
    %3128 = vmatprep.subr.mxu0 0.0
    %3129 = vmatpush1.msra.mxu0 0.0
    %3130 = vmatprep.subr.mxu0 0.0
    %3131 = vmatpush1.msra.mxu0 0.0
    %3132 = vmatprep.subr.mxu0 0.0
    %3133 = vmatpush1.msra.mxu0 0.0
    %3134 = vmatprep.subr.mxu0 0.0
    %3135 = vmatpush1.msra.mxu0 0.0
    %3136 = vmatprep.subr.mxu0 0.0
    %3137 = vmatpush1.msra.mxu0 0.0
    %3138 = vmatprep.subr.mxu0 %v3098
    %3139 = vmatpush1.msra.mxu0 %v3097
    %3140 = vmatprep.subr.mxu0 %v3096
    %3141 = vmatpush1.msra.mxu0 %v3095
    %3142 = vmatprep.subr.mxu0 %v3094
    %3143 = vmatpush1.msra.mxu0 %v3093
    %3144 = vmatprep.subr.mxu0 %v3092
    %3145 = vmatpush1.msra.mxu0 %v3091
    %3146 = vmatprep.subr.mxu0 %v3090
    %3147 = vmatpush1.msra.mxu0 %v3089
    %3148 = vmatprep.subr.mxu0 %v3088
    %3149 = vmatpush1.msra.mxu0 %v3087
    %3150 = vmatprep.subr.mxu0 %v3086
    %3151 = vmatpush1.msra.mxu0 %v3085
    %3152 = vmatprep.subr.mxu0 %v3084
    %3153 = vmatpush1.msra.mxu0 %v3083
    %3154 = vmatprep.subr.mxu0 0.0
    %3155 = vmatpush2.msra.mxu0 0.0
    %3156 = vmatprep.subr.mxu0 0.0
    %3157 = vmatpush2.msra.mxu0 0.0
    %3158 = vmatprep.subr.mxu0 0.0
    %3159 = vmatpush2.msra.mxu0 0.0
    %3160 = vmatprep.subr.mxu0 0.0
    %3161 = vmatpush2.msra.mxu0 0.0
    %3162 = vmatprep.subr.mxu0 0.0
    %3163 = vmatpush2.msra.mxu0 0.0
    %3164 = vmatprep.subr.mxu0 0.0
    %3165 = vmatpush2.msra.mxu0 0.0
    %3166 = vmatprep.subr.mxu0 0.0
    %3167 = vmatpush2.msra.mxu0 0.0
    %3168 = vmatprep.subr.mxu0 0.0
    %3169 = vmatpush2.msra.mxu0 0.0
    %3170 = vmatprep.subr.mxu0 0.0
    %3171 = vmatpush2.msra.mxu0 0.0
    %3172 = vmatprep.subr.mxu0 0.0
    %3173 = vmatpush2.msra.mxu0 0.0
    %3174 = vmatprep.subr.mxu0 0.0
    %3175 = vmatpush2.msra.mxu0 0.0
    %3176 = vmatprep.subr.mxu0 0.0
    %3177 = vmatpush2.msra.mxu0 0.0
    %3178 = vmatprep.subr.mxu0 0.0
    %3179 = vmatpush2.msra.mxu0 0.0
    %3180 = vmatprep.subr.mxu0 0.0
    %3181 = vmatpush2.msra.mxu0 0.0
    %3182 = vmatprep.subr.mxu0 0.0
    %3183 = vmatpush2.msra.mxu0 0.0
    %3184 = vmatprep.subr.mxu0 0.0
    %3185 = vmatpush2.msra.mxu0 0.0
    %3186 = vmatprep.mubr.f32.mxu0 0.0
    %3187 = vmatmul.mubr.f32.gmra.mxu0 %v3120
    %v3188 = vpop.f32.mrf.mxu0
    %v3189 = vadd.f32 0.0, %v3188
    %v3190 = vpop.f32.mrf.mxu0
    %v3191 = vadd.f32 0.0, %v3190
    %3192 = vdwg.mxu0
    %v3195 = vrot.slane %v3189, 6
    %v3196 = vrot.slane %v3191, 6
    %v3199 = vadd.f32 %v3079, %v3195
    %v3200 = vadd.f32 %v3080, %v3196
    %v3201 = vxor.u32 %v3199, 2147483648
    %v3202 = vxor.u32 %v3200, 2147483648
    %v3203 = vmul.f32 %v3201, 1.442695
    %v3204 = vpow.pop %v3203
    %v3205 = vmul.f32 %v3202, 1.442695
    %v3206 = vpow.pop %v3205
    %v3207 = vadd.f32 %v3204, 1.0
    %v3208 = vadd.f32 %v3206, 1.0
    %v3209 = vrcp.pop %v3207
    %v3210 = vmul.f32 1.0, %v3209
    %v3211 = vrcp.pop %v3208
    %v3212 = vmul.f32 1.0, %v3211
    %v3213 = vtanh.pop %v3200
    %v3215 = vrot.slane %v3116, 6
    %3216 = vrot.lane.b32.xlu0 %v3215, 64
    %v3217 = vpop.permute.xlu0 %3216
    %v3219 = vmul.f32 %v3210, %v3217
    %3221 = vrot.lane.b32.xlu0 %v3213, 64
    %v3222 = vpop.permute.xlu0 %3221
    %v3224 = vmul.f32 %v3210, %v3222
    %3226 = vrot.lane.b32.xlu0 %v3224, 64
    %v3227 = vpop.permute.xlu0 %3226
    %v3229 = vadd.f32 %v3219, %v3227
    %v3230 = vtanh.pop %v3229
    %3232 = vrot.lane.b32.xlu0 %v3230, 64
    %v3233 = vpop.permute.xlu0 %3232
    %v3235 = vmul.f32 %v3212, %v3233
    %v3237 = vrot.slane %v3235, 2
    %v3238 = vsel %vm1241, %v3237, 0
    %3240 = vmatprep.subr.mxu0 0.0
    %3241 = vmatpush1.msra.mxu0 0.0
    %3242 = vmatprep.subr.mxu0 0.0
    %3243 = vmatpush1.msra.mxu0 0.0
    %3244 = vmatprep.subr.mxu0 0.0
    %3245 = vmatpush1.msra.mxu0 0.0
    %3246 = vmatprep.subr.mxu0 0.0
    %3247 = vmatpush1.msra.mxu0 0.0
    %3248 = vmatprep.subr.mxu0 0.0
    %3249 = vmatpush1.msra.mxu0 0.0
    %3250 = vmatprep.subr.mxu0 0.0
    %3251 = vmatpush1.msra.mxu0 0.0
    %3252 = vmatprep.subr.mxu0 0.0
    %3253 = vmatpush1.msra.mxu0 0.0
    %3254 = vmatprep.subr.mxu0 0.0
    %3255 = vmatpush1.msra.mxu0 0.0
    %3256 = vmatprep.subr.mxu0 %v3098
    %3257 = vmatpush1.msra.mxu0 %v3097
    %3258 = vmatprep.subr.mxu0 %v3096
    %3259 = vmatpush1.msra.mxu0 %v3095
    %3260 = vmatprep.subr.mxu0 %v3094
    %3261 = vmatpush1.msra.mxu0 %v3093
    %3262 = vmatprep.subr.mxu0 %v3092
    %3263 = vmatpush1.msra.mxu0 %v3091
    %3264 = vmatprep.subr.mxu0 %v3090
    %3265 = vmatpush1.msra.mxu0 %v3089
    %3266 = vmatprep.subr.mxu0 %v3088
    %3267 = vmatpush1.msra.mxu0 %v3087
    %3268 = vmatprep.subr.mxu0 %v3086
    %3269 = vmatpush1.msra.mxu0 %v3085
    %3270 = vmatprep.subr.mxu0 %v3084
    %3271 = vmatpush1.msra.mxu0 %v3083
    %3272 = vmatprep.subr.mxu0 0.0
    %3273 = vmatpush2.msra.mxu0 0.0
    %3274 = vmatprep.subr.mxu0 0.0
    %3275 = vmatpush2.msra.mxu0 0.0
    %3276 = vmatprep.subr.mxu0 0.0
    %3277 = vmatpush2.msra.mxu0 0.0
    %3278 = vmatprep.subr.mxu0 0.0
    %3279 = vmatpush2.msra.mxu0 0.0
    %3280 = vmatprep.subr.mxu0 0.0
    %3281 = vmatpush2.msra.mxu0 0.0
    %3282 = vmatprep.subr.mxu0 0.0
    %3283 = vmatpush2.msra.mxu0 0.0
    %3284 = vmatprep.subr.mxu0 0.0
    %3285 = vmatpush2.msra.mxu0 0.0
    %3286 = vmatprep.subr.mxu0 0.0
    %3287 = vmatpush2.msra.mxu0 0.0
    %3288 = vmatprep.subr.mxu0 0.0
    %3289 = vmatpush2.msra.mxu0 0.0
    %3290 = vmatprep.subr.mxu0 0.0
    %3291 = vmatpush2.msra.mxu0 0.0
    %3292 = vmatprep.subr.mxu0 0.0
    %3293 = vmatpush2.msra.mxu0 0.0
    %3294 = vmatprep.subr.mxu0 0.0
    %3295 = vmatpush2.msra.mxu0 0.0
    %3296 = vmatprep.subr.mxu0 0.0
    %3297 = vmatpush2.msra.mxu0 0.0
    %3298 = vmatprep.subr.mxu0 0.0
    %3299 = vmatpush2.msra.mxu0 0.0
    %3300 = vmatprep.subr.mxu0 0.0
    %3301 = vmatpush2.msra.mxu0 0.0
    %3302 = vmatprep.subr.mxu0 0.0
    %3303 = vmatpush2.msra.mxu0 0.0
    %3304 = vmatprep.mubr.f32.mxu0 0.0
    %3305 = vmatmul.mubr.f32.gmra.mxu0 %v3238
    %v3306 = vpop.f32.mrf.mxu0
    %v3307 = vadd.f32 0.0, %v3306
    %v3308 = vpop.f32.mrf.mxu0
    %v3309 = vadd.f32 0.0, %v3308
    %3310 = vdwg.mxu0
    %v3313 = vrot.slane %v3307, 4
    %v3314 = vrot.slane %v3309, 4
    %v3317 = vadd.f32 %v3079, %v3313
    %v3318 = vadd.f32 %v3080, %v3314
    %v3319 = vxor.u32 %v3317, 2147483648
    %v3320 = vxor.u32 %v3318, 2147483648
    %v3321 = vmul.f32 %v3319, 1.442695
    %v3322 = vpow.pop %v3321
    %v3323 = vmul.f32 %v3320, 1.442695
    %v3324 = vpow.pop %v3323
    %v3325 = vadd.f32 %v3322, 1.0
    %v3326 = vadd.f32 %v3324, 1.0
    %v3327 = vrcp.pop %v3325
    %v3328 = vmul.f32 1.0, %v3327
    %v3329 = vrcp.pop %v3326
    %v3330 = vmul.f32 1.0, %v3329
    %v3331 = vtanh.pop %v3318
    %v3333 = vrot.slane %v3229, 6
    %v3335 = vmul.f32 %v3328, %v3333
    %3337 = vrot.lane.b32.xlu0 %v3331, 64
    %v3338 = vpop.permute.xlu0 %3337
    %v3340 = vmul.f32 %v3328, %v3338
    %3342 = vrot.lane.b32.xlu0 %v3340, 64
    %v3343 = vpop.permute.xlu0 %3342
    %v3345 = vadd.f32 %v3335, %v3343
    %v3346 = vtanh.pop %v3345
    %3348 = vrot.lane.b32.xlu0 %v3346, 64
    %v3349 = vpop.permute.xlu0 %3348
    %v3351 = vmul.f32 %v3330, %v3349
    %v3353 = vrot.slane %v3351, 4
    %v3354 = vsel %vm1241, %v3353, 0
    %3356 = vmatprep.subr.mxu0 0.0
    %3357 = vmatpush1.msra.mxu0 0.0
    %3358 = vmatprep.subr.mxu0 0.0
    %3359 = vmatpush1.msra.mxu0 0.0
    %3360 = vmatprep.subr.mxu0 0.0
    %3361 = vmatpush1.msra.mxu0 0.0
    %3362 = vmatprep.subr.mxu0 0.0
    %3363 = vmatpush1.msra.mxu0 0.0
    %3364 = vmatprep.subr.mxu0 0.0
    %3365 = vmatpush1.msra.mxu0 0.0
    %3366 = vmatprep.subr.mxu0 0.0
    %3367 = vmatpush1.msra.mxu0 0.0
    %3368 = vmatprep.subr.mxu0 0.0
    %3369 = vmatpush1.msra.mxu0 0.0
    %3370 = vmatprep.subr.mxu0 0.0
    %3371 = vmatpush1.msra.mxu0 0.0
    %3372 = vmatprep.subr.mxu0 %v3098
    %3373 = vmatpush1.msra.mxu0 %v3097
    %3374 = vmatprep.subr.mxu0 %v3096
    %3375 = vmatpush1.msra.mxu0 %v3095
    %3376 = vmatprep.subr.mxu0 %v3094
    %3377 = vmatpush1.msra.mxu0 %v3093
    %3378 = vmatprep.subr.mxu0 %v3092
    %3379 = vmatpush1.msra.mxu0 %v3091
    %3380 = vmatprep.subr.mxu0 %v3090
    %3381 = vmatpush1.msra.mxu0 %v3089
    %3382 = vmatprep.subr.mxu0 %v3088
    %3383 = vmatpush1.msra.mxu0 %v3087
    %3384 = vmatprep.subr.mxu0 %v3086
    %3385 = vmatpush1.msra.mxu0 %v3085
    %3386 = vmatprep.subr.mxu0 %v3084
    %3387 = vmatpush1.msra.mxu0 %v3083
    %3388 = vmatprep.subr.mxu0 0.0
    %3389 = vmatpush2.msra.mxu0 0.0
    %3390 = vmatprep.subr.mxu0 0.0
    %3391 = vmatpush2.msra.mxu0 0.0
    %3392 = vmatprep.subr.mxu0 0.0
    %3393 = vmatpush2.msra.mxu0 0.0
    %3394 = vmatprep.subr.mxu0 0.0
    %3395 = vmatpush2.msra.mxu0 0.0
    %3396 = vmatprep.subr.mxu0 0.0
    %3397 = vmatpush2.msra.mxu0 0.0
    %3398 = vmatprep.subr.mxu0 0.0
    %3399 = vmatpush2.msra.mxu0 0.0
    %3400 = vmatprep.subr.mxu0 0.0
    %3401 = vmatpush2.msra.mxu0 0.0
    %3402 = vmatprep.subr.mxu0 0.0
    %3403 = vmatpush2.msra.mxu0 0.0
    %3404 = vmatprep.subr.mxu0 0.0
    %3405 = vmatpush2.msra.mxu0 0.0
    %3406 = vmatprep.subr.mxu0 0.0
    %3407 = vmatpush2.msra.mxu0 0.0
    %3408 = vmatprep.subr.mxu0 0.0
    %3409 = vmatpush2.msra.mxu0 0.0
    %3410 = vmatprep.subr.mxu0 0.0
    %3411 = vmatpush2.msra.mxu0 0.0
    %3412 = vmatprep.subr.mxu0 0.0
    %3413 = vmatpush2.msra.mxu0 0.0
    %3414 = vmatprep.subr.mxu0 0.0
    %3415 = vmatpush2.msra.mxu0 0.0
    %3416 = vmatprep.subr.mxu0 0.0
    %3417 = vmatpush2.msra.mxu0 0.0
    %3418 = vmatprep.subr.mxu0 0.0
    %3419 = vmatpush2.msra.mxu0 0.0
    %3420 = vmatprep.mubr.f32.mxu0 0.0
    %3421 = vmatmul.mubr.f32.gmra.mxu0 %v3354
    %v3422 = vpop.f32.mrf.mxu0
    %v3423 = vadd.f32 0.0, %v3422
    %v3424 = vpop.f32.mrf.mxu0
    %v3425 = vadd.f32 0.0, %v3424
    %3426 = vdwg.mxu0
    %v3429 = vrot.slane %v3423, 2
    %v3430 = vrot.slane %v3425, 2
    %v3433 = vadd.f32 %v3079, %v3429
    %v3434 = vadd.f32 %v3080, %v3430
    %v3435 = vxor.u32 %v3433, 2147483648
    %v3436 = vxor.u32 %v3434, 2147483648
    %v3437 = vmul.f32 %v3435, 1.442695
    %v3438 = vpow.pop %v3437
    %v3439 = vmul.f32 %v3436, 1.442695
    %v3440 = vpow.pop %v3439
    %v3441 = vadd.f32 %v3438, 1.0
    %v3442 = vadd.f32 %v3440, 1.0
    %v3443 = vrcp.pop %v3441
    %v3444 = vmul.f32 1.0, %v3443
    %v3445 = vrcp.pop %v3442
    %v3446 = vmul.f32 1.0, %v3445
    %v3447 = vtanh.pop %v3434
    %v3449 = vrot.slane %v3345, 6
    %v3451 = vmul.f32 %v3444, %v3449
    %3453 = vrot.lane.b32.xlu0 %v3447, 64
    %v3454 = vpop.permute.xlu0 %3453
    %v3456 = vmul.f32 %v3444, %v3454
    %3458 = vrot.lane.b32.xlu0 %v3456, 64
    %v3459 = vpop.permute.xlu0 %3458
    %v3461 = vadd.f32 %v3451, %v3459
    %v3462 = vtanh.pop %v3461
    %3464 = vrot.lane.b32.xlu0 %v3462, 64
    %v3465 = vpop.permute.xlu0 %3464
    %v3467 = vmul.f32 %v3446, %v3465
    %v3469 = vrot.slane %v3467, 6
    %v3470 = vsel %vm1241, %v3469, 0
    %3472 = vmatprep.subr.mxu0 0.0
    %3473 = vmatpush1.msra.mxu0 0.0
    %3474 = vmatprep.subr.mxu0 0.0
    %3475 = vmatpush1.msra.mxu0 0.0
    %3476 = vmatprep.subr.mxu0 0.0
    %3477 = vmatpush1.msra.mxu0 0.0
    %3478 = vmatprep.subr.mxu0 0.0
    %3479 = vmatpush1.msra.mxu0 0.0
    %3480 = vmatprep.subr.mxu0 0.0
    %3481 = vmatpush1.msra.mxu0 0.0
    %3482 = vmatprep.subr.mxu0 0.0
    %3483 = vmatpush1.msra.mxu0 0.0
    %3484 = vmatprep.subr.mxu0 0.0
    %3485 = vmatpush1.msra.mxu0 0.0
    %3486 = vmatprep.subr.mxu0 0.0
    %3487 = vmatpush1.msra.mxu0 0.0
    %3488 = vmatprep.subr.mxu0 %v3098
    %3489 = vmatpush1.msra.mxu0 %v3097
    %3490 = vmatprep.subr.mxu0 %v3096
    %3491 = vmatpush1.msra.mxu0 %v3095
    %3492 = vmatprep.subr.mxu0 %v3094
    %3493 = vmatpush1.msra.mxu0 %v3093
    %3494 = vmatprep.subr.mxu0 %v3092
    %3495 = vmatpush1.msra.mxu0 %v3091
    %3496 = vmatprep.subr.mxu0 %v3090
    %3497 = vmatpush1.msra.mxu0 %v3089
    %3498 = vmatprep.subr.mxu0 %v3088
    %3499 = vmatpush1.msra.mxu0 %v3087
    %3500 = vmatprep.subr.mxu0 %v3086
    %3501 = vmatpush1.msra.mxu0 %v3085
    %3502 = vmatprep.subr.mxu0 %v3084
    %3503 = vmatpush1.msra.mxu0 %v3083
    %3504 = vmatprep.subr.mxu0 0.0
    %3505 = vmatpush2.msra.mxu0 0.0
    %3506 = vmatprep.subr.mxu0 0.0
    %3507 = vmatpush2.msra.mxu0 0.0
    %3508 = vmatprep.subr.mxu0 0.0
    %3509 = vmatpush2.msra.mxu0 0.0
    %3510 = vmatprep.subr.mxu0 0.0
    %3511 = vmatpush2.msra.mxu0 0.0
    %3512 = vmatprep.subr.mxu0 0.0
    %3513 = vmatpush2.msra.mxu0 0.0
    %3514 = vmatprep.subr.mxu0 0.0
    %3515 = vmatpush2.msra.mxu0 0.0
    %3516 = vmatprep.subr.mxu0 0.0
    %3517 = vmatpush2.msra.mxu0 0.0
    %3518 = vmatprep.subr.mxu0 0.0
    %3519 = vmatpush2.msra.mxu0 0.0
    %3520 = vmatprep.subr.mxu0 0.0
    %3521 = vmatpush2.msra.mxu0 0.0
    %3522 = vmatprep.subr.mxu0 0.0
    %3523 = vmatpush2.msra.mxu0 0.0
    %3524 = vmatprep.subr.mxu0 0.0
    %3525 = vmatpush2.msra.mxu0 0.0
    %3526 = vmatprep.subr.mxu0 0.0
    %3527 = vmatpush2.msra.mxu0 0.0
    %3528 = vmatprep.subr.mxu0 0.0
    %3529 = vmatpush2.msra.mxu0 0.0
    %3530 = vmatprep.subr.mxu0 0.0
    %3531 = vmatpush2.msra.mxu0 0.0
    %3532 = vmatprep.subr.mxu0 0.0
    %3533 = vmatpush2.msra.mxu0 0.0
    %3534 = vmatprep.subr.mxu0 0.0
    %3535 = vmatpush2.msra.mxu0 0.0
    %3536 = vmatprep.mubr.f32.mxu0 0.0
    %3537 = vmatmul.mubr.f32.gmra.mxu0 %v3470
    %v3538 = vpop.f32.mrf.mxu0
    %v3539 = vadd.f32 0.0, %v3538
    %v3540 = vpop.f32.mrf.mxu0
    %v3541 = vadd.f32 0.0, %v3540
    %3542 = vdwg.mxu0
    %v3543 = vadd.f32 %v3081, %v3539
    %v3544 = vadd.f32 %v3082, %v3541
    %v3545 = vxor.u32 %v3543, 2147483648
    %v3546 = vxor.u32 %v3544, 2147483648
    %v3547 = vmul.f32 %v3545, 1.442695
    %v3548 = vpow.pop %v3547
    %v3549 = vmul.f32 %v3546, 1.442695
    %v3550 = vpow.pop %v3549
    %v3551 = vadd.f32 %v3548, 1.0
    %v3552 = vadd.f32 %v3550, 1.0
    %v3553 = vrcp.pop %v3551
    %v3554 = vmul.f32 1.0, %v3553
    %v3555 = vrcp.pop %v3552
    %v3556 = vmul.f32 1.0, %v3555
    %v3557 = vtanh.pop %v3544
    %v3559 = vrot.slane %v3461, 6
    %v3561 = vmul.f32 %v3554, %v3559
    %3563 = vrot.lane.b32.xlu0 %v3557, 64
    %v3564 = vpop.permute.xlu0 %3563
    %v3566 = vmul.f32 %v3554, %v3564
    %3568 = vrot.lane.b32.xlu0 %v3566, 64
    %v3569 = vpop.permute.xlu0 %3568
    %v3571 = vadd.f32 %v3561, %v3569
    %v3572 = vtanh.pop %v3571
    %3574 = vrot.lane.b32.xlu0 %v3572, 64
    %v3575 = vpop.permute.xlu0 %3574
    %v3577 = vmul.f32 %v3556, %v3575
    %v3579 = vsel %vm1241, %v3577, 0
    %3581 = vmatprep.subr.mxu0 0.0
    %3582 = vmatpush1.msra.mxu0 0.0
    %3583 = vmatprep.subr.mxu0 0.0
    %3584 = vmatpush1.msra.mxu0 0.0
    %3585 = vmatprep.subr.mxu0 0.0
    %3586 = vmatpush1.msra.mxu0 0.0
    %3587 = vmatprep.subr.mxu0 0.0
    %3588 = vmatpush1.msra.mxu0 0.0
    %3589 = vmatprep.subr.mxu0 0.0
    %3590 = vmatpush1.msra.mxu0 0.0
    %3591 = vmatprep.subr.mxu0 0.0
    %3592 = vmatpush1.msra.mxu0 0.0
    %3593 = vmatprep.subr.mxu0 0.0
    %3594 = vmatpush1.msra.mxu0 0.0
    %3595 = vmatprep.subr.mxu0 0.0
    %3596 = vmatpush1.msra.mxu0 0.0
    %3597 = vmatprep.subr.mxu0 %v3098
    %3598 = vmatpush1.msra.mxu0 %v3097
    %3599 = vmatprep.subr.mxu0 %v3096
    %3600 = vmatpush1.msra.mxu0 %v3095
    %3601 = vmatprep.subr.mxu0 %v3094
    %3602 = vmatpush1.msra.mxu0 %v3093
    %3603 = vmatprep.subr.mxu0 %v3092
    %3604 = vmatpush1.msra.mxu0 %v3091
    %3605 = vmatprep.subr.mxu0 %v3090
    %3606 = vmatpush1.msra.mxu0 %v3089
    %3607 = vmatprep.subr.mxu0 %v3088
    %3608 = vmatpush1.msra.mxu0 %v3087
    %3609 = vmatprep.subr.mxu0 %v3086
    %3610 = vmatpush1.msra.mxu0 %v3085
    %3611 = vmatprep.subr.mxu0 %v3084
    %3612 = vmatpush1.msra.mxu0 %v3083
    %3613 = vmatprep.subr.mxu0 0.0
    %3614 = vmatpush2.msra.mxu0 0.0
    %3615 = vmatprep.subr.mxu0 0.0
    %3616 = vmatpush2.msra.mxu0 0.0
    %3617 = vmatprep.subr.mxu0 0.0
    %3618 = vmatpush2.msra.mxu0 0.0
    %3619 = vmatprep.subr.mxu0 0.0
    %3620 = vmatpush2.msra.mxu0 0.0
    %3621 = vmatprep.subr.mxu0 0.0
    %3622 = vmatpush2.msra.mxu0 0.0
    %3623 = vmatprep.subr.mxu0 0.0
    %3624 = vmatpush2.msra.mxu0 0.0
    %3625 = vmatprep.subr.mxu0 0.0
    %3626 = vmatpush2.msra.mxu0 0.0
    %3627 = vmatprep.subr.mxu0 0.0
    %3628 = vmatpush2.msra.mxu0 0.0
    %3629 = vmatprep.subr.mxu0 0.0
    %3630 = vmatpush2.msra.mxu0 0.0
    %3631 = vmatprep.subr.mxu0 0.0
    %3632 = vmatpush2.msra.mxu0 0.0
    %3633 = vmatprep.subr.mxu0 0.0
    %3634 = vmatpush2.msra.mxu0 0.0
    %3635 = vmatprep.subr.mxu0 0.0
    %3636 = vmatpush2.msra.mxu0 0.0
    %3637 = vmatprep.subr.mxu0 0.0
    %3638 = vmatpush2.msra.mxu0 0.0
    %3639 = vmatprep.subr.mxu0 0.0
    %3640 = vmatpush2.msra.mxu0 0.0
    %3641 = vmatprep.subr.mxu0 0.0
    %3642 = vmatpush2.msra.mxu0 0.0
    %3643 = vmatprep.subr.mxu0 0.0
    %3644 = vmatpush2.msra.mxu0 0.0
    %3645 = vmatprep.mubr.f32.mxu0 0.0
    %3646 = vmatmul.mubr.f32.gmra.mxu0 %v3579
    %v3647 = vpop.f32.mrf.mxu0
    %v3648 = vadd.f32 0.0, %v3647
    %v3649 = vpop.f32.mrf.mxu0
    %v3650 = vadd.f32 0.0, %v3649
    %3651 = vdwg.mxu0
    %v3654 = vrot.slane %v3648, 6
    %v3655 = vrot.slane %v3650, 6
    %v3658 = vadd.f32 %v3081, %v3654
    %v3659 = vadd.f32 %v3082, %v3655
    %v3660 = vxor.u32 %v3658, 2147483648
    %v3661 = vxor.u32 %v3659, 2147483648
    %v3662 = vmul.f32 %v3660, 1.442695
    %v3663 = vpow.pop %v3662
    %v3664 = vmul.f32 %v3661, 1.442695
    %v3665 = vpow.pop %v3664
    %v3666 = vadd.f32 %v3663, 1.0
    %v3667 = vadd.f32 %v3665, 1.0
    %v3668 = vrcp.pop %v3666
    %v3669 = vmul.f32 1.0, %v3668
    %v3670 = vrcp.pop %v3667
    %v3671 = vmul.f32 1.0, %v3670
    %v3672 = vtanh.pop %v3659
    %v3674 = vrot.slane %v3571, 6
    %v3676 = vmul.f32 %v3669, %v3674
    %3678 = vrot.lane.b32.xlu0 %v3672, 64
    %v3679 = vpop.permute.xlu0 %3678
    %v3681 = vmul.f32 %v3669, %v3679
    %3683 = vrot.lane.b32.xlu0 %v3681, 64
    %v3684 = vpop.permute.xlu0 %3683
    %v3686 = vadd.f32 %v3676, %v3684
    %v3687 = vtanh.pop %v3686
    %3689 = vrot.lane.b32.xlu0 %v3687, 64
    %v3690 = vpop.permute.xlu0 %3689
    %v3692 = vmul.f32 %v3671, %v3690
    %v3694 = vrot.slane %v3692, 2
    %v3695 = vsel %vm1241, %v3694, 0
    %3697 = vmatprep.subr.mxu0 0.0
    %3698 = vmatpush1.msra.mxu0 0.0
    %3699 = vmatprep.subr.mxu0 0.0
    %3700 = vmatpush1.msra.mxu0 0.0
    %3701 = vmatprep.subr.mxu0 0.0
    %3702 = vmatpush1.msra.mxu0 0.0
    %3703 = vmatprep.subr.mxu0 0.0
    %3704 = vmatpush1.msra.mxu0 0.0
    %3705 = vmatprep.subr.mxu0 0.0
    %3706 = vmatpush1.msra.mxu0 0.0
    %3707 = vmatprep.subr.mxu0 0.0
    %3708 = vmatpush1.msra.mxu0 0.0
    %3709 = vmatprep.subr.mxu0 0.0
    %3710 = vmatpush1.msra.mxu0 0.0
    %3711 = vmatprep.subr.mxu0 0.0
    %3712 = vmatpush1.msra.mxu0 0.0
    %3713 = vmatprep.subr.mxu0 %v3098
    %3714 = vmatpush1.msra.mxu0 %v3097
    %3715 = vmatprep.subr.mxu0 %v3096
    %3716 = vmatpush1.msra.mxu0 %v3095
    %3717 = vmatprep.subr.mxu0 %v3094
    %3718 = vmatpush1.msra.mxu0 %v3093
    %3719 = vmatprep.subr.mxu0 %v3092
    %3720 = vmatpush1.msra.mxu0 %v3091
    %3721 = vmatprep.subr.mxu0 %v3090
    %3722 = vmatpush1.msra.mxu0 %v3089
    %3723 = vmatprep.subr.mxu0 %v3088
    %3724 = vmatpush1.msra.mxu0 %v3087
    %3725 = vmatprep.subr.mxu0 %v3086
    %3726 = vmatpush1.msra.mxu0 %v3085
    %3727 = vmatprep.subr.mxu0 %v3084
    %3728 = vmatpush1.msra.mxu0 %v3083
    %3729 = vmatprep.subr.mxu0 0.0
    %3730 = vmatpush2.msra.mxu0 0.0
    %3731 = vmatprep.subr.mxu0 0.0
    %3732 = vmatpush2.msra.mxu0 0.0
    %3733 = vmatprep.subr.mxu0 0.0
    %3734 = vmatpush2.msra.mxu0 0.0
    %3735 = vmatprep.subr.mxu0 0.0
    %3736 = vmatpush2.msra.mxu0 0.0
    %3737 = vmatprep.subr.mxu0 0.0
    %3738 = vmatpush2.msra.mxu0 0.0
    %3739 = vmatprep.subr.mxu0 0.0
    %3740 = vmatpush2.msra.mxu0 0.0
    %3741 = vmatprep.subr.mxu0 0.0
    %3742 = vmatpush2.msra.mxu0 0.0
    %3743 = vmatprep.subr.mxu0 0.0
    %3744 = vmatpush2.msra.mxu0 0.0
    %3745 = vmatprep.subr.mxu0 0.0
    %3746 = vmatpush2.msra.mxu0 0.0
    %3747 = vmatprep.subr.mxu0 0.0
    %3748 = vmatpush2.msra.mxu0 0.0
    %3749 = vmatprep.subr.mxu0 0.0
    %3750 = vmatpush2.msra.mxu0 0.0
    %3751 = vmatprep.subr.mxu0 0.0
    %3752 = vmatpush2.msra.mxu0 0.0
    %3753 = vmatprep.subr.mxu0 0.0
    %3754 = vmatpush2.msra.mxu0 0.0
    %3755 = vmatprep.subr.mxu0 0.0
    %3756 = vmatpush2.msra.mxu0 0.0
    %3757 = vmatprep.subr.mxu0 0.0
    %3758 = vmatpush2.msra.mxu0 0.0
    %3759 = vmatprep.subr.mxu0 0.0
    %3760 = vmatpush2.msra.mxu0 0.0
    %3761 = vmatprep.mubr.f32.mxu0 0.0
    %3762 = vmatmul.mubr.f32.gmra.mxu0 %v3695
    %v3763 = vpop.f32.mrf.mxu0
    %v3764 = vadd.f32 0.0, %v3763
    %v3765 = vpop.f32.mrf.mxu0
    %v3766 = vadd.f32 0.0, %v3765
    %3767 = vdwg.mxu0
    %v3770 = vrot.slane %v3764, 4
    %v3771 = vrot.slane %v3766, 4
    %v3774 = vadd.f32 %v3081, %v3770
    %v3775 = vadd.f32 %v3082, %v3771
    %v3776 = vxor.u32 %v3774, 2147483648
    %v3777 = vxor.u32 %v3775, 2147483648
    %v3778 = vmul.f32 %v3776, 1.442695
    %v3779 = vpow.pop %v3778
    %v3780 = vmul.f32 %v3777, 1.442695
    %v3781 = vpow.pop %v3780
    %v3782 = vadd.f32 %v3779, 1.0
    %v3783 = vadd.f32 %v3781, 1.0
    %v3784 = vrcp.pop %v3782
    %v3785 = vmul.f32 1.0, %v3784
    %v3786 = vrcp.pop %v3783
    %v3787 = vmul.f32 1.0, %v3786
    %v3788 = vtanh.pop %v3775
    %v3790 = vrot.slane %v3686, 6
    %v3792 = vmul.f32 %v3785, %v3790
    %3794 = vrot.lane.b32.xlu0 %v3788, 64
    %v3795 = vpop.permute.xlu0 %3794
    %v3797 = vmul.f32 %v3785, %v3795
    %3799 = vrot.lane.b32.xlu0 %v3797, 64
    %v3800 = vpop.permute.xlu0 %3799
    %v3802 = vadd.f32 %v3792, %v3800
    %v3803 = vtanh.pop %v3802
    %3805 = vrot.lane.b32.xlu0 %v3803, 64
    %v3806 = vpop.permute.xlu0 %3805
    %v3808 = vmul.f32 %v3787, %v3806
    %v3810 = vrot.slane %v3808, 4
    %v3811 = vsel %vm1241, %v3810, 0
    %3813 = vmatprep.subr.mxu0 0.0
    %3814 = vmatpush1.msra.mxu0 0.0
    %3815 = vmatprep.subr.mxu0 0.0
    %3816 = vmatpush1.msra.mxu0 0.0
    %3817 = vmatprep.subr.mxu0 0.0
    %3818 = vmatpush1.msra.mxu0 0.0
    %3819 = vmatprep.subr.mxu0 0.0
    %3820 = vmatpush1.msra.mxu0 0.0
    %3821 = vmatprep.subr.mxu0 0.0
    %3822 = vmatpush1.msra.mxu0 0.0
    %3823 = vmatprep.subr.mxu0 0.0
    %3824 = vmatpush1.msra.mxu0 0.0
    %3825 = vmatprep.subr.mxu0 0.0
    %3826 = vmatpush1.msra.mxu0 0.0
    %3827 = vmatprep.subr.mxu0 0.0
    %3828 = vmatpush1.msra.mxu0 0.0
    %3829 = vmatprep.subr.mxu0 %v3098
    %3830 = vmatpush1.msra.mxu0 %v3097
    %3831 = vmatprep.subr.mxu0 %v3096
    %3832 = vmatpush1.msra.mxu0 %v3095
    %3833 = vmatprep.subr.mxu0 %v3094
    %3834 = vmatpush1.msra.mxu0 %v3093
    %3835 = vmatprep.subr.mxu0 %v3092
    %3836 = vmatpush1.msra.mxu0 %v3091
    %3837 = vmatprep.subr.mxu0 %v3090
    %3838 = vmatpush1.msra.mxu0 %v3089
    %3839 = vmatprep.subr.mxu0 %v3088
    %3840 = vmatpush1.msra.mxu0 %v3087
    %3841 = vmatprep.subr.mxu0 %v3086
    %3842 = vmatpush1.msra.mxu0 %v3085
    %3843 = vmatprep.subr.mxu0 %v3084
    %3844 = vmatpush1.msra.mxu0 %v3083
    %3845 = vmatprep.subr.mxu0 0.0
    %3846 = vmatpush2.msra.mxu0 0.0
    %3847 = vmatprep.subr.mxu0 0.0
    %3848 = vmatpush2.msra.mxu0 0.0
    %3849 = vmatprep.subr.mxu0 0.0
    %3850 = vmatpush2.msra.mxu0 0.0
    %3851 = vmatprep.subr.mxu0 0.0
    %3852 = vmatpush2.msra.mxu0 0.0
    %3853 = vmatprep.subr.mxu0 0.0
    %3854 = vmatpush2.msra.mxu0 0.0
    %3855 = vmatprep.subr.mxu0 0.0
    %3856 = vmatpush2.msra.mxu0 0.0
    %3857 = vmatprep.subr.mxu0 0.0
    %3858 = vmatpush2.msra.mxu0 0.0
    %3859 = vmatprep.subr.mxu0 0.0
    %3860 = vmatpush2.msra.mxu0 0.0
    %3861 = vmatprep.subr.mxu0 0.0
    %3862 = vmatpush2.msra.mxu0 0.0
    %3863 = vmatprep.subr.mxu0 0.0
    %3864 = vmatpush2.msra.mxu0 0.0
    %3865 = vmatprep.subr.mxu0 0.0
    %3866 = vmatpush2.msra.mxu0 0.0
    %3867 = vmatprep.subr.mxu0 0.0
    %3868 = vmatpush2.msra.mxu0 0.0
    %3869 = vmatprep.subr.mxu0 0.0
    %3870 = vmatpush2.msra.mxu0 0.0
    %3871 = vmatprep.subr.mxu0 0.0
    %3872 = vmatpush2.msra.mxu0 0.0
    %3873 = vmatprep.subr.mxu0 0.0
    %3874 = vmatpush2.msra.mxu0 0.0
    %3875 = vmatprep.subr.mxu0 0.0
    %3876 = vmatpush2.msra.mxu0 0.0
    %3877 = vmatprep.mubr.f32.mxu0 0.0
    %3878 = vmatmul.mubr.f32.gmra.mxu0 %v3811
    %v3879 = vpop.f32.mrf.mxu0
    %v3880 = vadd.f32 0.0, %v3879
    %v3881 = vpop.f32.mrf.mxu0
    %v3882 = vadd.f32 0.0, %v3881
    %3883 = vdwg.mxu0
    %v3886 = vrot.slane %v3880, 2
    %v3887 = vrot.slane %v3882, 2
    %v3890 = vadd.f32 %v3081, %v3886
    %v3891 = vadd.f32 %v3082, %v3887
    %v3892 = vxor.u32 %v3890, 2147483648
    %v3893 = vxor.u32 %v3891, 2147483648
    %v3894 = vmul.f32 %v3892, 1.442695
    %v3895 = vpow.pop %v3894
    %v3896 = vmul.f32 %v3893, 1.442695
    %v3897 = vpow.pop %v3896
    %v3898 = vadd.f32 %v3895, 1.0
    %v3899 = vadd.f32 %v3897, 1.0
    %v3900 = vrcp.pop %v3898
    %v3901 = vmul.f32 1.0, %v3900
    %v3902 = vrcp.pop %v3899
    %v3903 = vmul.f32 1.0, %v3902
    %v3904 = vtanh.pop %v3891
    %v3906 = vrot.slane %v3802, 6
    %v3908 = vmul.f32 %v3901, %v3906
    %3910 = vrot.lane.b32.xlu0 %v3904, 64
    %v3911 = vpop.permute.xlu0 %3910
    %v3913 = vmul.f32 %v3901, %v3911
    %3915 = vrot.lane.b32.xlu0 %v3913, 64
    %v3916 = vpop.permute.xlu0 %3915
    %v3918 = vadd.f32 %v3908, %v3916
    %v3919 = vtanh.pop %v3918
    %3921 = vrot.lane.b32.xlu0 %v3919, 64
    %v3922 = vpop.permute.xlu0 %3921
    %v3924 = vmul.f32 %v3903, %v3922
    %v3925 = vld [vmem:[#allocation20] sm:$0xff]
    %v3926 = vld [vmem:[#allocation20 + $0x8] sm:$0xff]
    %v3927 = vld [vmem:[#allocation20 + $0x10] sm:$0xff]
    %v3928 = vld [vmem:[#allocation20 + $0x18] sm:$0xff]
    %v3929 = vld [vmem:[#allocation20 + $0x20] sm:$0xff]
    %v3930 = vld [vmem:[#allocation20 + $0x28] sm:$0xff]
    %v3931 = vld [vmem:[#allocation20 + $0x30] sm:$0xff]
    %v3932 = vld [vmem:[#allocation20 + $0x38] sm:$0xff]
    %v3933 = vld [vmem:[#allocation20 + $0x40] sm:$0xff]
    %v3934 = vld [vmem:[#allocation20 + $0x48] sm:$0xff]
    %v3935 = vld [vmem:[#allocation20 + $0x50] sm:$0xff]
    %v3936 = vld [vmem:[#allocation20 + $0x58] sm:$0xff]
    %v3937 = vld [vmem:[#allocation20 + $0x60] sm:$0xff]
    %v3938 = vld [vmem:[#allocation20 + $0x68] sm:$0xff]
    %v3939 = vld [vmem:[#allocation20 + $0x70] sm:$0xff]
    %v3940 = vld [vmem:[#allocation20 + $0x78] sm:$0xff]
    %v3941 = vld [vmem:[#allocation20 + $0x80] sm:$0xff]
    %v3942 = vld [vmem:[#allocation20 + $0x88] sm:$0xff]
    %v3943 = vld [vmem:[#allocation20 + $0x90] sm:$0xff]
    %v3944 = vld [vmem:[#allocation20 + $0x98] sm:$0xff]
    %v3945 = vld [vmem:[#allocation20 + $0xa0] sm:$0xff]
    %v3946 = vld [vmem:[#allocation20 + $0xa8] sm:$0xff]
    %v3947 = vld [vmem:[#allocation20 + $0xb0] sm:$0xff]
    %v3948 = vld [vmem:[#allocation20 + $0xb8] sm:$0xff]
    %v3949 = vld [vmem:[#allocation20 + $0xc0] sm:$0xff]
    %v3950 = vld [vmem:[#allocation20 + $0xc8] sm:$0xff]
    %v3951 = vld [vmem:[#allocation20 + $0xd0] sm:$0xff]
    %v3952 = vld [vmem:[#allocation20 + $0xd8] sm:$0xff]
    %v3953 = vld [vmem:[#allocation20 + $0xe0] sm:$0xff]
    %v3954 = vld [vmem:[#allocation20 + $0xe8] sm:$0xff]
    %v3955 = vld [vmem:[#allocation20 + $0xf0] sm:$0xff]
    %v3956 = vld [vmem:[#allocation20 + $0xf8] sm:$0xff]
    %v3957 = vrot.slane %v2868, 6
    %v3958 = vsel %vm1241, %v3957, 0
    %3960 = vmatprep.subr.mxu0 0.0
    %3961 = vmatpush1.msra.mxu0 0.0
    %3962 = vmatprep.subr.mxu0 0.0
    %3963 = vmatpush1.msra.mxu0 0.0
    %3964 = vmatprep.subr.mxu0 0.0
    %3965 = vmatpush1.msra.mxu0 0.0
    %3966 = vmatprep.subr.mxu0 0.0
    %3967 = vmatpush1.msra.mxu0 0.0
    %3968 = vmatprep.subr.mxu0 0.0
    %3969 = vmatpush1.msra.mxu0 0.0
    %3970 = vmatprep.subr.mxu0 0.0
    %3971 = vmatpush1.msra.mxu0 0.0
    %3972 = vmatprep.subr.mxu0 0.0
    %3973 = vmatpush1.msra.mxu0 0.0
    %3974 = vmatprep.subr.mxu0 0.0
    %3975 = vmatpush1.msra.mxu0 0.0
    %3976 = vmatprep.subr.mxu0 %v3956
    %3977 = vmatpush1.msra.mxu0 %v3955
    %3978 = vmatprep.subr.mxu0 %v3954
    %3979 = vmatpush1.msra.mxu0 %v3953
    %3980 = vmatprep.subr.mxu0 %v3952
    %3981 = vmatpush1.msra.mxu0 %v3951
    %3982 = vmatprep.subr.mxu0 %v3950
    %3983 = vmatpush1.msra.mxu0 %v3949
    %3984 = vmatprep.subr.mxu0 %v3948
    %3985 = vmatpush1.msra.mxu0 %v3947
    %3986 = vmatprep.subr.mxu0 %v3946
    %3987 = vmatpush1.msra.mxu0 %v3945
    %3988 = vmatprep.subr.mxu0 %v3944
    %3989 = vmatpush1.msra.mxu0 %v3943
    %3990 = vmatprep.subr.mxu0 %v3942
    %3991 = vmatpush1.msra.mxu0 %v3941
    %3992 = vmatprep.subr.mxu0 0.0
    %3993 = vmatpush2.msra.mxu0 0.0
    %3994 = vmatprep.subr.mxu0 0.0
    %3995 = vmatpush2.msra.mxu0 0.0
    %3996 = vmatprep.subr.mxu0 0.0
    %3997 = vmatpush2.msra.mxu0 0.0
    %3998 = vmatprep.subr.mxu0 0.0
    %3999 = vmatpush2.msra.mxu0 0.0
    %4000 = vmatprep.subr.mxu0 0.0
    %4001 = vmatpush2.msra.mxu0 0.0
    %4002 = vmatprep.subr.mxu0 0.0
    %4003 = vmatpush2.msra.mxu0 0.0
    %4004 = vmatprep.subr.mxu0 0.0
    %4005 = vmatpush2.msra.mxu0 0.0
    %4006 = vmatprep.subr.mxu0 0.0
    %4007 = vmatpush2.msra.mxu0 0.0
    %4008 = vmatprep.subr.mxu0 0.0
    %4009 = vmatpush2.msra.mxu0 0.0
    %4010 = vmatprep.subr.mxu0 0.0
    %4011 = vmatpush2.msra.mxu0 0.0
    %4012 = vmatprep.subr.mxu0 0.0
    %4013 = vmatpush2.msra.mxu0 0.0
    %4014 = vmatprep.subr.mxu0 0.0
    %4015 = vmatpush2.msra.mxu0 0.0
    %4016 = vmatprep.subr.mxu0 0.0
    %4017 = vmatpush2.msra.mxu0 0.0
    %4018 = vmatprep.subr.mxu0 0.0
    %4019 = vmatpush2.msra.mxu0 0.0
    %4020 = vmatprep.subr.mxu0 0.0
    %4021 = vmatpush2.msra.mxu0 0.0
    %4022 = vmatprep.subr.mxu0 0.0
    %4023 = vmatpush2.msra.mxu0 0.0
    %4024 = vmatprep.mubr.f32.mxu0 0.0
    %4025 = vmatmul.mubr.f32.gmra.mxu0 %v3958
    %v4026 = vpop.f32.mrf.mxu0
    %v4027 = vadd.f32 0.0, %v4026
    %v4028 = vpop.f32.mrf.mxu0
    %v4029 = vadd.f32 0.0, %v4028
    %4030 = vdwg.mxu0
    %v4031 = vrot.slane %v2866, 6
    %v4032 = vsel %vm1241, %v4031, 0
    %4034 = vmatprep.subr.mxu0 0.0
    %4035 = vmatpush1.msra.mxu0 0.0
    %4036 = vmatprep.subr.mxu0 0.0
    %4037 = vmatpush1.msra.mxu0 0.0
    %4038 = vmatprep.subr.mxu0 0.0
    %4039 = vmatpush1.msra.mxu0 0.0
    %4040 = vmatprep.subr.mxu0 0.0
    %4041 = vmatpush1.msra.mxu0 0.0
    %4042 = vmatprep.subr.mxu0 0.0
    %4043 = vmatpush1.msra.mxu0 0.0
    %4044 = vmatprep.subr.mxu0 0.0
    %4045 = vmatpush1.msra.mxu0 0.0
    %4046 = vmatprep.subr.mxu0 0.0
    %4047 = vmatpush1.msra.mxu0 0.0
    %4048 = vmatprep.subr.mxu0 0.0
    %4049 = vmatpush1.msra.mxu0 0.0
    %4050 = vmatprep.subr.mxu0 %v3940
    %4051 = vmatpush1.msra.mxu0 %v3939
    %4052 = vmatprep.subr.mxu0 %v3938
    %4053 = vmatpush1.msra.mxu0 %v3937
    %4054 = vmatprep.subr.mxu0 %v3936
    %4055 = vmatpush1.msra.mxu0 %v3935
    %4056 = vmatprep.subr.mxu0 %v3934
    %4057 = vmatpush1.msra.mxu0 %v3933
    %4058 = vmatprep.subr.mxu0 %v3932
    %4059 = vmatpush1.msra.mxu0 %v3931
    %4060 = vmatprep.subr.mxu0 %v3930
    %4061 = vmatpush1.msra.mxu0 %v3929
    %4062 = vmatprep.subr.mxu0 %v3928
    %4063 = vmatpush1.msra.mxu0 %v3927
    %4064 = vmatprep.subr.mxu0 %v3926
    %4065 = vmatpush1.msra.mxu0 %v3925
    %4066 = vmatprep.subr.mxu0 0.0
    %4067 = vmatpush2.msra.mxu0 0.0
    %4068 = vmatprep.subr.mxu0 0.0
    %4069 = vmatpush2.msra.mxu0 0.0
    %4070 = vmatprep.subr.mxu0 0.0
    %4071 = vmatpush2.msra.mxu0 0.0
    %4072 = vmatprep.subr.mxu0 0.0
    %4073 = vmatpush2.msra.mxu0 0.0
    %4074 = vmatprep.subr.mxu0 0.0
    %4075 = vmatpush2.msra.mxu0 0.0
    %4076 = vmatprep.subr.mxu0 0.0
    %4077 = vmatpush2.msra.mxu0 0.0
    %4078 = vmatprep.subr.mxu0 0.0
    %4079 = vmatpush2.msra.mxu0 0.0
    %4080 = vmatprep.subr.mxu0 0.0
    %4081 = vmatpush2.msra.mxu0 0.0
    %4082 = vmatprep.subr.mxu0 0.0
    %4083 = vmatpush2.msra.mxu0 0.0
    %4084 = vmatprep.subr.mxu0 0.0
    %4085 = vmatpush2.msra.mxu0 0.0
    %4086 = vmatprep.subr.mxu0 0.0
    %4087 = vmatpush2.msra.mxu0 0.0
    %4088 = vmatprep.subr.mxu0 0.0
    %4089 = vmatpush2.msra.mxu0 0.0
    %4090 = vmatprep.subr.mxu0 0.0
    %4091 = vmatpush2.msra.mxu0 0.0
    %4092 = vmatprep.subr.mxu0 0.0
    %4093 = vmatpush2.msra.mxu0 0.0
    %4094 = vmatprep.subr.mxu0 0.0
    %4095 = vmatpush2.msra.mxu0 0.0
    %4096 = vmatprep.subr.mxu0 0.0
    %4097 = vmatpush2.msra.mxu0 0.0
    %4098 = vmatprep.mubr.f32.mxu0 0.0
    %4099 = vmatmul.mubr.f32.gmra.mxu0 %v4032
    %v4100 = vpop.f32.mrf.mxu0
    %v4101 = vadd.f32 %v4027, %v4100
    %v4102 = vpop.f32.mrf.mxu0
    %v4103 = vadd.f32 %v4029, %v4102
    %4104 = vdwg.mxu0
    %v4105 = vld [vmem:[#allocation22] sm:$0x3]
    %v4107 = vlaneseq
    %v4108 = vshrl.u32 %v4107, 7
    %v4109 = vsub.s32 0, %v4108
    %v4110 = vrot.slane %v4105, %v4109
    %v4111 = vlaneseq
    %v4112 = vshrl.u32 %v4111, 7
    %v4113 = vsub.s32 1, %v4112
    %v4114 = vrot.slane %v4105, %v4113
    %v4117 = vadd.f32 %v4101, %v4110
    %v4118 = vadd.f32 %v4103, %v4114
    %v4119 = vxor.u32 %v4117, 2147483648
    %v4120 = vxor.u32 %v4118, 2147483648
    %v4121 = vmul.f32 %v4119, 1.442695
    %v4122 = vpow.pop %v4121
    %v4123 = vmul.f32 %v4120, 1.442695
    %v4124 = vpow.pop %v4123
    %v4125 = vadd.f32 %v4122, 1.0
    %v4126 = vadd.f32 %v4124, 1.0
    %v4127 = vrcp.pop %v4125
    %v4128 = vmul.f32 1.0, %v4127
    %v4129 = vrcp.pop %v4126
    %v4130 = vmul.f32 1.0, %v4129
    %v4131 = vtanh.pop %v4118
    %4133 = vrot.lane.b32.xlu0 %v4131, 64
    %v4134 = vpop.permute.xlu0 %4133
    %v4136 = vmul.f32 %v4128, %v4134
    %v4137 = vtanh.pop %v4136
    %v4138 = vmul.f32 %v4130, %v4137
    %v4139 = vld [vmem:[%s16] sm:$0xff]
    %v4140 = vld [vmem:[%s16 + $0x8] sm:$0xff]
    %v4141 = vld [vmem:[%s16 + $0x10] sm:$0xff]
    %v4142 = vld [vmem:[%s16 + $0x18] sm:$0xff]
    %v4143 = vld [vmem:[%s16 + $0x20] sm:$0xff]
    %v4144 = vld [vmem:[%s16 + $0x28] sm:$0xff]
    %v4145 = vld [vmem:[%s16 + $0x30] sm:$0xff]
    %v4146 = vld [vmem:[%s16 + $0x38] sm:$0xff]
    %v4147 = vld [vmem:[%s16 + $0x40] sm:$0xff]
    %v4148 = vld [vmem:[%s16 + $0x48] sm:$0xff]
    %v4149 = vld [vmem:[%s16 + $0x50] sm:$0xff]
    %v4150 = vld [vmem:[%s16 + $0x58] sm:$0xff]
    %v4151 = vld [vmem:[%s16 + $0x60] sm:$0xff]
    %v4152 = vld [vmem:[%s16 + $0x68] sm:$0xff]
    %v4153 = vld [vmem:[%s16 + $0x70] sm:$0xff]
    %v4154 = vld [vmem:[%s16 + $0x78] sm:$0xff]
    %v4156 = vsel %vm1241, %v4138, 0
    %4158 = vmatprep.subr.mxu0 0.0
    %4159 = vmatpush1.msra.mxu0 0.0
    %4160 = vmatprep.subr.mxu0 0.0
    %4161 = vmatpush1.msra.mxu0 0.0
    %4162 = vmatprep.subr.mxu0 0.0
    %4163 = vmatpush1.msra.mxu0 0.0
    %4164 = vmatprep.subr.mxu0 0.0
    %4165 = vmatpush1.msra.mxu0 0.0
    %4166 = vmatprep.subr.mxu0 0.0
    %4167 = vmatpush1.msra.mxu0 0.0
    %4168 = vmatprep.subr.mxu0 0.0
    %4169 = vmatpush1.msra.mxu0 0.0
    %4170 = vmatprep.subr.mxu0 0.0
    %4171 = vmatpush1.msra.mxu0 0.0
    %4172 = vmatprep.subr.mxu0 0.0
    %4173 = vmatpush1.msra.mxu0 0.0
    %4174 = vmatprep.subr.mxu0 0.0
    %4175 = vmatpush1.msra.mxu0 %v4154
    %4176 = vmatprep.subr.mxu0 0.0
    %4177 = vmatpush1.msra.mxu0 %v4153
    %4178 = vmatprep.subr.mxu0 0.0
    %4179 = vmatpush1.msra.mxu0 %v4152
    %4180 = vmatprep.subr.mxu0 0.0
    %4181 = vmatpush1.msra.mxu0 %v4151
    %4182 = vmatprep.subr.mxu0 0.0
    %4183 = vmatpush1.msra.mxu0 %v4150
    %4184 = vmatprep.subr.mxu0 0.0
    %4185 = vmatpush1.msra.mxu0 %v4149
    %4186 = vmatprep.subr.mxu0 0.0
    %4187 = vmatpush1.msra.mxu0 %v4148
    %4188 = vmatprep.subr.mxu0 0.0
    %4189 = vmatpush1.msra.mxu0 %v4147
    %4190 = vmatprep.subr.mxu0 0.0
    %4191 = vmatpush2.msra.mxu0 0.0
    %4192 = vmatprep.subr.mxu0 0.0
    %4193 = vmatpush2.msra.mxu0 0.0
    %4194 = vmatprep.subr.mxu0 0.0
    %4195 = vmatpush2.msra.mxu0 0.0
    %4196 = vmatprep.subr.mxu0 0.0
    %4197 = vmatpush2.msra.mxu0 0.0
    %4198 = vmatprep.subr.mxu0 0.0
    %4199 = vmatpush2.msra.mxu0 0.0
    %4200 = vmatprep.subr.mxu0 0.0
    %4201 = vmatpush2.msra.mxu0 0.0
    %4202 = vmatprep.subr.mxu0 0.0
    %4203 = vmatpush2.msra.mxu0 0.0
    %4204 = vmatprep.subr.mxu0 0.0
    %4205 = vmatpush2.msra.mxu0 0.0
    %4206 = vmatprep.subr.mxu0 0.0
    %4207 = vmatpush2.msra.mxu0 0.0
    %4208 = vmatprep.subr.mxu0 0.0
    %4209 = vmatpush2.msra.mxu0 0.0
    %4210 = vmatprep.subr.mxu0 0.0
    %4211 = vmatpush2.msra.mxu0 0.0
    %4212 = vmatprep.subr.mxu0 0.0
    %4213 = vmatpush2.msra.mxu0 0.0
    %4214 = vmatprep.subr.mxu0 0.0
    %4215 = vmatpush2.msra.mxu0 0.0
    %4216 = vmatprep.subr.mxu0 0.0
    %4217 = vmatpush2.msra.mxu0 0.0
    %4218 = vmatprep.subr.mxu0 0.0
    %4219 = vmatpush2.msra.mxu0 0.0
    %4220 = vmatprep.subr.mxu0 0.0
    %4221 = vmatpush2.msra.mxu0 0.0
    %4222 = vmatprep.mubr.f32.mxu0 0.0
    %4223 = vmatmul.mubr.f32.gmra.mxu0 %v4156
    %v4224 = vpop.f32.mrf.mxu0
    %v4225 = vadd.f32 0.0, %v4224
    %v4226 = vpop.f32.mrf.mxu0
    %4227 = vdwg.mxu0
    %v4229 = vrot.slane %v3924, 6
    %v4230 = vsel %vm1241, %v4229, 0
    %4232 = vmatprep.subr.mxu0 0.0
    %4233 = vmatpush1.msra.mxu0 0.0
    %4234 = vmatprep.subr.mxu0 0.0
    %4235 = vmatpush1.msra.mxu0 0.0
    %4236 = vmatprep.subr.mxu0 0.0
    %4237 = vmatpush1.msra.mxu0 0.0
    %4238 = vmatprep.subr.mxu0 0.0
    %4239 = vmatpush1.msra.mxu0 0.0
    %4240 = vmatprep.subr.mxu0 0.0
    %4241 = vmatpush1.msra.mxu0 0.0
    %4242 = vmatprep.subr.mxu0 0.0
    %4243 = vmatpush1.msra.mxu0 0.0
    %4244 = vmatprep.subr.mxu0 0.0
    %4245 = vmatpush1.msra.mxu0 0.0
    %4246 = vmatprep.subr.mxu0 0.0
    %4247 = vmatpush1.msra.mxu0 0.0
    %4248 = vmatprep.subr.mxu0 0.0
    %4249 = vmatpush1.msra.mxu0 %v4146
    %4250 = vmatprep.subr.mxu0 0.0
    %4251 = vmatpush1.msra.mxu0 %v4145
    %4252 = vmatprep.subr.mxu0 0.0
    %4253 = vmatpush1.msra.mxu0 %v4144
    %4254 = vmatprep.subr.mxu0 0.0
    %4255 = vmatpush1.msra.mxu0 %v4143
    %4256 = vmatprep.subr.mxu0 0.0
    %4257 = vmatpush1.msra.mxu0 %v4142
    %4258 = vmatprep.subr.mxu0 0.0
    %4259 = vmatpush1.msra.mxu0 %v4141
    %4260 = vmatprep.subr.mxu0 0.0
    %4261 = vmatpush1.msra.mxu0 %v4140
    %4262 = vmatprep.subr.mxu0 0.0
    %4263 = vmatpush1.msra.mxu0 %v4139
    %4264 = vmatprep.subr.mxu0 0.0
    %4265 = vmatpush2.msra.mxu0 0.0
    %4266 = vmatprep.subr.mxu0 0.0
    %4267 = vmatpush2.msra.mxu0 0.0
    %4268 = vmatprep.subr.mxu0 0.0
    %4269 = vmatpush2.msra.mxu0 0.0
    %4270 = vmatprep.subr.mxu0 0.0
    %4271 = vmatpush2.msra.mxu0 0.0
    %4272 = vmatprep.subr.mxu0 0.0
    %4273 = vmatpush2.msra.mxu0 0.0
    %4274 = vmatprep.subr.mxu0 0.0
    %4275 = vmatpush2.msra.mxu0 0.0
    %4276 = vmatprep.subr.mxu0 0.0
    %4277 = vmatpush2.msra.mxu0 0.0
    %4278 = vmatprep.subr.mxu0 0.0
    %4279 = vmatpush2.msra.mxu0 0.0
    %4280 = vmatprep.subr.mxu0 0.0
    %4281 = vmatpush2.msra.mxu0 0.0
    %4282 = vmatprep.subr.mxu0 0.0
    %4283 = vmatpush2.msra.mxu0 0.0
    %4284 = vmatprep.subr.mxu0 0.0
    %4285 = vmatpush2.msra.mxu0 0.0
    %4286 = vmatprep.subr.mxu0 0.0
    %4287 = vmatpush2.msra.mxu0 0.0
    %4288 = vmatprep.subr.mxu0 0.0
    %4289 = vmatpush2.msra.mxu0 0.0
    %4290 = vmatprep.subr.mxu0 0.0
    %4291 = vmatpush2.msra.mxu0 0.0
    %4292 = vmatprep.subr.mxu0 0.0
    %4293 = vmatpush2.msra.mxu0 0.0
    %4294 = vmatprep.subr.mxu0 0.0
    %4295 = vmatpush2.msra.mxu0 0.0
    %4296 = vmatprep.mubr.f32.mxu0 0.0
    %4297 = vmatmul.mubr.f32.gmra.mxu0 %v4230
    %v4298 = vpop.f32.mrf.mxu0
    %v4299 = vadd.f32 %v4225, %v4298
    %v4300 = vpop.f32.mrf.mxu0
    %4301 = vdwg.mxu0
    %v4302 = vld [vmem:[#allocation23] sm:$0x1]
    %v4304 = vlaneseq
    %v4305 = vshrl.u32 %v4304, 7
    %v4306 = vsub.s32 0, %v4305
    %v4307 = vrot.slane %v4302, %v4306
    %v4309 = vadd.f32 %v4299, %v4307
    %vm4310 = vcmask 58368
    %4311 = vst.msk [vmem:[#allocation25] sm:$0x3] %vm4310, %v4309
    // Predicated region
    $region122: #{cldnn_forward.1} parent=1 // pred_check
      _
    $region123: #{cldnn_forward.1} parent=1 // pred_check_branch
      %4313 = sbr.rel (0) target = $region125
    $region124: #{cldnn_forward.1} parent=1 // pred_region
      %s4315 = ssub.s32 32, 32
      %4316 = vsyncadd [#allocation7], %s4315
      %s4318 = sshll.u32 [#allocation25], 4
      %s4319 = int_to_ptr.vmem [resolvable:$true] %s4318
      %4321 = dma.vmem_to_hbm [thread:$0]  %s4319, 32, %s18, [#allocation7]
    $region125: #{cldnn_forward.1} parent=1 // pred_fallthru
      _
    // Predicated region
    $region126: #{cldnn_forward.1} parent=1 // pred_check
      _
    $region127: #{cldnn_forward.1} parent=1 // pred_check_branch
      %4323 = sbr.rel (0) target = $region129
    $region128: #{cldnn_forward.1} parent=1 // pred_region
      %4324 = dma.done [#allocation7], 32
    $region129: #{cldnn_forward.1} parent=1 // pred_fallthru
      _
    %4325 = vsyncpa [#allocation6], 1
    %4326 = vsyncpa [#allocation9], 1
    %4327 = vsyncpa [#allocation12], 1
    %4328 = vsyncpa [#allocation15], 1
    %4329 = vsyncpa [#allocation18], 1
    %4330 = vsyncpa [#allocation21], 1
    %4331 = vsyncpa [#allocation24], 1
    %4332 = vsyncpa [#allocation7], 1

</llo_original>
